<compile_context>
chip_gen: v7x
topology: tpu7x:2x2x1
jax: 0.10.0
libtpu: 0.0.40
codegen_flags: <defaults>
</compile_context>

<pallas_src>
import jax
import jax.numpy as jnp
from jax import lax
from jax.experimental import pallas as pl
from jax.experimental.pallas import tpu as pltpu

EPS = 1e-5  # PyTorch InstanceNorm3d default (affine=False, biased variance)


def _round_up(x, m):
    return (x + m - 1) // m * m


def _make_kernel(offs, NP, SHIFT, OFF_STORE, VP, inv_n):
    """Fused conv->IN->ReLU->conv->IN->ReLU for one batch instance."""

    def kernel(x_ref, w1_ref, b1_ref, w2_ref, b2_ref, mask_ref, o_ref, pad_ref):
        Cp = pad_ref.shape[0]
        mask = mask_ref[...]  # (1, NP) f32, 1.0 on valid voxels

        def conv(src_ref, w_ref, b_ref, base):
            # im2col along lanes: 27 shifted views stacked on the K axis,
            # then one big MXU matmul.
            slabs = [src_ref[:, base + o: base + o + NP].astype(jnp.float32)
                     for o in offs]
            patches = jnp.concatenate(slabs, axis=0)            # (27*C, NP)
            y = jnp.dot(w_ref[...].astype(jnp.float32), patches,
                        preferred_element_type=jnp.float32)     # (Cout, NP)
            return y + b_ref[...].astype(jnp.float32)           # bias bcast on lanes

        def inst_norm_relu(y):
            # Masked single-pass stats (biased variance), as InstanceNorm3d.
            ym = y * mask
            mean = jnp.sum(ym, axis=-1, keepdims=True) * inv_n
            var = jnp.sum(ym * ym, axis=-1, keepdims=True) * inv_n - mean * mean
            var = jnp.maximum(var, 0.0)
            yn = (y - mean) * lax.rsqrt(var + EPS)
            return jnp.maximum(yn, 0.0) * mask                  # zero invalid voxels

        # conv1 + bias -> InstanceNorm -> ReLU
        y1 = inst_norm_relu(conv(x_ref, w1_ref, b1_ref, 0))

        # Re-pad for conv2: zero only the halo strips (lane-aligned, each step so
        # it is safe under parallel core sharding), then one dense aligned store
        # of the masked interior.  Masked-out (garbage) columns of y1 are zero
        # and land exactly on padded-border positions of the conv2 volume.
        pad_ref[:, 0:OFF_STORE] = jnp.zeros((Cp, OFF_STORE), jnp.float32)
        if VP > OFF_STORE + NP:
            pad_ref[:, OFF_STORE + NP:VP] = jnp.zeros(
                (Cp, VP - OFF_STORE - NP), jnp.float32)
        pad_ref[:, OFF_STORE:OFF_STORE + NP] = y1

        # conv2 + bias -> InstanceNorm -> ReLU
        y2 = inst_norm_relu(conv(pad_ref, w2_ref, b2_ref, SHIFT))
        o_ref[...] = y2.astype(o_ref.dtype)

    return kernel


def conv3d_block(x_ncdhw, w1, b1, w2, b2):
    """x_ncdhw: (N, Cin, D, H, W); w*: PyTorch layout (Cout, Cin|Cout, 3, 3, 3)."""
    N, Cin, D, H, W = x_ncdhw.shape
    Cout = w1.shape[0]
    Dp, Hp, Wp = D + 2, H + 2, W + 2
    PL = Hp * Wp                    # flattened padded plane size
    NPV = D * PL                    # "virtual" output positions (incl. garbage cols)
    NP = _round_up(NPV, 128)        # lane-aligned compute width
    OFF = PL + Wp + 1               # flat offset of voxel (1,1,1) in padded volume
    SHIFT = (-OFF) % 128            # lead so the re-pad store is 128-lane aligned
    OFF_STORE = SHIFT + OFF
    MAXOFF = 2 * PL + 2 * Wp + 2    # largest tap offset
    VP = _round_up(SHIFT + MAXOFF + NP, 128)

    Cin_p = _round_up(Cin, 8)       # sublane-aligned channel counts
    Cout_p = _round_up(Cout, 8)

    # Flattened, zero-padded volume; padded channels / tail lanes are zero.
    xp = jnp.pad(x_ncdhw, ((0, 0), (0, 0), (1, 1), (1, 1), (1, 1)))
    xflat = jnp.pad(xp.reshape(N, Cin, Dp * PL),
                    ((0, 0), (0, Cin_p - Cin), (0, VP - Dp * PL)))

    # Fold 27 taps into the contraction dim: (Cout_p, 27*Cin_p), K order (kd,kh,kw,c).
    def fold_w(w, cin, cin_p):
        wt = jnp.transpose(w, (0, 2, 3, 4, 1))                     # (Cout,3,3,3,cin)
        wt = jnp.pad(wt, ((0, Cout_p - Cout), (0, 0), (0, 0), (0, 0),
                          (0, cin_p - cin)))
        return wt.reshape(Cout_p, 27 * cin_p).astype(jnp.float32)

    w1m = fold_w(w1, Cin, Cin_p)
    w2m = fold_w(w2, Cout, Cout_p)
    b1c = jnp.pad(b1.reshape(Cout, 1), ((0, Cout_p - Cout), (0, 0))).astype(jnp.float32)
    b2c = jnp.pad(b2.reshape(Cout, 1), ((0, Cout_p - Cout), (0, 0))).astype(jnp.float32)

    # Validity mask over the NP virtual positions (p < NPV, h < H, w < W).
    p = jnp.arange(NP)
    pp = p % PL
    valid = (p < NPV) & ((pp // Wp) < H) & ((pp % Wp) < W)
    mask = valid.astype(jnp.float32).reshape(1, NP)

    offs = tuple(kd * PL + kh * Wp + kw
                 for kd in range(3) for kh in range(3) for kw in range(3))
    inv_n = 1.0 / float(D * H * W)

    kernel = _make_kernel(offs, NP, SHIFT, OFF_STORE, VP, inv_n)

    out_flat = pl.pallas_call(
        kernel,
        out_shape=jax.ShapeDtypeStruct((N, Cout_p, NP), x_ncdhw.dtype),
        grid_spec=pltpu.PrefetchScalarGridSpec(
            num_scalar_prefetch=0,
            grid=(N,),  # one batch instance per step (InstanceNorm is per-instance)
            in_specs=[
                pl.BlockSpec((None, Cin_p, VP), lambda n: (n, 0, 0)),
                pl.BlockSpec((Cout_p, 27 * Cin_p), lambda n: (0, 0)),
                pl.BlockSpec((Cout_p, 1), lambda n: (0, 0)),
                pl.BlockSpec((Cout_p, 27 * Cout_p), lambda n: (0, 0)),
                pl.BlockSpec((Cout_p, 1), lambda n: (0, 0)),
                pl.BlockSpec((1, NP), lambda n: (0, 0)),
            ],
            out_specs=pl.BlockSpec((None, Cout_p, NP), lambda n: (n, 0, 0)),
            scratch_shapes=[pltpu.VMEM((Cout_p, VP), jnp.float32)],
        ),
        compiler_params=pltpu.CompilerParams(dimension_semantics=("parallel",)),
    )(xflat, w1m, b1c, w2m, b2c, mask)

    # Drop garbage columns / padded channels and unflatten back to NCDHW.
    out = out_flat[:, :Cout, :NPV].reshape(N, Cout, D, Hp, Wp)[:, :, :, :H, :W]
    return out


def torch_reference(x, w1, b1, w2, b2):
    """Pure-JAX replica of the PyTorch module (NCDHW / OIDHW)."""
    dn = lax.conv_dimension_numbers(x.shape, w1.shape, ("NCDHW", "OIDHW", "NCDHW"))

    def block(h, w, b):
        h = lax.conv_general_dilated(h, w, (1, 1, 1), [(1, 1)] * 3,
                                     dimension_numbers=dn)
        h = h + b[None, :, None, None, None]
        m = jnp.mean(h, axis=(2, 3, 4), keepdims=True)
        v = jnp.mean((h - m) ** 2, axis=(2, 3, 4), keepdims=True)
        return jnp.maximum((h - m) / jnp.sqrt(v + EPS), 0.0)

    return block(block(x, w1, b1), w2, b2)


if __name__ == "__main__":
    N, Cin, Cout, D, H, W = 2, 4, 8, 8, 8, 8
    key = jax.random.PRNGKey(0)
    k1, k2, k3, k4, k5 = jax.random.split(key, 5)

    x = jax.random.normal(k1, (N, Cin, D, H, W), jnp.float32)
    w1 = jax.random.normal(k2, (Cout, Cin, 3, 3, 3), jnp.float32) * 0.1
    b1 = jax.random.normal(k3, (Cout,), jnp.float32) * 0.1
    w2 = jax.random.normal(k4, (Cout, Cout, 3, 3, 3), jnp.float32) * 0.1
    b2 = jax.random.normal(k5, (Cout,), jnp.float32) * 0.1

    out = jax.block_until_ready(conv3d_block(x, w1, b1, w2, b2))
    ref = jax.block_until_ready(torch_reference(x, w1, b1, w2, b2))

    assert out.shape == (N, Cout, D, H, W), out.shape
    max_err = float(jnp.max(jnp.abs(out - ref)))
    assert max_err < 5e-3, f"kernel/reference mismatch, max abs err = {max_err}"
    print("KERNEL_OK")
</pallas_src>

<mosaic_0001>
module attributes {stable_mosaic.version = 11 : i64} {
  func.func @kernel(%arg0: i32, %arg1: memref<1x8x1152xf32, #tpu.memory_space<vmem>>, %arg2: memref<8x216xf32, #tpu.memory_space<vmem>>, %arg3: memref<8x1xf32, #tpu.memory_space<vmem>>, %arg4: memref<8x216xf32, #tpu.memory_space<vmem>>, %arg5: memref<8x1xf32, #tpu.memory_space<vmem>>, %arg6: memref<1x896xf32, #tpu.memory_space<vmem>>, %arg7: memref<1x8x896xf32, #tpu.memory_space<vmem>>, %arg8: memref<8x1152xf32, #tpu.memory_space<vmem>>) attributes {dimension_semantics = [#tpu.dimension_semantics<parallel>], iteration_bounds = array<i64: 2>, scalar_prefetch = 0 : i64, scratch_operands = 1 : i64, tpu.core_type = #tpu.core_type<tc>, window_params = [{transform_indices = @transform_0, window_bounds = array<i64: 1, 8, 1152>}, {pipeline_mode = #tpu.pipeline_mode<synchronous>, transform_indices = @transform_1, window_bounds = array<i64: 8, 216>}, {pipeline_mode = #tpu.pipeline_mode<synchronous>, transform_indices = @transform_2, window_bounds = array<i64: 8, 1>}, {pipeline_mode = #tpu.pipeline_mode<synchronous>, transform_indices = @transform_3, window_bounds = array<i64: 8, 216>}, {pipeline_mode = #tpu.pipeline_mode<synchronous>, transform_indices = @transform_4, window_bounds = array<i64: 8, 1>}, {pipeline_mode = #tpu.pipeline_mode<synchronous>, transform_indices = @transform_5, window_bounds = array<i64: 1, 896>}, {transform_indices = @transform_6, window_bounds = array<i64: 1, 8, 896>}]} {
    %c0 = arith.constant 0 : index
    %c0_0 = arith.constant 0 : index
    %0 = vector.load %arg6[%c0, %c0_0] : memref<1x896xf32, #tpu.memory_space<vmem>>, vector<1x896xf32>
    %c0_1 = arith.constant 0 : index
    %c0_2 = arith.constant 0 : index
    %c0_3 = arith.constant 0 : index
    %1 = vector.load %arg1[%c0_1, %c0_2, %c0_3] : memref<1x8x1152xf32, #tpu.memory_space<vmem>>, vector<1x8x896xf32>
    %2 = vector.shape_cast %1 : vector<1x8x896xf32> to vector<8x896xf32>
    %c0_4 = arith.constant 0 : index
    %c0_5 = arith.constant 0 : index
    %c1 = arith.constant 1 : index
    %3 = vector.load %arg1[%c0_4, %c0_5, %c1] : memref<1x8x1152xf32, #tpu.memory_space<vmem>>, vector<1x8x896xf32>
    %4 = vector.shape_cast %3 : vector<1x8x896xf32> to vector<8x896xf32>
    %c0_6 = arith.constant 0 : index
    %c0_7 = arith.constant 0 : index
    %c2 = arith.constant 2 : index
    %5 = vector.load %arg1[%c0_6, %c0_7, %c2] : memref<1x8x1152xf32, #tpu.memory_space<vmem>>, vector<1x8x896xf32>
    %6 = vector.shape_cast %5 : vector<1x8x896xf32> to vector<8x896xf32>
    %c0_8 = arith.constant 0 : index
    %c0_9 = arith.constant 0 : index
    %c10 = arith.constant 10 : index
    %7 = vector.load %arg1[%c0_8, %c0_9, %c10] : memref<1x8x1152xf32, #tpu.memory_space<vmem>>, vector<1x8x896xf32>
    %8 = vector.shape_cast %7 : vector<1x8x896xf32> to vector<8x896xf32>
    %c0_10 = arith.constant 0 : index
    %c0_11 = arith.constant 0 : index
    %c11 = arith.constant 11 : index
    %9 = vector.load %arg1[%c0_10, %c0_11, %c11] : memref<1x8x1152xf32, #tpu.memory_space<vmem>>, vector<1x8x896xf32>
    %10 = vector.shape_cast %9 : vector<1x8x896xf32> to vector<8x896xf32>
    %c0_12 = arith.constant 0 : index
    %c0_13 = arith.constant 0 : index
    %c12 = arith.constant 12 : index
    %11 = vector.load %arg1[%c0_12, %c0_13, %c12] : memref<1x8x1152xf32, #tpu.memory_space<vmem>>, vector<1x8x896xf32>
    %12 = vector.shape_cast %11 : vector<1x8x896xf32> to vector<8x896xf32>
    %c0_14 = arith.constant 0 : index
    %c0_15 = arith.constant 0 : index
    %c20 = arith.constant 20 : index
    %13 = vector.load %arg1[%c0_14, %c0_15, %c20] : memref<1x8x1152xf32, #tpu.memory_space<vmem>>, vector<1x8x896xf32>
    %14 = vector.shape_cast %13 : vector<1x8x896xf32> to vector<8x896xf32>
    %c0_16 = arith.constant 0 : index
    %c0_17 = arith.constant 0 : index
    %c21 = arith.constant 21 : index
    %15 = vector.load %arg1[%c0_16, %c0_17, %c21] : memref<1x8x1152xf32, #tpu.memory_space<vmem>>, vector<1x8x896xf32>
    %16 = vector.shape_cast %15 : vector<1x8x896xf32> to vector<8x896xf32>
    %c0_18 = arith.constant 0 : index
    %c0_19 = arith.constant 0 : index
    %c22 = arith.constant 22 : index
    %17 = vector.load %arg1[%c0_18, %c0_19, %c22] : memref<1x8x1152xf32, #tpu.memory_space<vmem>>, vector<1x8x896xf32>
    %18 = vector.shape_cast %17 : vector<1x8x896xf32> to vector<8x896xf32>
    %c0_20 = arith.constant 0 : index
    %c0_21 = arith.constant 0 : index
    %c100 = arith.constant 100 : index
    %19 = vector.load %arg1[%c0_20, %c0_21, %c100] : memref<1x8x1152xf32, #tpu.memory_space<vmem>>, vector<1x8x896xf32>
    %20 = vector.shape_cast %19 : vector<1x8x896xf32> to vector<8x896xf32>
    %c0_22 = arith.constant 0 : index
    %c0_23 = arith.constant 0 : index
    %c101 = arith.constant 101 : index
    %21 = vector.load %arg1[%c0_22, %c0_23, %c101] : memref<1x8x1152xf32, #tpu.memory_space<vmem>>, vector<1x8x896xf32>
    %22 = vector.shape_cast %21 : vector<1x8x896xf32> to vector<8x896xf32>
    %c0_24 = arith.constant 0 : index
    %c0_25 = arith.constant 0 : index
    %c102 = arith.constant 102 : index
    %23 = vector.load %arg1[%c0_24, %c0_25, %c102] : memref<1x8x1152xf32, #tpu.memory_space<vmem>>, vector<1x8x896xf32>
    %24 = vector.shape_cast %23 : vector<1x8x896xf32> to vector<8x896xf32>
    %c0_26 = arith.constant 0 : index
    %c0_27 = arith.constant 0 : index
    %c110 = arith.constant 110 : index
    %25 = vector.load %arg1[%c0_26, %c0_27, %c110] : memref<1x8x1152xf32, #tpu.memory_space<vmem>>, vector<1x8x896xf32>
    %26 = vector.shape_cast %25 : vector<1x8x896xf32> to vector<8x896xf32>
    %c0_28 = arith.constant 0 : index
    %c0_29 = arith.constant 0 : index
    %c111 = arith.constant 111 : index
    %27 = vector.load %arg1[%c0_28, %c0_29, %c111] : memref<1x8x1152xf32, #tpu.memory_space<vmem>>, vector<1x8x896xf32>
    %28 = vector.shape_cast %27 : vector<1x8x896xf32> to vector<8x896xf32>
    %c0_30 = arith.constant 0 : index
    %c0_31 = arith.constant 0 : index
    %c112 = arith.constant 112 : index
    %29 = vector.load %arg1[%c0_30, %c0_31, %c112] : memref<1x8x1152xf32, #tpu.memory_space<vmem>>, vector<1x8x896xf32>
    %30 = vector.shape_cast %29 : vector<1x8x896xf32> to vector<8x896xf32>
    %c0_32 = arith.constant 0 : index
    %c0_33 = arith.constant 0 : index
    %c120 = arith.constant 120 : index
    %31 = vector.load %arg1[%c0_32, %c0_33, %c120] : memref<1x8x1152xf32, #tpu.memory_space<vmem>>, vector<1x8x896xf32>
    %32 = vector.shape_cast %31 : vector<1x8x896xf32> to vector<8x896xf32>
    %c0_34 = arith.constant 0 : index
    %c0_35 = arith.constant 0 : index
    %c121 = arith.constant 121 : index
    %33 = vector.load %arg1[%c0_34, %c0_35, %c121] : memref<1x8x1152xf32, #tpu.memory_space<vmem>>, vector<1x8x896xf32>
    %34 = vector.shape_cast %33 : vector<1x8x896xf32> to vector<8x896xf32>
    %c0_36 = arith.constant 0 : index
    %c0_37 = arith.constant 0 : index
    %c122 = arith.constant 122 : index
    %35 = vector.load %arg1[%c0_36, %c0_37, %c122] : memref<1x8x1152xf32, #tpu.memory_space<vmem>>, vector<1x8x896xf32>
    %36 = vector.shape_cast %35 : vector<1x8x896xf32> to vector<8x896xf32>
    %c0_38 = arith.constant 0 : index
    %c0_39 = arith.constant 0 : index
    %c200 = arith.constant 200 : index
    %37 = vector.load %arg1[%c0_38, %c0_39, %c200] : memref<1x8x1152xf32, #tpu.memory_space<vmem>>, vector<1x8x896xf32>
    %38 = vector.shape_cast %37 : vector<1x8x896xf32> to vector<8x896xf32>
    %c0_40 = arith.constant 0 : index
    %c0_41 = arith.constant 0 : index
    %c201 = arith.constant 201 : index
    %39 = vector.load %arg1[%c0_40, %c0_41, %c201] : memref<1x8x1152xf32, #tpu.memory_space<vmem>>, vector<1x8x896xf32>
    %40 = vector.shape_cast %39 : vector<1x8x896xf32> to vector<8x896xf32>
    %c0_42 = arith.constant 0 : index
    %c0_43 = arith.constant 0 : index
    %c202 = arith.constant 202 : index
    %41 = vector.load %arg1[%c0_42, %c0_43, %c202] : memref<1x8x1152xf32, #tpu.memory_space<vmem>>, vector<1x8x896xf32>
    %42 = vector.shape_cast %41 : vector<1x8x896xf32> to vector<8x896xf32>
    %c0_44 = arith.constant 0 : index
    %c0_45 = arith.constant 0 : index
    %c210 = arith.constant 210 : index
    %43 = vector.load %arg1[%c0_44, %c0_45, %c210] : memref<1x8x1152xf32, #tpu.memory_space<vmem>>, vector<1x8x896xf32>
    %44 = vector.shape_cast %43 : vector<1x8x896xf32> to vector<8x896xf32>
    %c0_46 = arith.constant 0 : index
    %c0_47 = arith.constant 0 : index
    %c211 = arith.constant 211 : index
    %45 = vector.load %arg1[%c0_46, %c0_47, %c211] : memref<1x8x1152xf32, #tpu.memory_space<vmem>>, vector<1x8x896xf32>
    %46 = vector.shape_cast %45 : vector<1x8x896xf32> to vector<8x896xf32>
    %c0_48 = arith.constant 0 : index
    %c0_49 = arith.constant 0 : index
    %c212 = arith.constant 212 : index
    %47 = vector.load %arg1[%c0_48, %c0_49, %c212] : memref<1x8x1152xf32, #tpu.memory_space<vmem>>, vector<1x8x896xf32>
    %48 = vector.shape_cast %47 : vector<1x8x896xf32> to vector<8x896xf32>
    %c0_50 = arith.constant 0 : index
    %c0_51 = arith.constant 0 : index
    %c220 = arith.constant 220 : index
    %49 = vector.load %arg1[%c0_50, %c0_51, %c220] : memref<1x8x1152xf32, #tpu.memory_space<vmem>>, vector<1x8x896xf32>
    %50 = vector.shape_cast %49 : vector<1x8x896xf32> to vector<8x896xf32>
    %c0_52 = arith.constant 0 : index
    %c0_53 = arith.constant 0 : index
    %c221 = arith.constant 221 : index
    %51 = vector.load %arg1[%c0_52, %c0_53, %c221] : memref<1x8x1152xf32, #tpu.memory_space<vmem>>, vector<1x8x896xf32>
    %52 = vector.shape_cast %51 : vector<1x8x896xf32> to vector<8x896xf32>
    %c0_54 = arith.constant 0 : index
    %c0_55 = arith.constant 0 : index
    %c222 = arith.constant 222 : index
    %53 = vector.load %arg1[%c0_54, %c0_55, %c222] : memref<1x8x1152xf32, #tpu.memory_space<vmem>>, vector<1x8x896xf32>
    %54 = vector.shape_cast %53 : vector<1x8x896xf32> to vector<8x896xf32>
    %55 = tpu.concatenate %2, %4, %6, %8, %10, %12, %14, %16, %18, %20, %22, %24, %26, %28, %30, %32 in 0 : vector<8x896xf32>, vector<8x896xf32>, vector<8x896xf32>, vector<8x896xf32>, vector<8x896xf32>, vector<8x896xf32>, vector<8x896xf32>, vector<8x896xf32>, vector<8x896xf32>, vector<8x896xf32>, vector<8x896xf32>, vector<8x896xf32>, vector<8x896xf32>, vector<8x896xf32>, vector<8x896xf32>, vector<8x896xf32> -> vector<128x896xf32>
    %56 = tpu.concatenate %34, %36, %38, %40, %42, %44, %46, %48, %50, %52, %54 in 0 : vector<8x896xf32>, vector<8x896xf32>, vector<8x896xf32>, vector<8x896xf32>, vector<8x896xf32>, vector<8x896xf32>, vector<8x896xf32>, vector<8x896xf32>, vector<8x896xf32>, vector<8x896xf32>, vector<8x896xf32> -> vector<88x896xf32>
    %57 = tpu.concatenate %55, %56 in 0 : vector<128x896xf32>, vector<88x896xf32> -> vector<216x896xf32>
    %c0_56 = arith.constant 0 : index
    %c0_57 = arith.constant 0 : index
    %58 = vector.load %arg2[%c0_56, %c0_57] : memref<8x216xf32, #tpu.memory_space<vmem>>, vector<8x216xf32>
    %cst = arith.constant dense<0.000000e+00> : vector<8x896xf32>
    %59 = tpu.matmul %58, %57, %cst {dimension_numbers = #tpu.dot_dimension_numbers<[1], [0], [0], [1], [0, 0, 1, 1], [], []>} : vector<8x216xf32>, vector<216x896xf32>, vector<8x896xf32> -> vector<8x896xf32>
    %c0_58 = arith.constant 0 : index
    %c0_59 = arith.constant 0 : index
    %60 = vector.load %arg3[%c0_58, %c0_59] : memref<8x1xf32, #tpu.memory_space<vmem>>, vector<8x1xf32>
    %61 = vector.broadcast %60 : vector<8x1xf32> to vector<8x896xf32>
    %62 = arith.addf %59, %61 : vector<8x896xf32>
    %63 = vector.broadcast %0 : vector<1x896xf32> to vector<8x896xf32>
    %64 = arith.mulf %62, %63 : vector<8x896xf32>
    %cst_60 = arith.constant dense<0.000000e+00> : vector<8xf32>
    %65 = vector.multi_reduction <add>, %64, %cst_60 [1] : vector<8x896xf32> to vector<8xf32>
    %66 = vector.shape_cast %65 : vector<8xf32> to vector<8x1xf32>
    %cst_61 = arith.constant 0.001953125 : f32
    %67 = vector.broadcast %cst_61 : f32 to vector<8x1xf32>
    %68 = arith.mulf %66, %67 : vector<8x1xf32>
    %69 = arith.mulf %64, %64 : vector<8x896xf32>
    %cst_62 = arith.constant dense<0.000000e+00> : vector<8xf32>
    %70 = vector.multi_reduction <add>, %69, %cst_62 [1] : vector<8x896xf32> to vector<8xf32>
    %71 = vector.shape_cast %70 : vector<8xf32> to vector<8x1xf32>
    %cst_63 = arith.constant 0.001953125 : f32
    %72 = vector.broadcast %cst_63 : f32 to vector<8x1xf32>
    %73 = arith.mulf %71, %72 : vector<8x1xf32>
    %74 = arith.mulf %68, %68 : vector<8x1xf32>
    %75 = arith.subf %73, %74 : vector<8x1xf32>
    %cst_64 = arith.constant 0.000000e+00 : f32
    %76 = vector.broadcast %cst_64 : f32 to vector<8x1xf32>
    %77 = arith.maximumf %75, %76 : vector<8x1xf32>
    %78 = vector.broadcast %68 : vector<8x1xf32> to vector<8x896xf32>
    %79 = arith.subf %62, %78 : vector<8x896xf32>
    %cst_65 = arith.constant 9.99999974E-6 : f32
    %80 = vector.broadcast %cst_65 : f32 to vector<8x1xf32>
    %81 = arith.addf %77, %80 : vector<8x1xf32>
    %82 = math.rsqrt %81 : vector<8x1xf32>
    %83 = vector.broadcast %82 : vector<8x1xf32> to vector<8x896xf32>
    %84 = arith.mulf %79, %83 : vector<8x896xf32>
    %cst_66 = arith.constant 0.000000e+00 : f32
    %85 = vector.broadcast %cst_66 : f32 to vector<8x896xf32>
    %86 = arith.maximumf %84, %85 : vector<8x896xf32>
    %87 = vector.broadcast %0 : vector<1x896xf32> to vector<8x896xf32>
    %88 = arith.mulf %86, %87 : vector<8x896xf32>
    %cst_67 = arith.constant 0.000000e+00 : f32
    %89 = vector.broadcast %cst_67 : f32 to vector<8x128xf32>
    %c0_68 = arith.constant 0 : index
    %c0_69 = arith.constant 0 : index
    %90 = vector.load %arg8[%c0_68, %c0_69] : memref<8x1152xf32, #tpu.memory_space<vmem>>, vector<8x128xf32>
    tpu.vector_store %arg8[%c0_68, %c0_69], %89 {strides = array<i32>} : memref<8x1152xf32, #tpu.memory_space<vmem>>, vector<8x128xf32>,
    %cst_70 = arith.constant 0.000000e+00 : f32
    %91 = vector.broadcast %cst_70 : f32 to vector<8x128xf32>
    %c0_71 = arith.constant 0 : index
    %c1024 = arith.constant 1024 : index
    %92 = vector.load %arg8[%c0_71, %c1024] : memref<8x1152xf32, #tpu.memory_space<vmem>>, vector<8x128xf32>
    tpu.vector_store %arg8[%c0_71, %c1024], %91 {strides = array<i32>} : memref<8x1152xf32, #tpu.memory_space<vmem>>, vector<8x128xf32>,
    %c0_72 = arith.constant 0 : index
    %c128 = arith.constant 128 : index
    %93 = vector.load %arg8[%c0_72, %c128] : memref<8x1152xf32, #tpu.memory_space<vmem>>, vector<8x896xf32>
    tpu.vector_store %arg8[%c0_72, %c128], %88 {strides = array<i32>} : memref<8x1152xf32, #tpu.memory_space<vmem>>, vector<8x896xf32>,
    %c0_73 = arith.constant 0 : index
    %c17 = arith.constant 17 : index
    %94 = vector.load %arg8[%c0_73, %c17] : memref<8x1152xf32, #tpu.memory_space<vmem>>, vector<8x896xf32>
    %c0_74 = arith.constant 0 : index
    %c18 = arith.constant 18 : index
    %95 = vector.load %arg8[%c0_74, %c18] : memref<8x1152xf32, #tpu.memory_space<vmem>>, vector<8x896xf32>
    %c0_75 = arith.constant 0 : index
    %c19 = arith.constant 19 : index
    %96 = vector.load %arg8[%c0_75, %c19] : memref<8x1152xf32, #tpu.memory_space<vmem>>, vector<8x896xf32>
    %c0_76 = arith.constant 0 : index
    %c27 = arith.constant 27 : index
    %97 = vector.load %arg8[%c0_76, %c27] : memref<8x1152xf32, #tpu.memory_space<vmem>>, vector<8x896xf32>
    %c0_77 = arith.constant 0 : index
    %c28 = arith.constant 28 : index
    %98 = vector.load %arg8[%c0_77, %c28] : memref<8x1152xf32, #tpu.memory_space<vmem>>, vector<8x896xf32>
    %c0_78 = arith.constant 0 : index
    %c29 = arith.constant 29 : index
    %99 = vector.load %arg8[%c0_78, %c29] : memref<8x1152xf32, #tpu.memory_space<vmem>>, vector<8x896xf32>
    %c0_79 = arith.constant 0 : index
    %c37 = arith.constant 37 : index
    %100 = vector.load %arg8[%c0_79, %c37] : memref<8x1152xf32, #tpu.memory_space<vmem>>, vector<8x896xf32>
    %c0_80 = arith.constant 0 : index
    %c38 = arith.constant 38 : index
    %101 = vector.load %arg8[%c0_80, %c38] : memref<8x1152xf32, #tpu.memory_space<vmem>>, vector<8x896xf32>
    %c0_81 = arith.constant 0 : index
    %c39 = arith.constant 39 : index
    %102 = vector.load %arg8[%c0_81, %c39] : memref<8x1152xf32, #tpu.memory_space<vmem>>, vector<8x896xf32>
    %c0_82 = arith.constant 0 : index
    %c117 = arith.constant 117 : index
    %103 = vector.load %arg8[%c0_82, %c117] : memref<8x1152xf32, #tpu.memory_space<vmem>>, vector<8x896xf32>
    %c0_83 = arith.constant 0 : index
    %c118 = arith.constant 118 : index
    %104 = vector.load %arg8[%c0_83, %c118] : memref<8x1152xf32, #tpu.memory_space<vmem>>, vector<8x896xf32>
    %c0_84 = arith.constant 0 : index
    %c119 = arith.constant 119 : index
    %105 = vector.load %arg8[%c0_84, %c119] : memref<8x1152xf32, #tpu.memory_space<vmem>>, vector<8x896xf32>
    %c0_85 = arith.constant 0 : index
    %c127 = arith.constant 127 : index
    %106 = vector.load %arg8[%c0_85, %c127] : memref<8x1152xf32, #tpu.memory_space<vmem>>, vector<8x896xf32>
    %c0_86 = arith.constant 0 : index
    %c128_87 = arith.constant 128 : index
    %107 = vector.load %arg8[%c0_86, %c128_87] : memref<8x1152xf32, #tpu.memory_space<vmem>>, vector<8x896xf32>
    %c0_88 = arith.constant 0 : index
    %c129 = arith.constant 129 : index
    %108 = vector.load %arg8[%c0_88, %c129] : memref<8x1152xf32, #tpu.memory_space<vmem>>, vector<8x896xf32>
    %c0_89 = arith.constant 0 : index
    %c137 = arith.constant 137 : index
    %109 = vector.load %arg8[%c0_89, %c137] : memref<8x1152xf32, #tpu.memory_space<vmem>>, vector<8x896xf32>
    %c0_90 = arith.constant 0 : index
    %c138 = arith.constant 138 : index
    %110 = vector.load %arg8[%c0_90, %c138] : memref<8x1152xf32, #tpu.memory_space<vmem>>, vector<8x896xf32>
    %c0_91 = arith.constant 0 : index
    %c139 = arith.constant 139 : index
    %111 = vector.load %arg8[%c0_91, %c139] : memref<8x1152xf32, #tpu.memory_space<vmem>>, vector<8x896xf32>
    %c0_92 = arith.constant 0 : index
    %c217 = arith.constant 217 : index
    %112 = vector.load %arg8[%c0_92, %c217] : memref<8x1152xf32, #tpu.memory_space<vmem>>, vector<8x896xf32>
    %c0_93 = arith.constant 0 : index
    %c218 = arith.constant 218 : index
    %113 = vector.load %arg8[%c0_93, %c218] : memref<8x1152xf32, #tpu.memory_space<vmem>>, vector<8x896xf32>
    %c0_94 = arith.constant 0 : index
    %c219 = arith.constant 219 : index
    %114 = vector.load %arg8[%c0_94, %c219] : memref<8x1152xf32, #tpu.memory_space<vmem>>, vector<8x896xf32>
    %c0_95 = arith.constant 0 : index
    %c227 = arith.constant 227 : index
    %115 = vector.load %arg8[%c0_95, %c227] : memref<8x1152xf32, #tpu.memory_space<vmem>>, vector<8x896xf32>
    %c0_96 = arith.constant 0 : index
    %c228 = arith.constant 228 : index
    %116 = vector.load %arg8[%c0_96, %c228] : memref<8x1152xf32, #tpu.memory_space<vmem>>, vector<8x896xf32>
    %c0_97 = arith.constant 0 : index
    %c229 = arith.constant 229 : index
    %117 = vector.load %arg8[%c0_97, %c229] : memref<8x1152xf32, #tpu.memory_space<vmem>>, vector<8x896xf32>
    %c0_98 = arith.constant 0 : index
    %c237 = arith.constant 237 : index
    %118 = vector.load %arg8[%c0_98, %c237] : memref<8x1152xf32, #tpu.memory_space<vmem>>, vector<8x896xf32>
    %c0_99 = arith.constant 0 : index
    %c238 = arith.constant 238 : index
    %119 = vector.load %arg8[%c0_99, %c238] : memref<8x1152xf32, #tpu.memory_space<vmem>>, vector<8x896xf32>
    %c0_100 = arith.constant 0 : index
    %c239 = arith.constant 239 : index
    %120 = vector.load %arg8[%c0_100, %c239] : memref<8x1152xf32, #tpu.memory_space<vmem>>, vector<8x896xf32>
    %121 = tpu.concatenate %94, %95, %96, %97, %98, %99, %100, %101, %102, %103, %104, %105, %106, %107, %108, %109 in 0 : vector<8x896xf32>, vector<8x896xf32>, vector<8x896xf32>, vector<8x896xf32>, vector<8x896xf32>, vector<8x896xf32>, vector<8x896xf32>, vector<8x896xf32>, vector<8x896xf32>, vector<8x896xf32>, vector<8x896xf32>, vector<8x896xf32>, vector<8x896xf32>, vector<8x896xf32>, vector<8x896xf32>, vector<8x896xf32> -> vector<128x896xf32>
    %122 = tpu.concatenate %110, %111, %112, %113, %114, %115, %116, %117, %118, %119, %120 in 0 : vector<8x896xf32>, vector<8x896xf32>, vector<8x896xf32>, vector<8x896xf32>, vector<8x896xf32>, vector<8x896xf32>, vector<8x896xf32>, vector<8x896xf32>, vector<8x896xf32>, vector<8x896xf32>, vector<8x896xf32> -> vector<88x896xf32>
    %123 = tpu.concatenate %121, %122 in 0 : vector<128x896xf32>, vector<88x896xf32> -> vector<216x896xf32>
    %c0_101 = arith.constant 0 : index
    %c0_102 = arith.constant 0 : index
    %124 = vector.load %arg4[%c0_101, %c0_102] : memref<8x216xf32, #tpu.memory_space<vmem>>, vector<8x216xf32>
    %cst_103 = arith.constant dense<0.000000e+00> : vector<8x896xf32>
    %125 = tpu.matmul %124, %123, %cst_103 {dimension_numbers = #tpu.dot_dimension_numbers<[1], [0], [0], [1], [0, 0, 1, 1], [], []>} : vector<8x216xf32>, vector<216x896xf32>, vector<8x896xf32> -> vector<8x896xf32>
    %c0_104 = arith.constant 0 : index
    %c0_105 = arith.constant 0 : index
    %126 = vector.load %arg5[%c0_104, %c0_105] : memref<8x1xf32, #tpu.memory_space<vmem>>, vector<8x1xf32>
    %127 = vector.broadcast %126 : vector<8x1xf32> to vector<8x896xf32>
    %128 = arith.addf %125, %127 : vector<8x896xf32>
    %129 = vector.broadcast %0 : vector<1x896xf32> to vector<8x896xf32>
    %130 = arith.mulf %128, %129 : vector<8x896xf32>
    %cst_106 = arith.constant dense<0.000000e+00> : vector<8xf32>
    %131 = vector.multi_reduction <add>, %130, %cst_106 [1] : vector<8x896xf32> to vector<8xf32>
    %132 = vector.shape_cast %131 : vector<8xf32> to vector<8x1xf32>
    %cst_107 = arith.constant 0.001953125 : f32
    %133 = vector.broadcast %cst_107 : f32 to vector<8x1xf32>
    %134 = arith.mulf %132, %133 : vector<8x1xf32>
    %135 = arith.mulf %130, %130 : vector<8x896xf32>
    %cst_108 = arith.constant dense<0.000000e+00> : vector<8xf32>
    %136 = vector.multi_reduction <add>, %135, %cst_108 [1] : vector<8x896xf32> to vector<8xf32>
    %137 = vector.shape_cast %136 : vector<8xf32> to vector<8x1xf32>
    %cst_109 = arith.constant 0.001953125 : f32
    %138 = vector.broadcast %cst_109 : f32 to vector<8x1xf32>
    %139 = arith.mulf %137, %138 : vector<8x1xf32>
    %140 = arith.mulf %134, %134 : vector<8x1xf32>
    %141 = arith.subf %139, %140 : vector<8x1xf32>
    %cst_110 = arith.constant 0.000000e+00 : f32
    %142 = vector.broadcast %cst_110 : f32 to vector<8x1xf32>
    %143 = arith.maximumf %141, %142 : vector<8x1xf32>
    %144 = vector.broadcast %134 : vector<8x1xf32> to vector<8x896xf32>
    %145 = arith.subf %128, %144 : vector<8x896xf32>
    %cst_111 = arith.constant 9.99999974E-6 : f32
    %146 = vector.broadcast %cst_111 : f32 to vector<8x1xf32>
    %147 = arith.addf %143, %146 : vector<8x1xf32>
    %148 = math.rsqrt %147 : vector<8x1xf32>
    %149 = vector.broadcast %148 : vector<8x1xf32> to vector<8x896xf32>
    %150 = arith.mulf %145, %149 : vector<8x896xf32>
    %cst_112 = arith.constant 0.000000e+00 : f32
    %151 = vector.broadcast %cst_112 : f32 to vector<8x896xf32>
    %152 = arith.maximumf %150, %151 : vector<8x896xf32>
    %153 = vector.broadcast %0 : vector<1x896xf32> to vector<8x896xf32>
    %154 = arith.mulf %152, %153 : vector<8x896xf32>
    %c0_113 = arith.constant 0 : index
    %c0_114 = arith.constant 0 : index
    %c0_115 = arith.constant 0 : index
    %155 = vector.load %arg7[%c0_113, %c0_114, %c0_115] : memref<1x8x896xf32, #tpu.memory_space<vmem>>, vector<1x8x896xf32>
    %156 = vector.shape_cast %155 : vector<1x8x896xf32> to vector<8x896xf32>
    %157 = vector.shape_cast %154 : vector<8x896xf32> to vector<1x8x896xf32>
    tpu.vector_store %arg7[%c0_113, %c0_114, %c0_115], %157 {strides = array<i32>} : memref<1x8x896xf32, #tpu.memory_space<vmem>>, vector<1x8x896xf32>,
    return
  }
  func.func @transform_0(%arg0: i32) -> (i32, i32, i32) {
    %c0_i32 = arith.constant 0 : i32
    %c0_i32_0 = arith.constant 0 : i32
    %c0_i32_1 = arith.constant 0 : i32
    return %arg0, %c0_i32, %c0_i32_0 : i32, i32, i32
  }
  func.func @transform_1(%arg0: i32) -> (i32, i32) {
    %c0_i32 = arith.constant 0 : i32
    %c0_i32_0 = arith.constant 0 : i32
    %c0_i32_1 = arith.constant 0 : i32
    return %c0_i32, %c0_i32_0 : i32, i32
  }
  func.func @transform_2(%arg0: i32) -> (i32, i32) {
    %c0_i32 = arith.constant 0 : i32
    %c0_i32_0 = arith.constant 0 : i32
    %c0_i32_1 = arith.constant 0 : i32
    return %c0_i32, %c0_i32_0 : i32, i32
  }
  func.func @transform_3(%arg0: i32) -> (i32, i32) {
    %c0_i32 = arith.constant 0 : i32
    %c0_i32_0 = arith.constant 0 : i32
    %c0_i32_1 = arith.constant 0 : i32
    return %c0_i32, %c0_i32_0 : i32, i32
  }
  func.func @transform_4(%arg0: i32) -> (i32, i32) {
    %c0_i32 = arith.constant 0 : i32
    %c0_i32_0 = arith.constant 0 : i32
    %c0_i32_1 = arith.constant 0 : i32
    return %c0_i32, %c0_i32_0 : i32, i32
  }
  func.func @transform_5(%arg0: i32) -> (i32, i32) {
    %c0_i32 = arith.constant 0 : i32
    %c0_i32_0 = arith.constant 0 : i32
    %c0_i32_1 = arith.constant 0 : i32
    return %c0_i32, %c0_i32_0 : i32, i32
  }
  func.func @transform_6(%arg0: i32) -> (i32, i32, i32) {
    %c0_i32 = arith.constant 0 : i32
    %c0_i32_0 = arith.constant 0 : i32
    %c0_i32_1 = arith.constant 0 : i32
    return %arg0, %c0_i32, %c0_i32_0 : i32, i32, i32
  }
}

</mosaic_0001>

<llo_original>
// kernel: tpu_custom_call.1
$region0: #{tpu_custom_call.1}
  #allocation0 [shape = 'u32[]', space=smem, size = 0x4, offset = 0x4, fixed_abs, tag = 'smem constant byte address 0x4 - core index']
  #allocation1 [shape = 'u32[144,128]{1,0:T(1,128)}', space=vmem, size = 0x12000, scoped, tag = 'internal scratch']
  #allocation2 [shape = 'f32[8,1152]{1,0:T(8,128)}', space=vmem, size = 0x9000, scoped, tag = 'scratch operand']
  %s0 = inlined_call_operand.hbm [shape: f32[2,8,1152], index: 0, kind: input, shape index: {}]
  %s1 = inlined_call_operand.vmem [shape: f32[8,216], index: 1, kind: input, shape index: {}]
  %s2 = inlined_call_operand.vmem [shape: f32[8,1], index: 2, kind: input, shape index: {}]
  %s3 = inlined_call_operand.hbm [shape: f32[8,216], index: 3, kind: input, shape index: {}]
  %s4 = inlined_call_operand.vmem [shape: f32[8,1], index: 4, kind: input, shape index: {}]
  %s5 = inlined_call_operand.vmem [shape: f32[1,896], index: 5, kind: input, shape index: {}]
  %s6 = inlined_call_operand.hbm [shape: f32[2,8,896], index: 6, kind: output, shape index: {}]
  %s7 = sld [smem:[#allocation0]]
  $region65: #{tpu_custom_call.1} parent=0
    _
  %s9 = ssub.s32 1, %s7
  %s10 = scalar_select 0, %s9, %s7
  $region1: #{tpu_custom_call.1} parent=0
    #allocation3 [shape = 'u8[73728]{0}', space=vmem, size = 0x12000, scoped, tag = 'input window, operand 0']
    #allocation4 [shape = 's32[2]{0}', space=sflag, size = 0x8, scoped, tag = 'scoped memory for tpu_custom_call.1']
    #allocation5 [shape = 's32[2]{0}', space=sflag, size = 0x8, scoped, tag = 'scoped memory for tpu_custom_call.1']
    #allocation6 [shape = 'u8[8192]{0}', space=vmem, size = 0x2000, scoped, tag = 'input window, operand 3, single buffered']
    #allocation7 [shape = 's32[1]{0}', space=sflag, size = 0x4, scoped, tag = 'scoped memory for tpu_custom_call.1']
    #allocation8 [shape = 'u8[57344]{0}', space=vmem, size = 0xe000, scoped, tag = 'output window, operand 0']
    %11 = vsyncpa [#allocation4], 0
    %s12 = scalar_lea.sflag [#allocation4], 1
    %13 = vsyncpa %s12, 0
    %14 = vsyncpa [#allocation7], 0
    %15 = vsyncpa [#allocation5], 0
    %s16 = scalar_lea.sflag [#allocation5], 1
    %17 = vsyncpa %s16, 0
    loop: start=0, step=1, limit=4
    $region2: #{tpu_custom_call.1} parent=1 // loop_pre_header
      _
    $region3: #{tpu_custom_call.1} parent=1 // loop_header
      %s19 = sphi 0, %s23
      %p20 = scmp.ge.s32.totalorder %s19, 4
      %s29 = sphi 0, %s31
      %s32 = sphi 0, %s29
      %s33 = sphi 0, %s32
      %s49 = sphi 0, %s33
      %s53 = sphi 0, %s53
      %s55 = sphi 0, %s53
      %s56 = sphi 0, %s55
      %s70 = sphi 0, %s56
      %s74 = sphi 0, %s74
      %s76 = sphi 0, %s74
      %s77 = sphi 0, %s76
      %s91 = sphi 0, %s77
      %s95 = sphi 0, %s95
      %s97 = sphi 0, %s95
      %s98 = sphi 0, %s97
      %s112 = sphi 0, %s98
      %s116 = sphi 0, %s116
      %s118 = sphi 0, %s116
      %s119 = sphi 0, %s118
      %s133 = sphi 0, %s119
      %s137 = sphi 0, %s137
      %s139 = sphi 0, %s137
      %s140 = sphi 0, %s139
      %s154 = sphi 0, %s140
      %s160 = sphi 0, %s162
      %s163 = sphi 0, %s160
      %s164 = sphi 0, %s163
      %s180 = sphi 0, %s164
    $region4: #{tpu_custom_call.1} parent=1 // loop_header_branch
      %22 = sbr.rel (%p20) target = $region8
    $region5: #{tpu_custom_call.1} parent=1 // loop_body
      %s24 = ssub.s32 %s19, 1
      %s25 = ssub.s32 %s19, 2
      %s26 = sadd.s32 %s19, 1
      %s27 = ssub.s32 %s19, %s26
      %p28 = scmp.eq.s32.totalorder %s27, 0
      %s30 = sadd.s32 %s29, 1
      %s31 = scalar_select %p28, %s29, %s30
      %p34 = pneg %p28
      %p35 = scmp.eq.s32.totalorder %s19, 1
      %p36 = por %p34, %p35
      %p37 = scmp.ne.s32.totalorder %s29, %s32
      %p38 = scmp.eq.s32.totalorder %s19, 0
      %p39 = por %p37, %p38
      %p40 = scmp.ne.s32.totalorder %s29, %s32
      %p41 = scmp.eq.s32.totalorder %s24, 1
      %p42 = por %p40, %p41
      %p43 = scmp.ne.s32.totalorder %s32, %s33
      %p44 = scmp.eq.s32.totalorder %s24, 0
      %p45 = por %p43, %p44
      %p46 = scmp.ne.s32.totalorder %s32, %s33
      %p47 = scmp.eq.s32.totalorder %s25, 1
      %p48 = por %p46, %p47
      %p50 = scmp.ne.s32.totalorder %s33, %s49
      %p51 = scmp.eq.s32.totalorder %s25, 0
      %p52 = por %p50, %p51
      %s54 = sadd.s32 %s53, 1
      %p57 = scmp.eq.s32.totalorder %s19, 1
      %p58 = scmp.ne.s32.totalorder %s53, %s55
      %p59 = scmp.eq.s32.totalorder %s19, 0
      %p60 = por %p58, %p59
      %p61 = scmp.ne.s32.totalorder %s53, %s55
      %p62 = scmp.eq.s32.totalorder %s24, 1
      %p63 = por %p61, %p62
      %p64 = scmp.ne.s32.totalorder %s55, %s56
      %p65 = scmp.eq.s32.totalorder %s24, 0
      %p66 = por %p64, %p65
      %p67 = scmp.ne.s32.totalorder %s55, %s56
      %p68 = scmp.eq.s32.totalorder %s25, 1
      %p69 = por %p67, %p68
      %p71 = scmp.ne.s32.totalorder %s56, %s70
      %p72 = scmp.eq.s32.totalorder %s25, 0
      %p73 = por %p71, %p72
      %s75 = sadd.s32 %s74, 1
      %p78 = scmp.eq.s32.totalorder %s19, 1
      %p79 = scmp.ne.s32.totalorder %s74, %s76
      %p80 = scmp.eq.s32.totalorder %s19, 0
      %p81 = por %p79, %p80
      %p82 = scmp.ne.s32.totalorder %s74, %s76
      %p83 = scmp.eq.s32.totalorder %s24, 1
      %p84 = por %p82, %p83
      %p85 = scmp.ne.s32.totalorder %s76, %s77
      %p86 = scmp.eq.s32.totalorder %s24, 0
      %p87 = por %p85, %p86
      %p88 = scmp.ne.s32.totalorder %s76, %s77
      %p89 = scmp.eq.s32.totalorder %s25, 1
      %p90 = por %p88, %p89
      %p92 = scmp.ne.s32.totalorder %s77, %s91
      %p93 = scmp.eq.s32.totalorder %s25, 0
      %p94 = por %p92, %p93
      %s96 = sadd.s32 %s95, 1
      %p99 = scmp.eq.s32.totalorder %s19, 1
      %p100 = scmp.ne.s32.totalorder %s95, %s97
      %p101 = scmp.eq.s32.totalorder %s19, 0
      %p102 = por %p100, %p101
      %p103 = scmp.ne.s32.totalorder %s95, %s97
      %p104 = scmp.eq.s32.totalorder %s24, 1
      %p105 = por %p103, %p104
      %p106 = scmp.ne.s32.totalorder %s97, %s98
      %p107 = scmp.eq.s32.totalorder %s24, 0
      %p108 = por %p106, %p107
      %p109 = scmp.ne.s32.totalorder %s97, %s98
      %p110 = scmp.eq.s32.totalorder %s25, 1
      %p111 = por %p109, %p110
      %p113 = scmp.ne.s32.totalorder %s98, %s112
      %p114 = scmp.eq.s32.totalorder %s25, 0
      %p115 = por %p113, %p114
      %s117 = sadd.s32 %s116, 1
      %p120 = scmp.eq.s32.totalorder %s19, 1
      %p121 = scmp.ne.s32.totalorder %s116, %s118
      %p122 = scmp.eq.s32.totalorder %s19, 0
      %p123 = por %p121, %p122
      %p124 = scmp.ne.s32.totalorder %s116, %s118
      %p125 = scmp.eq.s32.totalorder %s24, 1
      %p126 = por %p124, %p125
      %p127 = scmp.ne.s32.totalorder %s118, %s119
      %p128 = scmp.eq.s32.totalorder %s24, 0
      %p129 = por %p127, %p128
      %p130 = scmp.ne.s32.totalorder %s118, %s119
      %p131 = scmp.eq.s32.totalorder %s25, 1
      %p132 = por %p130, %p131
      %p134 = scmp.ne.s32.totalorder %s119, %s133
      %p135 = scmp.eq.s32.totalorder %s25, 0
      %p136 = por %p134, %p135
      %s138 = sadd.s32 %s137, 1
      %p141 = scmp.eq.s32.totalorder %s19, 1
      %p142 = scmp.ne.s32.totalorder %s137, %s139
      %p143 = scmp.eq.s32.totalorder %s19, 0
      %p144 = por %p142, %p143
      %p145 = scmp.ne.s32.totalorder %s137, %s139
      %p146 = scmp.eq.s32.totalorder %s24, 1
      %p147 = por %p145, %p146
      %p148 = scmp.ne.s32.totalorder %s139, %s140
      %p149 = scmp.eq.s32.totalorder %s24, 0
      %p150 = por %p148, %p149
      %p151 = scmp.ne.s32.totalorder %s139, %s140
      %p152 = scmp.eq.s32.totalorder %s25, 1
      %p153 = por %p151, %p152
      %p155 = scmp.ne.s32.totalorder %s140, %s154
      %p156 = scmp.eq.s32.totalorder %s25, 0
      %p157 = por %p155, %p156
      %s158 = ssub.s32 %s19, %s26
      %p159 = scmp.eq.s32.totalorder %s158, 0
      %s161 = sadd.s32 %s160, 1
      %s162 = scalar_select %p159, %s160, %s161
      %p165 = pneg %p159
      %p166 = scmp.eq.s32.totalorder %s19, 1
      %p167 = por %p165, %p166
      %p168 = scmp.ne.s32.totalorder %s160, %s163
      %p169 = scmp.eq.s32.totalorder %s19, 0
      %p170 = por %p168, %p169
      %p171 = scmp.ne.s32.totalorder %s160, %s163
      %p172 = scmp.eq.s32.totalorder %s24, 1
      %p173 = por %p171, %p172
      %p174 = scmp.ne.s32.totalorder %s163, %s164
      %p175 = scmp.eq.s32.totalorder %s24, 0
      %p176 = por %p174, %p175
      %p177 = scmp.ne.s32.totalorder %s163, %s164
      %p178 = scmp.eq.s32.totalorder %s25, 1
      %p179 = por %p177, %p178
      %p181 = scmp.ne.s32.totalorder %s164, %s180
      %p182 = scmp.eq.s32.totalorder %s25, 0
      %p183 = por %p181, %p182
      %p184 = scmp.le.s32.totalorder 1, %s19
      %p185 = scmp.lt.s32.totalorder %s19, 3
      %p186 = pnand %p184, %p185
      %p187 = pneg %p186
      // Predicated region
      $region9: #{tpu_custom_call.1} parent=5 // pred_check
        _
      $region10: #{tpu_custom_call.1} parent=5 // pred_check_branch
        %189 = sbr.rel (%p186) target = $region12
      $region11: #{tpu_custom_call.1} parent=5 // pred_region
        %s190 = ssub.s32 %s19, 1
        // Predicated region
        $region13: #{tpu_custom_call.1} parent=11 // pred_check
          %p191 = pneg %p66
        $region14: #{tpu_custom_call.1} parent=11 // pred_check_branch
          %193 = sbr.rel (%p191) target = $region16
        $region15: #{tpu_custom_call.1} parent=11 // pred_region
          _
        $region16: #{tpu_custom_call.1} parent=11 // pred_fallthru
          _
        // Predicated region
        $region17: #{tpu_custom_call.1} parent=11 // pred_check
          %p194 = pneg %p87
        $region18: #{tpu_custom_call.1} parent=11 // pred_check_branch
          %196 = sbr.rel (%p194) target = $region20
        $region19: #{tpu_custom_call.1} parent=11 // pred_region
          _
        $region20: #{tpu_custom_call.1} parent=11 // pred_fallthru
          _
        // Predicated region
        $region21: #{tpu_custom_call.1} parent=11 // pred_check
          %p197 = pneg %p108
        $region22: #{tpu_custom_call.1} parent=11 // pred_check_branch
          %199 = sbr.rel (%p197) target = $region24
        $region23: #{tpu_custom_call.1} parent=11 // pred_region
          %s201 = ssub.s32 256, 256
          %202 = vsyncadd [#allocation7], %s201
          %s204 = sshll.u32 [#allocation6], 4
          %s205 = int_to_ptr.vmem [resolvable:$true] %s204
          %207 = dma.hbm_to_vmem [thread:$0]  %s3, 256, %s205, [#allocation7]
        $region24: #{tpu_custom_call.1} parent=11 // pred_fallthru
          _
        // Predicated region
        $region25: #{tpu_custom_call.1} parent=11 // pred_check
          %p208 = pneg %p129
        $region26: #{tpu_custom_call.1} parent=11 // pred_check_branch
          %210 = sbr.rel (%p208) target = $region28
        $region27: #{tpu_custom_call.1} parent=11 // pred_region
          _
        $region28: #{tpu_custom_call.1} parent=11 // pred_fallthru
          _
        // Predicated region
        $region29: #{tpu_custom_call.1} parent=11 // pred_check
          %p211 = pneg %p150
        $region30: #{tpu_custom_call.1} parent=11 // pred_check_branch
          %213 = sbr.rel (%p211) target = $region32
        $region31: #{tpu_custom_call.1} parent=11 // pred_region
          _
        $region32: #{tpu_custom_call.1} parent=11 // pred_fallthru
          _
      $region12: #{tpu_custom_call.1} parent=5 // pred_fallthru
        _
      %p214 = scmp.lt.s32.totalorder %s19, 2
      // Predicated region
      $region33: #{tpu_custom_call.1} parent=5 // pred_check
        %p215 = pneg %p214
      $region34: #{tpu_custom_call.1} parent=5 // pred_check_branch
        %217 = sbr.rel (%p215) target = $region36
      $region35: #{tpu_custom_call.1} parent=5 // pred_region
        // Predicated region
        $region37: #{tpu_custom_call.1} parent=35 // pred_check
          %p218 = pneg %p39
        $region38: #{tpu_custom_call.1} parent=35 // pred_check_branch
          %220 = sbr.rel (%p218) target = $region40
        $region39: #{tpu_custom_call.1} parent=35 // pred_region
          %s221 = sand.u32 %s29, 1
          %s222 = scalar_lea.sflag [#allocation4], %s221
          %s223 = sand.u32 %s29, 1
          %s224 = smul.addr %s223, 72
          %s225 = scalar_lea.vmem [#allocation3], %s224
          %s227 = ssub.s32 1152, 1152
          %228 = vsyncadd %s222, %s227
          %s229 = smul.addr %s19, 9
          %s230 = smul.addr %s229, 128
          %s231 = scalar_lea.hbm %s0, %s230
          %s233 = sshll.u32 %s225, 4
          %s234 = int_to_ptr.vmem [resolvable:$true] %s233
          %236 = dma.hbm_to_vmem [thread:$0]  %s231, 1152, %s234, %s222
        $region40: #{tpu_custom_call.1} parent=35 // pred_fallthru
          _
      $region36: #{tpu_custom_call.1} parent=5 // pred_fallthru
        _
      %p237 = scmp.le.s32.totalorder 1, %s19
      %p238 = scmp.lt.s32.totalorder %s19, 3
      %p239 = pnand %p237, %p238
      %p240 = pneg %p239
      // Predicated region
      $region41: #{tpu_custom_call.1} parent=5 // pred_check
        _
      $region42: #{tpu_custom_call.1} parent=5 // pred_check_branch
        %242 = sbr.rel (%p239) target = $region44
      $region43: #{tpu_custom_call.1} parent=5 // pred_region
        %s243 = ssub.s32 %s19, 1
        %s244 = sand.u32 %s32, 1
        %s245 = scalar_lea.sflag [#allocation4], %s244
        %s246 = sand.u32 %s32, 1
        %s247 = smul.addr %s246, 72
        %s248 = scalar_lea.vmem [#allocation3], %s247
        // Predicated region
        $region45: #{tpu_custom_call.1} parent=43 // pred_check
          %p249 = pneg %p45
        $region46: #{tpu_custom_call.1} parent=43 // pred_check_branch
          %251 = sbr.rel (%p249) target = $region48
        $region47: #{tpu_custom_call.1} parent=43 // pred_region
          %252 = dma.done %s245, 1152
        $region48: #{tpu_custom_call.1} parent=43 // pred_fallthru
          _
        // Predicated region
        $region49: #{tpu_custom_call.1} parent=43 // pred_check
          %p253 = pneg %p108
        $region50: #{tpu_custom_call.1} parent=43 // pred_check_branch
          %255 = sbr.rel (%p253) target = $region52
        $region51: #{tpu_custom_call.1} parent=43 // pred_region
          %256 = dma.done [#allocation7], 256
        $region52: #{tpu_custom_call.1} parent=43 // pred_fallthru
          _
        %s257 = sand.u32 %s32, 1
        %s258 = scalar_lea.sflag [#allocation4], %s257
        %s259 = sand.u32 %s32, 1
        %s260 = smul.addr %s259, 72
        %s261 = scalar_lea.vmem [#allocation3], %s260
        %p262 = pneg %p45
        %p263 = pneg %p42
        %p264 = pneg %p66
        %p265 = pneg %p63
        %p266 = pneg %p87
        %p267 = pneg %p84
        %p268 = pneg %p108
        %p269 = pneg %p105
        %p270 = pneg %p129
        %p271 = pneg %p126
        %p272 = pneg %p150
        %p273 = pneg %p147
        %p274 = pneg %p176
        %p275 = pneg %p173
        %s276 = sand.u32 %s163, 1
        %s277 = scalar_lea.sflag [#allocation5], %s276
        %s278 = sand.u32 %s163, 1
        %s279 = smul.addr %s278, 56
        %s280 = scalar_lea.vmem [#allocation8], %s279
        %v281 = vld [vmem:[%s5] sm:$0xff]
        %v282 = vld [vmem:[%s248] sm:$0xff]
        %v283 = vld [vmem:[%s248 + $0x8] sm:$0xff]
        %v284 = vld [vmem:[%s248 + $0x10] sm:$0xff]
        %v285 = vld [vmem:[%s248 + $0x18] sm:$0xff]
        %v286 = vld [vmem:[%s248 + $0x20] sm:$0xff]
        %v287 = vld [vmem:[%s248 + $0x28] sm:$0xff]
        %v288 = vld [vmem:[%s248 + $0x30] sm:$0xff]
        %v289 = vld [vmem:[%s248 + $0x38] sm:$0xff]
        %v290 = vld [vmem:[%s248 + $0x8] sm:$0xff]
        %v291 = vld [vmem:[%s248 + $0x10] sm:$0xff]
        %v292 = vld [vmem:[%s248 + $0x18] sm:$0xff]
        %v293 = vld [vmem:[%s248 + $0x20] sm:$0xff]
        %v294 = vld [vmem:[%s248 + $0x28] sm:$0xff]
        %v295 = vld [vmem:[%s248 + $0x30] sm:$0xff]
        %v296 = vld [vmem:[%s248 + $0x38] sm:$0xff]
        %v297 = vld [vmem:[%s248 + $0x40] sm:$0xff]
        %306 = vrot.lane.b32.xlu0 %v282, 127
        %v307 = vpop.permute.xlu0 %306
        %308 = vrot.lane.b32.xlu0 %v283, 127
        %v309 = vpop.permute.xlu0 %308
        %310 = vrot.lane.b32.xlu0 %v284, 127
        %v311 = vpop.permute.xlu0 %310
        %312 = vrot.lane.b32.xlu0 %v285, 127
        %v313 = vpop.permute.xlu0 %312
        %314 = vrot.lane.b32.xlu0 %v286, 127
        %v315 = vpop.permute.xlu0 %314
        %316 = vrot.lane.b32.xlu0 %v287, 127
        %v317 = vpop.permute.xlu0 %316
        %318 = vrot.lane.b32.xlu0 %v288, 127
        %v319 = vpop.permute.xlu0 %318
        %320 = vrot.lane.b32.xlu0 %v289, 127
        %v321 = vpop.permute.xlu0 %320
        %vm322 = vcmask 1039360
        %v323 = vsel %vm322, %v307, %v309
        %v324 = vsel %vm322, %v309, %v311
        %v325 = vsel %vm322, %v311, %v313
        %v326 = vsel %vm322, %v313, %v315
        %v327 = vsel %vm322, %v315, %v317
        %v328 = vsel %vm322, %v317, %v319
        %v329 = vsel %vm322, %v319, %v321
        %337 = vrot.lane.b32.xlu0 %v282, 126
        %v338 = vpop.permute.xlu0 %337
        %339 = vrot.lane.b32.xlu0 %v283, 126
        %v340 = vpop.permute.xlu0 %339
        %341 = vrot.lane.b32.xlu0 %v284, 126
        %v342 = vpop.permute.xlu0 %341
        %343 = vrot.lane.b32.xlu0 %v285, 126
        %v344 = vpop.permute.xlu0 %343
        %345 = vrot.lane.b32.xlu0 %v286, 126
        %v346 = vpop.permute.xlu0 %345
        %347 = vrot.lane.b32.xlu0 %v287, 126
        %v348 = vpop.permute.xlu0 %347
        %349 = vrot.lane.b32.xlu0 %v288, 126
        %v350 = vpop.permute.xlu0 %349
        %351 = vrot.lane.b32.xlu0 %v289, 126
        %v352 = vpop.permute.xlu0 %351
        %vm353 = vcmask 1031168
        %v354 = vsel %vm353, %v338, %v340
        %v355 = vsel %vm353, %v340, %v342
        %v356 = vsel %vm353, %v342, %v344
        %v357 = vsel %vm353, %v344, %v346
        %v358 = vsel %vm353, %v346, %v348
        %v359 = vsel %vm353, %v348, %v350
        %v360 = vsel %vm353, %v350, %v352
        %368 = vrot.lane.b32.xlu0 %v282, 118
        %v369 = vpop.permute.xlu0 %368
        %370 = vrot.lane.b32.xlu0 %v283, 118
        %v371 = vpop.permute.xlu0 %370
        %372 = vrot.lane.b32.xlu0 %v284, 118
        %v373 = vpop.permute.xlu0 %372
        %374 = vrot.lane.b32.xlu0 %v285, 118
        %v375 = vpop.permute.xlu0 %374
        %376 = vrot.lane.b32.xlu0 %v286, 118
        %v377 = vpop.permute.xlu0 %376
        %378 = vrot.lane.b32.xlu0 %v287, 118
        %v379 = vpop.permute.xlu0 %378
        %380 = vrot.lane.b32.xlu0 %v288, 118
        %v381 = vpop.permute.xlu0 %380
        %382 = vrot.lane.b32.xlu0 %v289, 118
        %v383 = vpop.permute.xlu0 %382
        %vm384 = vcmask 965632
        %v385 = vsel %vm384, %v369, %v371
        %v386 = vsel %vm384, %v371, %v373
        %v387 = vsel %vm384, %v373, %v375
        %v388 = vsel %vm384, %v375, %v377
        %v389 = vsel %vm384, %v377, %v379
        %v390 = vsel %vm384, %v379, %v381
        %v391 = vsel %vm384, %v381, %v383
        %399 = vrot.lane.b32.xlu0 %v282, 117
        %v400 = vpop.permute.xlu0 %399
        %401 = vrot.lane.b32.xlu0 %v283, 117
        %v402 = vpop.permute.xlu0 %401
        %403 = vrot.lane.b32.xlu0 %v284, 117
        %v404 = vpop.permute.xlu0 %403
        %405 = vrot.lane.b32.xlu0 %v285, 117
        %v406 = vpop.permute.xlu0 %405
        %407 = vrot.lane.b32.xlu0 %v286, 117
        %v408 = vpop.permute.xlu0 %407
        %409 = vrot.lane.b32.xlu0 %v287, 117
        %v410 = vpop.permute.xlu0 %409
        %411 = vrot.lane.b32.xlu0 %v288, 117
        %v412 = vpop.permute.xlu0 %411
        %413 = vrot.lane.b32.xlu0 %v289, 117
        %v414 = vpop.permute.xlu0 %413
        %vm415 = vcmask 957440
        %v416 = vsel %vm415, %v400, %v402
        %v417 = vsel %vm415, %v402, %v404
        %v418 = vsel %vm415, %v404, %v406
        %v419 = vsel %vm415, %v406, %v408
        %v420 = vsel %vm415, %v408, %v410
        %v421 = vsel %vm415, %v410, %v412
        %v422 = vsel %vm415, %v412, %v414
        %430 = vrot.lane.b32.xlu0 %v282, 116
        %v431 = vpop.permute.xlu0 %430
        %432 = vrot.lane.b32.xlu0 %v283, 116
        %v433 = vpop.permute.xlu0 %432
        %434 = vrot.lane.b32.xlu0 %v284, 116
        %v435 = vpop.permute.xlu0 %434
        %436 = vrot.lane.b32.xlu0 %v285, 116
        %v437 = vpop.permute.xlu0 %436
        %438 = vrot.lane.b32.xlu0 %v286, 116
        %v439 = vpop.permute.xlu0 %438
        %440 = vrot.lane.b32.xlu0 %v287, 116
        %v441 = vpop.permute.xlu0 %440
        %442 = vrot.lane.b32.xlu0 %v288, 116
        %v443 = vpop.permute.xlu0 %442
        %444 = vrot.lane.b32.xlu0 %v289, 116
        %v445 = vpop.permute.xlu0 %444
        %vm446 = vcmask 949248
        %v447 = vsel %vm446, %v431, %v433
        %v448 = vsel %vm446, %v433, %v435
        %v449 = vsel %vm446, %v435, %v437
        %v450 = vsel %vm446, %v437, %v439
        %v451 = vsel %vm446, %v439, %v441
        %v452 = vsel %vm446, %v441, %v443
        %v453 = vsel %vm446, %v443, %v445
        %461 = vrot.lane.b32.xlu0 %v282, 108
        %v462 = vpop.permute.xlu0 %461
        %463 = vrot.lane.b32.xlu0 %v283, 108
        %v464 = vpop.permute.xlu0 %463
        %465 = vrot.lane.b32.xlu0 %v284, 108
        %v466 = vpop.permute.xlu0 %465
        %467 = vrot.lane.b32.xlu0 %v285, 108
        %v468 = vpop.permute.xlu0 %467
        %469 = vrot.lane.b32.xlu0 %v286, 108
        %v470 = vpop.permute.xlu0 %469
        %471 = vrot.lane.b32.xlu0 %v287, 108
        %v472 = vpop.permute.xlu0 %471
        %473 = vrot.lane.b32.xlu0 %v288, 108
        %v474 = vpop.permute.xlu0 %473
        %475 = vrot.lane.b32.xlu0 %v289, 108
        %v476 = vpop.permute.xlu0 %475
        %vm477 = vcmask 883712
        %v478 = vsel %vm477, %v462, %v464
        %v479 = vsel %vm477, %v464, %v466
        %v480 = vsel %vm477, %v466, %v468
        %v481 = vsel %vm477, %v468, %v470
        %v482 = vsel %vm477, %v470, %v472
        %v483 = vsel %vm477, %v472, %v474
        %v484 = vsel %vm477, %v474, %v476
        %492 = vrot.lane.b32.xlu0 %v282, 107
        %v493 = vpop.permute.xlu0 %492
        %494 = vrot.lane.b32.xlu0 %v283, 107
        %v495 = vpop.permute.xlu0 %494
        %496 = vrot.lane.b32.xlu0 %v284, 107
        %v497 = vpop.permute.xlu0 %496
        %498 = vrot.lane.b32.xlu0 %v285, 107
        %v499 = vpop.permute.xlu0 %498
        %500 = vrot.lane.b32.xlu0 %v286, 107
        %v501 = vpop.permute.xlu0 %500
        %502 = vrot.lane.b32.xlu0 %v287, 107
        %v503 = vpop.permute.xlu0 %502
        %504 = vrot.lane.b32.xlu0 %v288, 107
        %v505 = vpop.permute.xlu0 %504
        %506 = vrot.lane.b32.xlu0 %v289, 107
        %v507 = vpop.permute.xlu0 %506
        %vm508 = vcmask 875520
        %v509 = vsel %vm508, %v493, %v495
        %v510 = vsel %vm508, %v495, %v497
        %v511 = vsel %vm508, %v497, %v499
        %v512 = vsel %vm508, %v499, %v501
        %v513 = vsel %vm508, %v501, %v503
        %v514 = vsel %vm508, %v503, %v505
        %v515 = vsel %vm508, %v505, %v507
        %523 = vrot.lane.b32.xlu0 %v282, 106
        %v524 = vpop.permute.xlu0 %523
        %525 = vrot.lane.b32.xlu0 %v283, 106
        %v526 = vpop.permute.xlu0 %525
        %527 = vrot.lane.b32.xlu0 %v284, 106
        %v528 = vpop.permute.xlu0 %527
        %529 = vrot.lane.b32.xlu0 %v285, 106
        %v530 = vpop.permute.xlu0 %529
        %531 = vrot.lane.b32.xlu0 %v286, 106
        %v532 = vpop.permute.xlu0 %531
        %533 = vrot.lane.b32.xlu0 %v287, 106
        %v534 = vpop.permute.xlu0 %533
        %535 = vrot.lane.b32.xlu0 %v288, 106
        %v536 = vpop.permute.xlu0 %535
        %537 = vrot.lane.b32.xlu0 %v289, 106
        %v538 = vpop.permute.xlu0 %537
        %vm539 = vcmask 867328
        %v540 = vsel %vm539, %v524, %v526
        %v541 = vsel %vm539, %v526, %v528
        %v542 = vsel %vm539, %v528, %v530
        %v543 = vsel %vm539, %v530, %v532
        %v544 = vsel %vm539, %v532, %v534
        %v545 = vsel %vm539, %v534, %v536
        %v546 = vsel %vm539, %v536, %v538
        %554 = vrot.lane.b32.xlu0 %v282, 28
        %v555 = vpop.permute.xlu0 %554
        %556 = vrot.lane.b32.xlu0 %v283, 28
        %v557 = vpop.permute.xlu0 %556
        %558 = vrot.lane.b32.xlu0 %v284, 28
        %v559 = vpop.permute.xlu0 %558
        %560 = vrot.lane.b32.xlu0 %v285, 28
        %v561 = vpop.permute.xlu0 %560
        %562 = vrot.lane.b32.xlu0 %v286, 28
        %v563 = vpop.permute.xlu0 %562
        %564 = vrot.lane.b32.xlu0 %v287, 28
        %v565 = vpop.permute.xlu0 %564
        %566 = vrot.lane.b32.xlu0 %v288, 28
        %v567 = vpop.permute.xlu0 %566
        %568 = vrot.lane.b32.xlu0 %v289, 28
        %v569 = vpop.permute.xlu0 %568
        %vm570 = vcmask 228352
        %v571 = vsel %vm570, %v555, %v557
        %v572 = vsel %vm570, %v557, %v559
        %v573 = vsel %vm570, %v559, %v561
        %v574 = vsel %vm570, %v561, %v563
        %v575 = vsel %vm570, %v563, %v565
        %v576 = vsel %vm570, %v565, %v567
        %v577 = vsel %vm570, %v567, %v569
        %585 = vrot.lane.b32.xlu0 %v282, 27
        %v586 = vpop.permute.xlu0 %585
        %587 = vrot.lane.b32.xlu0 %v283, 27
        %v588 = vpop.permute.xlu0 %587
        %589 = vrot.lane.b32.xlu0 %v284, 27
        %v590 = vpop.permute.xlu0 %589
        %591 = vrot.lane.b32.xlu0 %v285, 27
        %v592 = vpop.permute.xlu0 %591
        %593 = vrot.lane.b32.xlu0 %v286, 27
        %v594 = vpop.permute.xlu0 %593
        %595 = vrot.lane.b32.xlu0 %v287, 27
        %v596 = vpop.permute.xlu0 %595
        %597 = vrot.lane.b32.xlu0 %v288, 27
        %v598 = vpop.permute.xlu0 %597
        %599 = vrot.lane.b32.xlu0 %v289, 27
        %v600 = vpop.permute.xlu0 %599
        %vm601 = vcmask 220160
        %v602 = vsel %vm601, %v586, %v588
        %v603 = vsel %vm601, %v588, %v590
        %v604 = vsel %vm601, %v590, %v592
        %v605 = vsel %vm601, %v592, %v594
        %v606 = vsel %vm601, %v594, %v596
        %v607 = vsel %vm601, %v596, %v598
        %v608 = vsel %vm601, %v598, %v600
        %616 = vrot.lane.b32.xlu0 %v282, 26
        %v617 = vpop.permute.xlu0 %616
        %618 = vrot.lane.b32.xlu0 %v283, 26
        %v619 = vpop.permute.xlu0 %618
        %620 = vrot.lane.b32.xlu0 %v284, 26
        %v621 = vpop.permute.xlu0 %620
        %622 = vrot.lane.b32.xlu0 %v285, 26
        %v623 = vpop.permute.xlu0 %622
        %624 = vrot.lane.b32.xlu0 %v286, 26
        %v625 = vpop.permute.xlu0 %624
        %626 = vrot.lane.b32.xlu0 %v287, 26
        %v627 = vpop.permute.xlu0 %626
        %628 = vrot.lane.b32.xlu0 %v288, 26
        %v629 = vpop.permute.xlu0 %628
        %630 = vrot.lane.b32.xlu0 %v289, 26
        %v631 = vpop.permute.xlu0 %630
        %vm632 = vcmask 211968
        %v633 = vsel %vm632, %v617, %v619
        %v634 = vsel %vm632, %v619, %v621
        %v635 = vsel %vm632, %v621, %v623
        %v636 = vsel %vm632, %v623, %v625
        %v637 = vsel %vm632, %v625, %v627
        %v638 = vsel %vm632, %v627, %v629
        %v639 = vsel %vm632, %v629, %v631
        %647 = vrot.lane.b32.xlu0 %v282, 18
        %v648 = vpop.permute.xlu0 %647
        %649 = vrot.lane.b32.xlu0 %v283, 18
        %v650 = vpop.permute.xlu0 %649
        %651 = vrot.lane.b32.xlu0 %v284, 18
        %v652 = vpop.permute.xlu0 %651
        %653 = vrot.lane.b32.xlu0 %v285, 18
        %v654 = vpop.permute.xlu0 %653
        %655 = vrot.lane.b32.xlu0 %v286, 18
        %v656 = vpop.permute.xlu0 %655
        %657 = vrot.lane.b32.xlu0 %v287, 18
        %v658 = vpop.permute.xlu0 %657
        %659 = vrot.lane.b32.xlu0 %v288, 18
        %v660 = vpop.permute.xlu0 %659
        %661 = vrot.lane.b32.xlu0 %v289, 18
        %v662 = vpop.permute.xlu0 %661
        %vm663 = vcmask 146432
        %v664 = vsel %vm663, %v648, %v650
        %v665 = vsel %vm663, %v650, %v652
        %v666 = vsel %vm663, %v652, %v654
        %v667 = vsel %vm663, %v654, %v656
        %v668 = vsel %vm663, %v656, %v658
        %v669 = vsel %vm663, %v658, %v660
        %v670 = vsel %vm663, %v660, %v662
        %678 = vrot.lane.b32.xlu0 %v282, 17
        %v679 = vpop.permute.xlu0 %678
        %680 = vrot.lane.b32.xlu0 %v283, 17
        %v681 = vpop.permute.xlu0 %680
        %682 = vrot.lane.b32.xlu0 %v284, 17
        %v683 = vpop.permute.xlu0 %682
        %684 = vrot.lane.b32.xlu0 %v285, 17
        %v685 = vpop.permute.xlu0 %684
        %686 = vrot.lane.b32.xlu0 %v286, 17
        %v687 = vpop.permute.xlu0 %686
        %688 = vrot.lane.b32.xlu0 %v287, 17
        %v689 = vpop.permute.xlu0 %688
        %690 = vrot.lane.b32.xlu0 %v288, 17
        %v691 = vpop.permute.xlu0 %690
        %692 = vrot.lane.b32.xlu0 %v289, 17
        %v693 = vpop.permute.xlu0 %692
        %vm694 = vcmask 138240
        %v695 = vsel %vm694, %v679, %v681
        %v696 = vsel %vm694, %v681, %v683
        %v697 = vsel %vm694, %v683, %v685
        %v698 = vsel %vm694, %v685, %v687
        %v699 = vsel %vm694, %v687, %v689
        %v700 = vsel %vm694, %v689, %v691
        %v701 = vsel %vm694, %v691, %v693
        %709 = vrot.lane.b32.xlu0 %v282, 16
        %v710 = vpop.permute.xlu0 %709
        %711 = vrot.lane.b32.xlu0 %v283, 16
        %v712 = vpop.permute.xlu0 %711
        %713 = vrot.lane.b32.xlu0 %v284, 16
        %v714 = vpop.permute.xlu0 %713
        %715 = vrot.lane.b32.xlu0 %v285, 16
        %v716 = vpop.permute.xlu0 %715
        %717 = vrot.lane.b32.xlu0 %v286, 16
        %v718 = vpop.permute.xlu0 %717
        %719 = vrot.lane.b32.xlu0 %v287, 16
        %v720 = vpop.permute.xlu0 %719
        %721 = vrot.lane.b32.xlu0 %v288, 16
        %v722 = vpop.permute.xlu0 %721
        %723 = vrot.lane.b32.xlu0 %v289, 16
        %v724 = vpop.permute.xlu0 %723
        %vm725 = vcmask 130048
        %v726 = vsel %vm725, %v710, %v712
        %v727 = vsel %vm725, %v712, %v714
        %v728 = vsel %vm725, %v714, %v716
        %v729 = vsel %vm725, %v716, %v718
        %v730 = vsel %vm725, %v718, %v720
        %v731 = vsel %vm725, %v720, %v722
        %v732 = vsel %vm725, %v722, %v724
        %740 = vrot.lane.b32.xlu0 %v282, 8
        %v741 = vpop.permute.xlu0 %740
        %742 = vrot.lane.b32.xlu0 %v283, 8
        %v743 = vpop.permute.xlu0 %742
        %744 = vrot.lane.b32.xlu0 %v284, 8
        %v745 = vpop.permute.xlu0 %744
        %746 = vrot.lane.b32.xlu0 %v285, 8
        %v747 = vpop.permute.xlu0 %746
        %748 = vrot.lane.b32.xlu0 %v286, 8
        %v749 = vpop.permute.xlu0 %748
        %750 = vrot.lane.b32.xlu0 %v287, 8
        %v751 = vpop.permute.xlu0 %750
        %752 = vrot.lane.b32.xlu0 %v288, 8
        %v753 = vpop.permute.xlu0 %752
        %754 = vrot.lane.b32.xlu0 %v289, 8
        %v755 = vpop.permute.xlu0 %754
        %vm756 = vcmask 64512
        %v757 = vsel %vm756, %v741, %v743
        %v758 = vsel %vm756, %v743, %v745
        %v759 = vsel %vm756, %v745, %v747
        %v760 = vsel %vm756, %v747, %v749
        %v761 = vsel %vm756, %v749, %v751
        %v762 = vsel %vm756, %v751, %v753
        %v763 = vsel %vm756, %v753, %v755
        %779 = vrot.lane.b32.xlu0 %v290, 49
        %v780 = vpop.permute.xlu0 %779
        %781 = vrot.lane.b32.xlu0 %v291, 49
        %v782 = vpop.permute.xlu0 %781
        %783 = vrot.lane.b32.xlu0 %v292, 49
        %v784 = vpop.permute.xlu0 %783
        %785 = vrot.lane.b32.xlu0 %v293, 49
        %v786 = vpop.permute.xlu0 %785
        %787 = vrot.lane.b32.xlu0 %v294, 49
        %v788 = vpop.permute.xlu0 %787
        %789 = vrot.lane.b32.xlu0 %v295, 49
        %v790 = vpop.permute.xlu0 %789
        %791 = vrot.lane.b32.xlu0 %v296, 49
        %v792 = vpop.permute.xlu0 %791
        %793 = vrot.lane.b32.xlu0 %v297, 49
        %v794 = vpop.permute.xlu0 %793
        %vm795 = vcmask 400384
        %v796 = vsel %vm795, %v780, %v782
        %v797 = vsel %vm795, %v782, %v784
        %v798 = vsel %vm795, %v784, %v786
        %v799 = vsel %vm795, %v786, %v788
        %v800 = vsel %vm795, %v788, %v790
        %v801 = vsel %vm795, %v790, %v792
        %v802 = vsel %vm795, %v792, %v794
        %803 = vrot.lane.b32.xlu0 %v290, 48
        %v804 = vpop.permute.xlu0 %803
        %805 = vrot.lane.b32.xlu0 %v291, 48
        %v806 = vpop.permute.xlu0 %805
        %807 = vrot.lane.b32.xlu0 %v292, 48
        %v808 = vpop.permute.xlu0 %807
        %809 = vrot.lane.b32.xlu0 %v293, 48
        %v810 = vpop.permute.xlu0 %809
        %811 = vrot.lane.b32.xlu0 %v294, 48
        %v812 = vpop.permute.xlu0 %811
        %813 = vrot.lane.b32.xlu0 %v295, 48
        %v814 = vpop.permute.xlu0 %813
        %815 = vrot.lane.b32.xlu0 %v296, 48
        %v816 = vpop.permute.xlu0 %815
        %817 = vrot.lane.b32.xlu0 %v297, 48
        %v818 = vpop.permute.xlu0 %817
        %vm819 = vcmask 392192
        %v820 = vsel %vm819, %v804, %v806
        %v821 = vsel %vm819, %v806, %v808
        %v822 = vsel %vm819, %v808, %v810
        %v823 = vsel %vm819, %v810, %v812
        %v824 = vsel %vm819, %v812, %v814
        %v825 = vsel %vm819, %v814, %v816
        %v826 = vsel %vm819, %v816, %v818
        %827 = vrot.lane.b32.xlu0 %v290, 47
        %v828 = vpop.permute.xlu0 %827
        %829 = vrot.lane.b32.xlu0 %v291, 47
        %v830 = vpop.permute.xlu0 %829
        %831 = vrot.lane.b32.xlu0 %v292, 47
        %v832 = vpop.permute.xlu0 %831
        %833 = vrot.lane.b32.xlu0 %v293, 47
        %v834 = vpop.permute.xlu0 %833
        %835 = vrot.lane.b32.xlu0 %v294, 47
        %v836 = vpop.permute.xlu0 %835
        %837 = vrot.lane.b32.xlu0 %v295, 47
        %v838 = vpop.permute.xlu0 %837
        %839 = vrot.lane.b32.xlu0 %v296, 47
        %v840 = vpop.permute.xlu0 %839
        %841 = vrot.lane.b32.xlu0 %v297, 47
        %v842 = vpop.permute.xlu0 %841
        %vm843 = vcmask 384000
        %v844 = vsel %vm843, %v828, %v830
        %v845 = vsel %vm843, %v830, %v832
        %v846 = vsel %vm843, %v832, %v834
        %v847 = vsel %vm843, %v834, %v836
        %v848 = vsel %vm843, %v836, %v838
        %v849 = vsel %vm843, %v838, %v840
        %v850 = vsel %vm843, %v840, %v842
        %851 = vrot.lane.b32.xlu0 %v290, 39
        %v852 = vpop.permute.xlu0 %851
        %853 = vrot.lane.b32.xlu0 %v291, 39
        %v854 = vpop.permute.xlu0 %853
        %855 = vrot.lane.b32.xlu0 %v292, 39
        %v856 = vpop.permute.xlu0 %855
        %857 = vrot.lane.b32.xlu0 %v293, 39
        %v858 = vpop.permute.xlu0 %857
        %859 = vrot.lane.b32.xlu0 %v294, 39
        %v860 = vpop.permute.xlu0 %859
        %861 = vrot.lane.b32.xlu0 %v295, 39
        %v862 = vpop.permute.xlu0 %861
        %863 = vrot.lane.b32.xlu0 %v296, 39
        %v864 = vpop.permute.xlu0 %863
        %865 = vrot.lane.b32.xlu0 %v297, 39
        %v866 = vpop.permute.xlu0 %865
        %vm867 = vcmask 318464
        %v868 = vsel %vm867, %v852, %v854
        %v869 = vsel %vm867, %v854, %v856
        %v870 = vsel %vm867, %v856, %v858
        %v871 = vsel %vm867, %v858, %v860
        %v872 = vsel %vm867, %v860, %v862
        %v873 = vsel %vm867, %v862, %v864
        %v874 = vsel %vm867, %v864, %v866
        %875 = vrot.lane.b32.xlu0 %v290, 38
        %v876 = vpop.permute.xlu0 %875
        %877 = vrot.lane.b32.xlu0 %v291, 38
        %v878 = vpop.permute.xlu0 %877
        %879 = vrot.lane.b32.xlu0 %v292, 38
        %v880 = vpop.permute.xlu0 %879
        %881 = vrot.lane.b32.xlu0 %v293, 38
        %v882 = vpop.permute.xlu0 %881
        %883 = vrot.lane.b32.xlu0 %v294, 38
        %v884 = vpop.permute.xlu0 %883
        %885 = vrot.lane.b32.xlu0 %v295, 38
        %v886 = vpop.permute.xlu0 %885
        %887 = vrot.lane.b32.xlu0 %v296, 38
        %v888 = vpop.permute.xlu0 %887
        %889 = vrot.lane.b32.xlu0 %v297, 38
        %v890 = vpop.permute.xlu0 %889
        %vm891 = vcmask 310272
        %v892 = vsel %vm891, %v876, %v878
        %v893 = vsel %vm891, %v878, %v880
        %v894 = vsel %vm891, %v880, %v882
        %v895 = vsel %vm891, %v882, %v884
        %v896 = vsel %vm891, %v884, %v886
        %v897 = vsel %vm891, %v886, %v888
        %v898 = vsel %vm891, %v888, %v890
        %899 = vrot.lane.b32.xlu0 %v290, 37
        %v900 = vpop.permute.xlu0 %899
        %901 = vrot.lane.b32.xlu0 %v291, 37
        %v902 = vpop.permute.xlu0 %901
        %903 = vrot.lane.b32.xlu0 %v292, 37
        %v904 = vpop.permute.xlu0 %903
        %905 = vrot.lane.b32.xlu0 %v293, 37
        %v906 = vpop.permute.xlu0 %905
        %907 = vrot.lane.b32.xlu0 %v294, 37
        %v908 = vpop.permute.xlu0 %907
        %909 = vrot.lane.b32.xlu0 %v295, 37
        %v910 = vpop.permute.xlu0 %909
        %911 = vrot.lane.b32.xlu0 %v296, 37
        %v912 = vpop.permute.xlu0 %911
        %913 = vrot.lane.b32.xlu0 %v297, 37
        %v914 = vpop.permute.xlu0 %913
        %vm915 = vcmask 302080
        %v916 = vsel %vm915, %v900, %v902
        %v917 = vsel %vm915, %v902, %v904
        %v918 = vsel %vm915, %v904, %v906
        %v919 = vsel %vm915, %v906, %v908
        %v920 = vsel %vm915, %v908, %v910
        %v921 = vsel %vm915, %v910, %v912
        %v922 = vsel %vm915, %v912, %v914
        %923 = vrot.lane.b32.xlu0 %v290, 29
        %v924 = vpop.permute.xlu0 %923
        %925 = vrot.lane.b32.xlu0 %v291, 29
        %v926 = vpop.permute.xlu0 %925
        %927 = vrot.lane.b32.xlu0 %v292, 29
        %v928 = vpop.permute.xlu0 %927
        %929 = vrot.lane.b32.xlu0 %v293, 29
        %v930 = vpop.permute.xlu0 %929
        %931 = vrot.lane.b32.xlu0 %v294, 29
        %v932 = vpop.permute.xlu0 %931
        %933 = vrot.lane.b32.xlu0 %v295, 29
        %v934 = vpop.permute.xlu0 %933
        %935 = vrot.lane.b32.xlu0 %v296, 29
        %v936 = vpop.permute.xlu0 %935
        %937 = vrot.lane.b32.xlu0 %v297, 29
        %v938 = vpop.permute.xlu0 %937
        %vm939 = vcmask 236544
        %v940 = vsel %vm939, %v924, %v926
        %v941 = vsel %vm939, %v926, %v928
        %v942 = vsel %vm939, %v928, %v930
        %v943 = vsel %vm939, %v930, %v932
        %v944 = vsel %vm939, %v932, %v934
        %v945 = vsel %vm939, %v934, %v936
        %v946 = vsel %vm939, %v936, %v938
        %947 = vrot.lane.b32.xlu0 %v290, 28
        %v948 = vpop.permute.xlu0 %947
        %949 = vrot.lane.b32.xlu0 %v291, 28
        %v950 = vpop.permute.xlu0 %949
        %951 = vrot.lane.b32.xlu0 %v292, 28
        %v952 = vpop.permute.xlu0 %951
        %953 = vrot.lane.b32.xlu0 %v293, 28
        %v954 = vpop.permute.xlu0 %953
        %955 = vrot.lane.b32.xlu0 %v294, 28
        %v956 = vpop.permute.xlu0 %955
        %957 = vrot.lane.b32.xlu0 %v295, 28
        %v958 = vpop.permute.xlu0 %957
        %959 = vrot.lane.b32.xlu0 %v296, 28
        %v960 = vpop.permute.xlu0 %959
        %961 = vrot.lane.b32.xlu0 %v297, 28
        %v962 = vpop.permute.xlu0 %961
        %v963 = vsel %vm570, %v948, %v950
        %v964 = vsel %vm570, %v950, %v952
        %v965 = vsel %vm570, %v952, %v954
        %v966 = vsel %vm570, %v954, %v956
        %v967 = vsel %vm570, %v956, %v958
        %v968 = vsel %vm570, %v958, %v960
        %v969 = vsel %vm570, %v960, %v962
        %970 = vrot.lane.b32.xlu0 %v290, 27
        %v971 = vpop.permute.xlu0 %970
        %972 = vrot.lane.b32.xlu0 %v291, 27
        %v973 = vpop.permute.xlu0 %972
        %974 = vrot.lane.b32.xlu0 %v292, 27
        %v975 = vpop.permute.xlu0 %974
        %976 = vrot.lane.b32.xlu0 %v293, 27
        %v977 = vpop.permute.xlu0 %976
        %978 = vrot.lane.b32.xlu0 %v294, 27
        %v979 = vpop.permute.xlu0 %978
        %980 = vrot.lane.b32.xlu0 %v295, 27
        %v981 = vpop.permute.xlu0 %980
        %982 = vrot.lane.b32.xlu0 %v296, 27
        %v983 = vpop.permute.xlu0 %982
        %984 = vrot.lane.b32.xlu0 %v297, 27
        %v985 = vpop.permute.xlu0 %984
        %v986 = vsel %vm601, %v971, %v973
        %v987 = vsel %vm601, %v973, %v975
        %v988 = vsel %vm601, %v975, %v977
        %v989 = vsel %vm601, %v977, %v979
        %v990 = vsel %vm601, %v979, %v981
        %v991 = vsel %vm601, %v981, %v983
        %v992 = vsel %vm601, %v983, %v985
        %993 = vrot.lane.b32.xlu0 %v282, 7
        %v994 = vpop.permute.xlu0 %993
        %995 = vrot.lane.b32.xlu0 %v283, 7
        %v996 = vpop.permute.xlu0 %995
        %997 = vrot.lane.b32.xlu0 %v284, 7
        %v998 = vpop.permute.xlu0 %997
        %999 = vrot.lane.b32.xlu0 %v285, 7
        %v1000 = vpop.permute.xlu0 %999
        %1001 = vrot.lane.b32.xlu0 %v286, 7
        %v1002 = vpop.permute.xlu0 %1001
        %1003 = vrot.lane.b32.xlu0 %v287, 7
        %v1004 = vpop.permute.xlu0 %1003
        %1005 = vrot.lane.b32.xlu0 %v288, 7
        %v1006 = vpop.permute.xlu0 %1005
        %1007 = vrot.lane.b32.xlu0 %v289, 7
        %v1008 = vpop.permute.xlu0 %1007
        %1009 = vrot.lane.b32.xlu0 %v323, 7
        %v1010 = vpop.permute.xlu0 %1009
        %1011 = vrot.lane.b32.xlu0 %v324, 7
        %v1012 = vpop.permute.xlu0 %1011
        %1013 = vrot.lane.b32.xlu0 %v325, 7
        %v1014 = vpop.permute.xlu0 %1013
        %1015 = vrot.lane.b32.xlu0 %v326, 7
        %v1016 = vpop.permute.xlu0 %1015
        %1017 = vrot.lane.b32.xlu0 %v327, 7
        %v1018 = vpop.permute.xlu0 %1017
        %1019 = vrot.lane.b32.xlu0 %v328, 7
        %v1020 = vpop.permute.xlu0 %1019
        %1021 = vrot.lane.b32.xlu0 %v329, 7
        %v1022 = vpop.permute.xlu0 %1021
        %1023 = vrot.lane.b32.xlu0 %v321, 7
        %v1024 = vpop.permute.xlu0 %1023
        %1025 = vrot.lane.b32.xlu0 %v780, 7
        %v1026 = vpop.permute.xlu0 %1025
        %1027 = vrot.lane.b32.xlu0 %v796, 7
        %v1028 = vpop.permute.xlu0 %1027
        %1029 = vrot.lane.b32.xlu0 %v797, 7
        %v1030 = vpop.permute.xlu0 %1029
        %1031 = vrot.lane.b32.xlu0 %v798, 7
        %v1032 = vpop.permute.xlu0 %1031
        %1033 = vrot.lane.b32.xlu0 %v799, 7
        %v1034 = vpop.permute.xlu0 %1033
        %1035 = vrot.lane.b32.xlu0 %v800, 7
        %v1036 = vpop.permute.xlu0 %1035
        %1037 = vrot.lane.b32.xlu0 %v801, 7
        %v1038 = vpop.permute.xlu0 %1037
        %1039 = vrot.lane.b32.xlu0 %v802, 7
        %v1040 = vpop.permute.xlu0 %1039
        %1041 = vrot.lane.b32.xlu0 %v804, 7
        %v1042 = vpop.permute.xlu0 %1041
        %1043 = vrot.lane.b32.xlu0 %v820, 7
        %v1044 = vpop.permute.xlu0 %1043
        %1045 = vrot.lane.b32.xlu0 %v821, 7
        %v1046 = vpop.permute.xlu0 %1045
        %1047 = vrot.lane.b32.xlu0 %v822, 7
        %v1048 = vpop.permute.xlu0 %1047
        %1049 = vrot.lane.b32.xlu0 %v823, 7
        %v1050 = vpop.permute.xlu0 %1049
        %1051 = vrot.lane.b32.xlu0 %v824, 7
        %v1052 = vpop.permute.xlu0 %1051
        %1053 = vrot.lane.b32.xlu0 %v825, 7
        %v1054 = vpop.permute.xlu0 %1053
        %1055 = vrot.lane.b32.xlu0 %v826, 7
        %v1056 = vpop.permute.xlu0 %1055
        %1057 = vrot.lane.b32.xlu0 %v828, 7
        %v1058 = vpop.permute.xlu0 %1057
        %1059 = vrot.lane.b32.xlu0 %v844, 7
        %v1060 = vpop.permute.xlu0 %1059
        %1061 = vrot.lane.b32.xlu0 %v845, 7
        %v1062 = vpop.permute.xlu0 %1061
        %1063 = vrot.lane.b32.xlu0 %v846, 7
        %v1064 = vpop.permute.xlu0 %1063
        %1065 = vrot.lane.b32.xlu0 %v847, 7
        %v1066 = vpop.permute.xlu0 %1065
        %1067 = vrot.lane.b32.xlu0 %v848, 7
        %v1068 = vpop.permute.xlu0 %1067
        %1069 = vrot.lane.b32.xlu0 %v849, 7
        %v1070 = vpop.permute.xlu0 %1069
        %1071 = vrot.lane.b32.xlu0 %v850, 7
        %v1072 = vpop.permute.xlu0 %1071
        %1073 = vrot.lane.b32.xlu0 %v852, 7
        %v1074 = vpop.permute.xlu0 %1073
        %1075 = vrot.lane.b32.xlu0 %v868, 7
        %v1076 = vpop.permute.xlu0 %1075
        %1077 = vrot.lane.b32.xlu0 %v869, 7
        %v1078 = vpop.permute.xlu0 %1077
        %1079 = vrot.lane.b32.xlu0 %v870, 7
        %v1080 = vpop.permute.xlu0 %1079
        %1081 = vrot.lane.b32.xlu0 %v871, 7
        %v1082 = vpop.permute.xlu0 %1081
        %1083 = vrot.lane.b32.xlu0 %v872, 7
        %v1084 = vpop.permute.xlu0 %1083
        %1085 = vrot.lane.b32.xlu0 %v873, 7
        %v1086 = vpop.permute.xlu0 %1085
        %1087 = vrot.lane.b32.xlu0 %v874, 7
        %v1088 = vpop.permute.xlu0 %1087
        %1089 = vrot.lane.b32.xlu0 %v876, 7
        %v1090 = vpop.permute.xlu0 %1089
        %1091 = vrot.lane.b32.xlu0 %v892, 7
        %v1092 = vpop.permute.xlu0 %1091
        %1093 = vrot.lane.b32.xlu0 %v893, 7
        %v1094 = vpop.permute.xlu0 %1093
        %1095 = vrot.lane.b32.xlu0 %v894, 7
        %v1096 = vpop.permute.xlu0 %1095
        %1097 = vrot.lane.b32.xlu0 %v895, 7
        %v1098 = vpop.permute.xlu0 %1097
        %1099 = vrot.lane.b32.xlu0 %v896, 7
        %v1100 = vpop.permute.xlu0 %1099
        %1101 = vrot.lane.b32.xlu0 %v897, 7
        %v1102 = vpop.permute.xlu0 %1101
        %1103 = vrot.lane.b32.xlu0 %v898, 7
        %v1104 = vpop.permute.xlu0 %1103
        %1105 = vrot.lane.b32.xlu0 %v900, 7
        %v1106 = vpop.permute.xlu0 %1105
        %1107 = vrot.lane.b32.xlu0 %v916, 7
        %v1108 = vpop.permute.xlu0 %1107
        %1109 = vrot.lane.b32.xlu0 %v917, 7
        %v1110 = vpop.permute.xlu0 %1109
        %1111 = vrot.lane.b32.xlu0 %v918, 7
        %v1112 = vpop.permute.xlu0 %1111
        %1113 = vrot.lane.b32.xlu0 %v919, 7
        %v1114 = vpop.permute.xlu0 %1113
        %1115 = vrot.lane.b32.xlu0 %v920, 7
        %v1116 = vpop.permute.xlu0 %1115
        %1117 = vrot.lane.b32.xlu0 %v921, 7
        %v1118 = vpop.permute.xlu0 %1117
        %1119 = vrot.lane.b32.xlu0 %v922, 7
        %v1120 = vpop.permute.xlu0 %1119
        %1121 = vrot.lane.b32.xlu0 %v924, 7
        %v1122 = vpop.permute.xlu0 %1121
        %1123 = vrot.lane.b32.xlu0 %v940, 7
        %v1124 = vpop.permute.xlu0 %1123
        %1125 = vrot.lane.b32.xlu0 %v941, 7
        %v1126 = vpop.permute.xlu0 %1125
        %1127 = vrot.lane.b32.xlu0 %v942, 7
        %v1128 = vpop.permute.xlu0 %1127
        %1129 = vrot.lane.b32.xlu0 %v943, 7
        %v1130 = vpop.permute.xlu0 %1129
        %1131 = vrot.lane.b32.xlu0 %v944, 7
        %v1132 = vpop.permute.xlu0 %1131
        %1133 = vrot.lane.b32.xlu0 %v945, 7
        %v1134 = vpop.permute.xlu0 %1133
        %1135 = vrot.lane.b32.xlu0 %v946, 7
        %v1136 = vpop.permute.xlu0 %1135
        %1137 = vrot.lane.b32.xlu0 %v948, 7
        %v1138 = vpop.permute.xlu0 %1137
        %1139 = vrot.lane.b32.xlu0 %v963, 7
        %v1140 = vpop.permute.xlu0 %1139
        %1141 = vrot.lane.b32.xlu0 %v964, 7
        %v1142 = vpop.permute.xlu0 %1141
        %1143 = vrot.lane.b32.xlu0 %v965, 7
        %v1144 = vpop.permute.xlu0 %1143
        %1145 = vrot.lane.b32.xlu0 %v966, 7
        %v1146 = vpop.permute.xlu0 %1145
        %1147 = vrot.lane.b32.xlu0 %v967, 7
        %v1148 = vpop.permute.xlu0 %1147
        %1149 = vrot.lane.b32.xlu0 %v968, 7
        %v1150 = vpop.permute.xlu0 %1149
        %1151 = vrot.lane.b32.xlu0 %v969, 7
        %v1152 = vpop.permute.xlu0 %1151
        %1153 = vrot.lane.b32.xlu0 %v971, 7
        %v1154 = vpop.permute.xlu0 %1153
        %1155 = vrot.lane.b32.xlu0 %v986, 7
        %v1156 = vpop.permute.xlu0 %1155
        %1157 = vrot.lane.b32.xlu0 %v987, 7
        %v1158 = vpop.permute.xlu0 %1157
        %1159 = vrot.lane.b32.xlu0 %v988, 7
        %v1160 = vpop.permute.xlu0 %1159
        %1161 = vrot.lane.b32.xlu0 %v989, 7
        %v1162 = vpop.permute.xlu0 %1161
        %1163 = vrot.lane.b32.xlu0 %v990, 7
        %v1164 = vpop.permute.xlu0 %1163
        %1165 = vrot.lane.b32.xlu0 %v991, 7
        %v1166 = vpop.permute.xlu0 %1165
        %1167 = vrot.lane.b32.xlu0 %v992, 7
        %v1168 = vpop.permute.xlu0 %1167
        %vm1169 = vcmask 56320
        %v1170 = vsel %vm1169, %v994, %v996
        %v1171 = vsel %vm1169, %v996, %v998
        %v1172 = vsel %vm1169, %v998, %v1000
        %v1173 = vsel %vm1169, %v1000, %v1002
        %v1174 = vsel %vm1169, %v1002, %v1004
        %v1175 = vsel %vm1169, %v1004, %v1006
        %v1176 = vsel %vm1169, %v1006, %v1008
        %v1177 = vsel %vm1169, %v1010, %v1012
        %v1178 = vsel %vm1169, %v1012, %v1014
        %v1179 = vsel %vm1169, %v1014, %v1016
        %v1180 = vsel %vm1169, %v1016, %v1018
        %v1181 = vsel %vm1169, %v1018, %v1020
        %v1182 = vsel %vm1169, %v1020, %v1022
        %v1183 = vsel %vm1169, %v1022, %v1024
        %v1184 = vsel %vm1169, %v1026, %v1028
        %v1185 = vsel %vm1169, %v1028, %v1030
        %v1186 = vsel %vm1169, %v1030, %v1032
        %v1187 = vsel %vm1169, %v1032, %v1034
        %v1188 = vsel %vm1169, %v1034, %v1036
        %v1189 = vsel %vm1169, %v1036, %v1038
        %v1190 = vsel %vm1169, %v1038, %v1040
        %v1191 = vsel %vm1169, %v1042, %v1044
        %v1192 = vsel %vm1169, %v1044, %v1046
        %v1193 = vsel %vm1169, %v1046, %v1048
        %v1194 = vsel %vm1169, %v1048, %v1050
        %v1195 = vsel %vm1169, %v1050, %v1052
        %v1196 = vsel %vm1169, %v1052, %v1054
        %v1197 = vsel %vm1169, %v1054, %v1056
        %v1198 = vsel %vm1169, %v1058, %v1060
        %v1199 = vsel %vm1169, %v1060, %v1062
        %v1200 = vsel %vm1169, %v1062, %v1064
        %v1201 = vsel %vm1169, %v1064, %v1066
        %v1202 = vsel %vm1169, %v1066, %v1068
        %v1203 = vsel %vm1169, %v1068, %v1070
        %v1204 = vsel %vm1169, %v1070, %v1072
        %v1205 = vsel %vm1169, %v1074, %v1076
        %v1206 = vsel %vm1169, %v1076, %v1078
        %v1207 = vsel %vm1169, %v1078, %v1080
        %v1208 = vsel %vm1169, %v1080, %v1082
        %v1209 = vsel %vm1169, %v1082, %v1084
        %v1210 = vsel %vm1169, %v1084, %v1086
        %v1211 = vsel %vm1169, %v1086, %v1088
        %v1212 = vsel %vm1169, %v1090, %v1092
        %v1213 = vsel %vm1169, %v1092, %v1094
        %v1214 = vsel %vm1169, %v1094, %v1096
        %v1215 = vsel %vm1169, %v1096, %v1098
        %v1216 = vsel %vm1169, %v1098, %v1100
        %v1217 = vsel %vm1169, %v1100, %v1102
        %v1218 = vsel %vm1169, %v1102, %v1104
        %v1219 = vsel %vm1169, %v1106, %v1108
        %v1220 = vsel %vm1169, %v1108, %v1110
        %v1221 = vsel %vm1169, %v1110, %v1112
        %v1222 = vsel %vm1169, %v1112, %v1114
        %v1223 = vsel %vm1169, %v1114, %v1116
        %v1224 = vsel %vm1169, %v1116, %v1118
        %v1225 = vsel %vm1169, %v1118, %v1120
        %v1226 = vsel %vm1169, %v1122, %v1124
        %v1227 = vsel %vm1169, %v1124, %v1126
        %v1228 = vsel %vm1169, %v1126, %v1128
        %v1229 = vsel %vm1169, %v1128, %v1130
        %v1230 = vsel %vm1169, %v1130, %v1132
        %v1231 = vsel %vm1169, %v1132, %v1134
        %v1232 = vsel %vm1169, %v1134, %v1136
        %v1233 = vsel %vm1169, %v1138, %v1140
        %v1234 = vsel %vm1169, %v1140, %v1142
        %v1235 = vsel %vm1169, %v1142, %v1144
        %v1236 = vsel %vm1169, %v1144, %v1146
        %v1237 = vsel %vm1169, %v1146, %v1148
        %v1238 = vsel %vm1169, %v1148, %v1150
        %v1239 = vsel %vm1169, %v1150, %v1152
        %v1240 = vsel %vm1169, %v1154, %v1156
        %v1241 = vsel %vm1169, %v1156, %v1158
        %v1242 = vsel %vm1169, %v1158, %v1160
        %v1243 = vsel %vm1169, %v1160, %v1162
        %v1244 = vsel %vm1169, %v1162, %v1164
        %v1245 = vsel %vm1169, %v1164, %v1166
        %v1246 = vsel %vm1169, %v1166, %v1168
        %v1324 = vld [vmem:[%s1] sm:$0xff]
        %v1325 = vld [vmem:[%s1 + $0x8] sm:$0xff]
        %v1326 = vld [vmem:[%s2] sm:$0xff]
        %1328 = vset.pattern.permute.xlu0 0
        %1329 = vperm.xlu0 %1328, %v1326
        %v1330 = vpop.permute.xlu0 %1329
        %vm1332 = vcmask 719872
        %v1334 = vsel %vm1332, %v1325, 0
        %1336 = vmatprep.subr.mxu0 %v283
        %1337 = vmatpush1.msra.mxu0 %v282
        %1338 = vmatprep.subr.mxu0 %v324
        %1339 = vmatpush1.msra.mxu0 %v323
        %1340 = vmatprep.subr.mxu0 %v355
        %1341 = vmatpush1.msra.mxu0 %v354
        %1342 = vmatprep.subr.mxu0 %v386
        %1343 = vmatpush1.msra.mxu0 %v385
        %1344 = vmatprep.subr.mxu0 %v417
        %1345 = vmatpush1.msra.mxu0 %v416
        %1346 = vmatprep.subr.mxu0 %v448
        %1347 = vmatpush1.msra.mxu0 %v447
        %1348 = vmatprep.subr.mxu0 %v479
        %1349 = vmatpush1.msra.mxu0 %v478
        %1350 = vmatprep.subr.mxu0 %v510
        %1351 = vmatpush1.msra.mxu0 %v509
        %1352 = vmatprep.subr.mxu0 %v541
        %1353 = vmatpush1.msra.mxu0 %v540
        %1354 = vmatprep.subr.mxu0 %v572
        %1355 = vmatpush1.msra.mxu0 %v571
        %1356 = vmatprep.subr.mxu0 %v603
        %1357 = vmatpush1.msra.mxu0 %v602
        %1358 = vmatprep.subr.mxu0 %v634
        %1359 = vmatpush1.msra.mxu0 %v633
        %1360 = vmatprep.subr.mxu0 %v665
        %1361 = vmatpush1.msra.mxu0 %v664
        %1362 = vmatprep.subr.mxu0 %v696
        %1363 = vmatpush1.msra.mxu0 %v695
        %1364 = vmatprep.subr.mxu0 %v727
        %1365 = vmatpush1.msra.mxu0 %v726
        %1366 = vmatprep.subr.mxu0 %v758
        %1367 = vmatpush1.msra.mxu0 %v757
        %1368 = vmatprep.subr.mxu0 %v1171
        %1369 = vmatpush1.msra.mxu0 %v1170
        %1370 = vmatprep.subr.mxu0 %v1178
        %1371 = vmatpush1.msra.mxu0 %v1177
        %1372 = vmatprep.subr.mxu0 %v1185
        %1373 = vmatpush1.msra.mxu0 %v1184
        %1374 = vmatprep.subr.mxu0 %v1192
        %1375 = vmatpush1.msra.mxu0 %v1191
        %1376 = vmatprep.subr.mxu0 %v1199
        %1377 = vmatpush1.msra.mxu0 %v1198
        %1378 = vmatprep.subr.mxu0 %v1206
        %1379 = vmatpush1.msra.mxu0 %v1205
        %1380 = vmatprep.subr.mxu0 %v1213
        %1381 = vmatpush1.msra.mxu0 %v1212
        %1382 = vmatprep.subr.mxu0 %v1220
        %1383 = vmatpush1.msra.mxu0 %v1219
        %1384 = vmatprep.subr.mxu0 %v1227
        %1385 = vmatpush1.msra.mxu0 %v1226
        %1386 = vmatprep.subr.mxu0 %v1234
        %1387 = vmatpush1.msra.mxu0 %v1233
        %1388 = vmatprep.subr.mxu0 %v1241
        %1389 = vmatpush1.msra.mxu0 %v1240
        %1390 = vmatprep.subr.mxu0 0.0
        %1391 = vmatpush1.msra.mxu0 0.0
        %1392 = vmatprep.subr.mxu0 0.0
        %1393 = vmatpush1.msra.mxu0 0.0
        %1394 = vmatprep.subr.mxu0 0.0
        %1395 = vmatpush1.msra.mxu0 0.0
        %1396 = vmatprep.subr.mxu0 0.0
        %1397 = vmatpush1.msra.mxu0 0.0
        %1398 = vmatprep.subr.mxu0 0.0
        %1399 = vmatpush1.msra.mxu0 0.0
        %1400 = vmatprep.mubr.f32.mxu0 %v1334
        %1401 = vmatmul.mubr.f32.gmra.mrb[0].mxu0 %v1324
        %v1402 = vpop.f32.mrb[0].mxu0
        %v1403 = vadd.f32 %v1330, %v1402
        %v1404 = vpop.f32.mrb[0].mxu0
        %v1405 = vadd.f32 %v1330, %v1404
        %1406 = vdwg.mxu0
        %1407 = vmatprep.subr.mxu0 %v285
        %1408 = vmatpush1.msra.mxu0 %v284
        %1409 = vmatprep.subr.mxu0 %v326
        %1410 = vmatpush1.msra.mxu0 %v325
        %1411 = vmatprep.subr.mxu0 %v357
        %1412 = vmatpush1.msra.mxu0 %v356
        %1413 = vmatprep.subr.mxu0 %v388
        %1414 = vmatpush1.msra.mxu0 %v387
        %1415 = vmatprep.subr.mxu0 %v419
        %1416 = vmatpush1.msra.mxu0 %v418
        %1417 = vmatprep.subr.mxu0 %v450
        %1418 = vmatpush1.msra.mxu0 %v449
        %1419 = vmatprep.subr.mxu0 %v481
        %1420 = vmatpush1.msra.mxu0 %v480
        %1421 = vmatprep.subr.mxu0 %v512
        %1422 = vmatpush1.msra.mxu0 %v511
        %1423 = vmatprep.subr.mxu0 %v543
        %1424 = vmatpush1.msra.mxu0 %v542
        %1425 = vmatprep.subr.mxu0 %v574
        %1426 = vmatpush1.msra.mxu0 %v573
        %1427 = vmatprep.subr.mxu0 %v605
        %1428 = vmatpush1.msra.mxu0 %v604
        %1429 = vmatprep.subr.mxu0 %v636
        %1430 = vmatpush1.msra.mxu0 %v635
        %1431 = vmatprep.subr.mxu0 %v667
        %1432 = vmatpush1.msra.mxu0 %v666
        %1433 = vmatprep.subr.mxu0 %v698
        %1434 = vmatpush1.msra.mxu0 %v697
        %1435 = vmatprep.subr.mxu0 %v729
        %1436 = vmatpush1.msra.mxu0 %v728
        %1437 = vmatprep.subr.mxu0 %v760
        %1438 = vmatpush1.msra.mxu0 %v759
        %1439 = vmatprep.subr.mxu0 %v1173
        %1440 = vmatpush1.msra.mxu0 %v1172
        %1441 = vmatprep.subr.mxu0 %v1180
        %1442 = vmatpush1.msra.mxu0 %v1179
        %1443 = vmatprep.subr.mxu0 %v1187
        %1444 = vmatpush1.msra.mxu0 %v1186
        %1445 = vmatprep.subr.mxu0 %v1194
        %1446 = vmatpush1.msra.mxu0 %v1193
        %1447 = vmatprep.subr.mxu0 %v1201
        %1448 = vmatpush1.msra.mxu0 %v1200
        %1449 = vmatprep.subr.mxu0 %v1208
        %1450 = vmatpush1.msra.mxu0 %v1207
        %1451 = vmatprep.subr.mxu0 %v1215
        %1452 = vmatpush1.msra.mxu0 %v1214
        %1453 = vmatprep.subr.mxu0 %v1222
        %1454 = vmatpush1.msra.mxu0 %v1221
        %1455 = vmatprep.subr.mxu0 %v1229
        %1456 = vmatpush1.msra.mxu0 %v1228
        %1457 = vmatprep.subr.mxu0 %v1236
        %1458 = vmatpush1.msra.mxu0 %v1235
        %1459 = vmatprep.subr.mxu0 %v1243
        %1460 = vmatpush1.msra.mxu0 %v1242
        %1461 = vmatprep.subr.mxu0 0.0
        %1462 = vmatpush1.msra.mxu0 0.0
        %1463 = vmatprep.subr.mxu0 0.0
        %1464 = vmatpush1.msra.mxu0 0.0
        %1465 = vmatprep.subr.mxu0 0.0
        %1466 = vmatpush1.msra.mxu0 0.0
        %1467 = vmatprep.subr.mxu0 0.0
        %1468 = vmatpush1.msra.mxu0 0.0
        %1469 = vmatprep.subr.mxu0 0.0
        %1470 = vmatpush1.msra.mxu0 0.0
        %1471 = vmatprep.mubr.f32.mxu0 %v1334
        %1472 = vmatmul.mubr.f32.gmra.mrb[0].mxu0 %v1324
        %v1473 = vpop.f32.mrb[0].mxu0
        %v1474 = vadd.f32 %v1330, %v1473
        %v1475 = vpop.f32.mrb[0].mxu0
        %v1476 = vadd.f32 %v1330, %v1475
        %1477 = vdwg.mxu0
        %1478 = vmatprep.subr.mxu0 %v287
        %1479 = vmatpush1.msra.mxu0 %v286
        %1480 = vmatprep.subr.mxu0 %v328
        %1481 = vmatpush1.msra.mxu0 %v327
        %1482 = vmatprep.subr.mxu0 %v359
        %1483 = vmatpush1.msra.mxu0 %v358
        %1484 = vmatprep.subr.mxu0 %v390
        %1485 = vmatpush1.msra.mxu0 %v389
        %1486 = vmatprep.subr.mxu0 %v421
        %1487 = vmatpush1.msra.mxu0 %v420
        %1488 = vmatprep.subr.mxu0 %v452
        %1489 = vmatpush1.msra.mxu0 %v451
        %1490 = vmatprep.subr.mxu0 %v483
        %1491 = vmatpush1.msra.mxu0 %v482
        %1492 = vmatprep.subr.mxu0 %v514
        %1493 = vmatpush1.msra.mxu0 %v513
        %1494 = vmatprep.subr.mxu0 %v545
        %1495 = vmatpush1.msra.mxu0 %v544
        %1496 = vmatprep.subr.mxu0 %v576
        %1497 = vmatpush1.msra.mxu0 %v575
        %1498 = vmatprep.subr.mxu0 %v607
        %1499 = vmatpush1.msra.mxu0 %v606
        %1500 = vmatprep.subr.mxu0 %v638
        %1501 = vmatpush1.msra.mxu0 %v637
        %1502 = vmatprep.subr.mxu0 %v669
        %1503 = vmatpush1.msra.mxu0 %v668
        %1504 = vmatprep.subr.mxu0 %v700
        %1505 = vmatpush1.msra.mxu0 %v699
        %1506 = vmatprep.subr.mxu0 %v731
        %1507 = vmatpush1.msra.mxu0 %v730
        %1508 = vmatprep.subr.mxu0 %v762
        %1509 = vmatpush1.msra.mxu0 %v761
        %1510 = vmatprep.subr.mxu0 %v1175
        %1511 = vmatpush1.msra.mxu0 %v1174
        %1512 = vmatprep.subr.mxu0 %v1182
        %1513 = vmatpush1.msra.mxu0 %v1181
        %1514 = vmatprep.subr.mxu0 %v1189
        %1515 = vmatpush1.msra.mxu0 %v1188
        %1516 = vmatprep.subr.mxu0 %v1196
        %1517 = vmatpush1.msra.mxu0 %v1195
        %1518 = vmatprep.subr.mxu0 %v1203
        %1519 = vmatpush1.msra.mxu0 %v1202
        %1520 = vmatprep.subr.mxu0 %v1210
        %1521 = vmatpush1.msra.mxu0 %v1209
        %1522 = vmatprep.subr.mxu0 %v1217
        %1523 = vmatpush1.msra.mxu0 %v1216
        %1524 = vmatprep.subr.mxu0 %v1224
        %1525 = vmatpush1.msra.mxu0 %v1223
        %1526 = vmatprep.subr.mxu0 %v1231
        %1527 = vmatpush1.msra.mxu0 %v1230
        %1528 = vmatprep.subr.mxu0 %v1238
        %1529 = vmatpush1.msra.mxu0 %v1237
        %1530 = vmatprep.subr.mxu0 %v1245
        %1531 = vmatpush1.msra.mxu0 %v1244
        %1532 = vmatprep.subr.mxu0 0.0
        %1533 = vmatpush1.msra.mxu0 0.0
        %1534 = vmatprep.subr.mxu0 0.0
        %1535 = vmatpush1.msra.mxu0 0.0
        %1536 = vmatprep.subr.mxu0 0.0
        %1537 = vmatpush1.msra.mxu0 0.0
        %1538 = vmatprep.subr.mxu0 0.0
        %1539 = vmatpush1.msra.mxu0 0.0
        %1540 = vmatprep.subr.mxu0 0.0
        %1541 = vmatpush1.msra.mxu0 0.0
        %1542 = vmatprep.mubr.f32.mxu0 %v1334
        %1543 = vmatmul.mubr.f32.gmra.mrb[0].mxu0 %v1324
        %v1544 = vpop.f32.mrb[0].mxu0
        %v1545 = vadd.f32 %v1330, %v1544
        %v1546 = vpop.f32.mrb[0].mxu0
        %v1547 = vadd.f32 %v1330, %v1546
        %1548 = vdwg.mxu0
        %1549 = vmatprep.subr.mxu0 0.0
        %1550 = vmatpush1.msra.mxu0 %v288
        %1551 = vmatprep.subr.mxu0 0.0
        %1552 = vmatpush1.msra.mxu0 %v329
        %1553 = vmatprep.subr.mxu0 0.0
        %1554 = vmatpush1.msra.mxu0 %v360
        %1555 = vmatprep.subr.mxu0 0.0
        %1556 = vmatpush1.msra.mxu0 %v391
        %1557 = vmatprep.subr.mxu0 0.0
        %1558 = vmatpush1.msra.mxu0 %v422
        %1559 = vmatprep.subr.mxu0 0.0
        %1560 = vmatpush1.msra.mxu0 %v453
        %1561 = vmatprep.subr.mxu0 0.0
        %1562 = vmatpush1.msra.mxu0 %v484
        %1563 = vmatprep.subr.mxu0 0.0
        %1564 = vmatpush1.msra.mxu0 %v515
        %1565 = vmatprep.subr.mxu0 0.0
        %1566 = vmatpush1.msra.mxu0 %v546
        %1567 = vmatprep.subr.mxu0 0.0
        %1568 = vmatpush1.msra.mxu0 %v577
        %1569 = vmatprep.subr.mxu0 0.0
        %1570 = vmatpush1.msra.mxu0 %v608
        %1571 = vmatprep.subr.mxu0 0.0
        %1572 = vmatpush1.msra.mxu0 %v639
        %1573 = vmatprep.subr.mxu0 0.0
        %1574 = vmatpush1.msra.mxu0 %v670
        %1575 = vmatprep.subr.mxu0 0.0
        %1576 = vmatpush1.msra.mxu0 %v701
        %1577 = vmatprep.subr.mxu0 0.0
        %1578 = vmatpush1.msra.mxu0 %v732
        %1579 = vmatprep.subr.mxu0 0.0
        %1580 = vmatpush1.msra.mxu0 %v763
        %1581 = vmatprep.subr.mxu0 0.0
        %1582 = vmatpush1.msra.mxu0 %v1176
        %1583 = vmatprep.subr.mxu0 0.0
        %1584 = vmatpush1.msra.mxu0 %v1183
        %1585 = vmatprep.subr.mxu0 0.0
        %1586 = vmatpush1.msra.mxu0 %v1190
        %1587 = vmatprep.subr.mxu0 0.0
        %1588 = vmatpush1.msra.mxu0 %v1197
        %1589 = vmatprep.subr.mxu0 0.0
        %1590 = vmatpush1.msra.mxu0 %v1204
        %1591 = vmatprep.subr.mxu0 0.0
        %1592 = vmatpush1.msra.mxu0 %v1211
        %1593 = vmatprep.subr.mxu0 0.0
        %1594 = vmatpush1.msra.mxu0 %v1218
        %1595 = vmatprep.subr.mxu0 0.0
        %1596 = vmatpush1.msra.mxu0 %v1225
        %1597 = vmatprep.subr.mxu0 0.0
        %1598 = vmatpush1.msra.mxu0 %v1232
        %1599 = vmatprep.subr.mxu0 0.0
        %1600 = vmatpush1.msra.mxu0 %v1239
        %1601 = vmatprep.subr.mxu0 0.0
        %1602 = vmatpush1.msra.mxu0 %v1246
        %1603 = vmatprep.subr.mxu0 0.0
        %1604 = vmatpush1.msra.mxu0 0.0
        %1605 = vmatprep.subr.mxu0 0.0
        %1606 = vmatpush1.msra.mxu0 0.0
        %1607 = vmatprep.subr.mxu0 0.0
        %1608 = vmatpush1.msra.mxu0 0.0
        %1609 = vmatprep.subr.mxu0 0.0
        %1610 = vmatpush1.msra.mxu0 0.0
        %1611 = vmatprep.subr.mxu0 0.0
        %1612 = vmatpush1.msra.mxu0 0.0
        %1613 = vmatprep.mubr.f32.mxu0 %v1334
        %1614 = vmatmul.mubr.f32.gmra.mrb[0].mxu0 %v1324
        %v1615 = vpop.f32.mrb[0].mxu0
        %v1616 = vadd.f32 %v1330, %v1615
        %v1617 = vpop.f32.mrb[0].mxu0
        %1618 = vdwg.mxu0
        %v1620 = vlaneseq
        %v1621 = vshrl.u32 %v1620, 7
        %v1622 = vsub.s32 0, %v1621
        %v1623 = vrot.slane %v281, %v1622
        %v1624 = vlaneseq
        %v1625 = vshrl.u32 %v1624, 7
        %v1626 = vsub.s32 1, %v1625
        %v1627 = vrot.slane %v281, %v1626
        %v1628 = vlaneseq
        %v1629 = vshrl.u32 %v1628, 7
        %v1630 = vsub.s32 2, %v1629
        %v1631 = vrot.slane %v281, %v1630
        %v1632 = vlaneseq
        %v1633 = vshrl.u32 %v1632, 7
        %v1634 = vsub.s32 3, %v1633
        %v1635 = vrot.slane %v281, %v1634
        %v1636 = vlaneseq
        %v1637 = vshrl.u32 %v1636, 7
        %v1638 = vsub.s32 4, %v1637
        %v1639 = vrot.slane %v281, %v1638
        %v1640 = vlaneseq
        %v1641 = vshrl.u32 %v1640, 7
        %v1642 = vsub.s32 5, %v1641
        %v1643 = vrot.slane %v281, %v1642
        %v1644 = vlaneseq
        %v1645 = vshrl.u32 %v1644, 7
        %v1646 = vsub.s32 6, %v1645
        %v1647 = vrot.slane %v281, %v1646
        %v1655 = vmul.f32 %v1403, %v1623
        %v1656 = vmul.f32 %v1405, %v1627
        %v1657 = vmul.f32 %v1474, %v1631
        %v1658 = vmul.f32 %v1476, %v1635
        %v1659 = vmul.f32 %v1545, %v1639
        %v1660 = vmul.f32 %v1547, %v1643
        %v1661 = vmul.f32 %v1616, %v1647
        %v1662 = vadd.f32 %v1655, %v1656
        %v1663 = vadd.f32 %v1662, %v1657
        %v1664 = vadd.f32 %v1663, %v1658
        %v1665 = vadd.f32 %v1664, %v1659
        %v1666 = vadd.f32 %v1665, %v1660
        %v1667 = vadd.f32 %v1666, %v1661
        %1668 = vadd.xlane.f32.xlu0 %v1667
        %v1669 = vpop.xlane.xlu0 %1668
        %v1670 = vmul.f32 %v1669, 0.001953125
        %v1671 = vmul.f32 %v1655, %v1655
        %v1672 = vmul.f32 %v1656, %v1656
        %v1673 = vmul.f32 %v1657, %v1657
        %v1674 = vmul.f32 %v1658, %v1658
        %v1675 = vmul.f32 %v1659, %v1659
        %v1676 = vmul.f32 %v1660, %v1660
        %v1677 = vmul.f32 %v1661, %v1661
        %v1678 = vadd.f32 %v1671, %v1672
        %v1679 = vadd.f32 %v1678, %v1673
        %v1680 = vadd.f32 %v1679, %v1674
        %v1681 = vadd.f32 %v1680, %v1675
        %v1682 = vadd.f32 %v1681, %v1676
        %v1683 = vadd.f32 %v1682, %v1677
        %1684 = vadd.xlane.f32.xlu0 %v1683
        %v1685 = vpop.xlane.xlu0 %1684
        %v1686 = vmul.f32 %v1685, 0.001953125
        %v1687 = vmul.f32 %v1670, %v1670
        %v1688 = vsub.f32 %v1686, %v1687
        %v1689 = vmax.f32 %v1688, 0.0
        %v1690 = vsub.f32 %v1403, %v1670
        %v1691 = vsub.f32 %v1405, %v1670
        %v1692 = vsub.f32 %v1474, %v1670
        %v1693 = vsub.f32 %v1476, %v1670
        %v1694 = vsub.f32 %v1545, %v1670
        %v1695 = vsub.f32 %v1547, %v1670
        %v1696 = vsub.f32 %v1616, %v1670
        %v1697 = vadd.f32 %v1689, 1e-05
        %v1698 = vrsqrt.pop %v1697
        %v1699 = vmul.f32 %v1690, %v1698
        %v1700 = vmul.f32 %v1691, %v1698
        %v1701 = vmul.f32 %v1692, %v1698
        %v1702 = vmul.f32 %v1693, %v1698
        %v1703 = vmul.f32 %v1694, %v1698
        %v1704 = vmul.f32 %v1695, %v1698
        %v1705 = vmul.f32 %v1696, %v1698
        %v1706 = vmax.f32 %v1699, 0.0
        %v1707 = vmax.f32 %v1700, 0.0
        %v1708 = vmax.f32 %v1701, 0.0
        %v1709 = vmax.f32 %v1702, 0.0
        %v1710 = vmax.f32 %v1703, 0.0
        %v1711 = vmax.f32 %v1704, 0.0
        %v1712 = vmax.f32 %v1705, 0.0
        %v1713 = vmul.f32 %v1706, %v1623
        %v1714 = vmul.f32 %v1707, %v1627
        %v1715 = vmul.f32 %v1708, %v1631
        %v1716 = vmul.f32 %v1709, %v1635
        %v1717 = vmul.f32 %v1710, %v1639
        %v1718 = vmul.f32 %v1711, %v1643
        %v1719 = vmul.f32 %v1712, %v1647
        %1720 = vst [vmem:[#allocation2] sm:$0xff] 0.0
        %1721 = vst [vmem:[#allocation2 + $0x40] sm:$0xff] 0.0
        %1722 = vst [vmem:[#allocation2 + $0x8] sm:$0xff] %v1713
        %1723 = vst [vmem:[#allocation2 + $0x10] sm:$0xff] %v1714
        %1724 = vst [vmem:[#allocation2 + $0x18] sm:$0xff] %v1715
        %1725 = vst [vmem:[#allocation2 + $0x20] sm:$0xff] %v1716
        %1726 = vst [vmem:[#allocation2 + $0x28] sm:$0xff] %v1717
        %1727 = vst [vmem:[#allocation2 + $0x30] sm:$0xff] %v1718
        %1728 = vst [vmem:[#allocation2 + $0x38] sm:$0xff] %v1719
        %v1729 = vld [vmem:[#allocation2] sm:$0xff]
        %v1730 = vld [vmem:[#allocation2 + $0x8] sm:$0xff]
        %v1731 = vld [vmem:[#allocation2 + $0x10] sm:$0xff]
        %v1732 = vld [vmem:[#allocation2 + $0x18] sm:$0xff]
        %v1733 = vld [vmem:[#allocation2 + $0x20] sm:$0xff]
        %v1734 = vld [vmem:[#allocation2 + $0x28] sm:$0xff]
        %v1735 = vld [vmem:[#allocation2 + $0x30] sm:$0xff]
        %v1736 = vld [vmem:[#allocation2 + $0x38] sm:$0xff]
        %v1737 = vld [vmem:[#allocation2 + $0x8] sm:$0xff]
        %v1738 = vld [vmem:[#allocation2 + $0x10] sm:$0xff]
        %v1739 = vld [vmem:[#allocation2 + $0x18] sm:$0xff]
        %v1740 = vld [vmem:[#allocation2 + $0x20] sm:$0xff]
        %v1741 = vld [vmem:[#allocation2 + $0x28] sm:$0xff]
        %v1742 = vld [vmem:[#allocation2 + $0x30] sm:$0xff]
        %v1743 = vld [vmem:[#allocation2 + $0x38] sm:$0xff]
        %v1744 = vld [vmem:[#allocation2 + $0x40] sm:$0xff]
        %1753 = vrot.lane.b32.xlu0 %v1729, 127
        %v1754 = vpop.permute.xlu0 %1753
        %1755 = vrot.lane.b32.xlu0 %v1730, 127
        %v1756 = vpop.permute.xlu0 %1755
        %1757 = vrot.lane.b32.xlu0 %v1731, 127
        %v1758 = vpop.permute.xlu0 %1757
        %1759 = vrot.lane.b32.xlu0 %v1732, 127
        %v1760 = vpop.permute.xlu0 %1759
        %1761 = vrot.lane.b32.xlu0 %v1733, 127
        %v1762 = vpop.permute.xlu0 %1761
        %1763 = vrot.lane.b32.xlu0 %v1734, 127
        %v1764 = vpop.permute.xlu0 %1763
        %1765 = vrot.lane.b32.xlu0 %v1735, 127
        %v1766 = vpop.permute.xlu0 %1765
        %1767 = vrot.lane.b32.xlu0 %v1736, 127
        %v1768 = vpop.permute.xlu0 %1767
        %v1769 = vsel %vm322, %v1754, %v1756
        %v1770 = vsel %vm322, %v1756, %v1758
        %v1771 = vsel %vm322, %v1758, %v1760
        %v1772 = vsel %vm322, %v1760, %v1762
        %v1773 = vsel %vm322, %v1762, %v1764
        %v1774 = vsel %vm322, %v1764, %v1766
        %v1775 = vsel %vm322, %v1766, %v1768
        %1776 = vrot.lane.b32.xlu0 %v1729, 126
        %v1777 = vpop.permute.xlu0 %1776
        %1778 = vrot.lane.b32.xlu0 %v1730, 126
        %v1779 = vpop.permute.xlu0 %1778
        %1780 = vrot.lane.b32.xlu0 %v1731, 126
        %v1781 = vpop.permute.xlu0 %1780
        %1782 = vrot.lane.b32.xlu0 %v1732, 126
        %v1783 = vpop.permute.xlu0 %1782
        %1784 = vrot.lane.b32.xlu0 %v1733, 126
        %v1785 = vpop.permute.xlu0 %1784
        %1786 = vrot.lane.b32.xlu0 %v1734, 126
        %v1787 = vpop.permute.xlu0 %1786
        %1788 = vrot.lane.b32.xlu0 %v1735, 126
        %v1789 = vpop.permute.xlu0 %1788
        %1790 = vrot.lane.b32.xlu0 %v1736, 126
        %v1791 = vpop.permute.xlu0 %1790
        %v1792 = vsel %vm353, %v1777, %v1779
        %v1793 = vsel %vm353, %v1779, %v1781
        %v1794 = vsel %vm353, %v1781, %v1783
        %v1795 = vsel %vm353, %v1783, %v1785
        %v1796 = vsel %vm353, %v1785, %v1787
        %v1797 = vsel %vm353, %v1787, %v1789
        %v1798 = vsel %vm353, %v1789, %v1791
        %1799 = vrot.lane.b32.xlu0 %v1729, 118
        %v1800 = vpop.permute.xlu0 %1799
        %1801 = vrot.lane.b32.xlu0 %v1730, 118
        %v1802 = vpop.permute.xlu0 %1801
        %1803 = vrot.lane.b32.xlu0 %v1731, 118
        %v1804 = vpop.permute.xlu0 %1803
        %1805 = vrot.lane.b32.xlu0 %v1732, 118
        %v1806 = vpop.permute.xlu0 %1805
        %1807 = vrot.lane.b32.xlu0 %v1733, 118
        %v1808 = vpop.permute.xlu0 %1807
        %1809 = vrot.lane.b32.xlu0 %v1734, 118
        %v1810 = vpop.permute.xlu0 %1809
        %1811 = vrot.lane.b32.xlu0 %v1735, 118
        %v1812 = vpop.permute.xlu0 %1811
        %1813 = vrot.lane.b32.xlu0 %v1736, 118
        %v1814 = vpop.permute.xlu0 %1813
        %v1815 = vsel %vm384, %v1800, %v1802
        %v1816 = vsel %vm384, %v1802, %v1804
        %v1817 = vsel %vm384, %v1804, %v1806
        %v1818 = vsel %vm384, %v1806, %v1808
        %v1819 = vsel %vm384, %v1808, %v1810
        %v1820 = vsel %vm384, %v1810, %v1812
        %v1821 = vsel %vm384, %v1812, %v1814
        %1822 = vrot.lane.b32.xlu0 %v1729, 117
        %v1823 = vpop.permute.xlu0 %1822
        %1824 = vrot.lane.b32.xlu0 %v1730, 117
        %v1825 = vpop.permute.xlu0 %1824
        %1826 = vrot.lane.b32.xlu0 %v1731, 117
        %v1827 = vpop.permute.xlu0 %1826
        %1828 = vrot.lane.b32.xlu0 %v1732, 117
        %v1829 = vpop.permute.xlu0 %1828
        %1830 = vrot.lane.b32.xlu0 %v1733, 117
        %v1831 = vpop.permute.xlu0 %1830
        %1832 = vrot.lane.b32.xlu0 %v1734, 117
        %v1833 = vpop.permute.xlu0 %1832
        %1834 = vrot.lane.b32.xlu0 %v1735, 117
        %v1835 = vpop.permute.xlu0 %1834
        %1836 = vrot.lane.b32.xlu0 %v1736, 117
        %v1837 = vpop.permute.xlu0 %1836
        %v1838 = vsel %vm415, %v1823, %v1825
        %v1839 = vsel %vm415, %v1825, %v1827
        %v1840 = vsel %vm415, %v1827, %v1829
        %v1841 = vsel %vm415, %v1829, %v1831
        %v1842 = vsel %vm415, %v1831, %v1833
        %v1843 = vsel %vm415, %v1833, %v1835
        %v1844 = vsel %vm415, %v1835, %v1837
        %1845 = vrot.lane.b32.xlu0 %v1729, 116
        %v1846 = vpop.permute.xlu0 %1845
        %1847 = vrot.lane.b32.xlu0 %v1730, 116
        %v1848 = vpop.permute.xlu0 %1847
        %1849 = vrot.lane.b32.xlu0 %v1731, 116
        %v1850 = vpop.permute.xlu0 %1849
        %1851 = vrot.lane.b32.xlu0 %v1732, 116
        %v1852 = vpop.permute.xlu0 %1851
        %1853 = vrot.lane.b32.xlu0 %v1733, 116
        %v1854 = vpop.permute.xlu0 %1853
        %1855 = vrot.lane.b32.xlu0 %v1734, 116
        %v1856 = vpop.permute.xlu0 %1855
        %1857 = vrot.lane.b32.xlu0 %v1735, 116
        %v1858 = vpop.permute.xlu0 %1857
        %1859 = vrot.lane.b32.xlu0 %v1736, 116
        %v1860 = vpop.permute.xlu0 %1859
        %v1861 = vsel %vm446, %v1846, %v1848
        %v1862 = vsel %vm446, %v1848, %v1850
        %v1863 = vsel %vm446, %v1850, %v1852
        %v1864 = vsel %vm446, %v1852, %v1854
        %v1865 = vsel %vm446, %v1854, %v1856
        %v1866 = vsel %vm446, %v1856, %v1858
        %v1867 = vsel %vm446, %v1858, %v1860
        %1868 = vrot.lane.b32.xlu0 %v1729, 108
        %v1869 = vpop.permute.xlu0 %1868
        %1870 = vrot.lane.b32.xlu0 %v1730, 108
        %v1871 = vpop.permute.xlu0 %1870
        %1872 = vrot.lane.b32.xlu0 %v1731, 108
        %v1873 = vpop.permute.xlu0 %1872
        %1874 = vrot.lane.b32.xlu0 %v1732, 108
        %v1875 = vpop.permute.xlu0 %1874
        %1876 = vrot.lane.b32.xlu0 %v1733, 108
        %v1877 = vpop.permute.xlu0 %1876
        %1878 = vrot.lane.b32.xlu0 %v1734, 108
        %v1879 = vpop.permute.xlu0 %1878
        %1880 = vrot.lane.b32.xlu0 %v1735, 108
        %v1881 = vpop.permute.xlu0 %1880
        %1882 = vrot.lane.b32.xlu0 %v1736, 108
        %v1883 = vpop.permute.xlu0 %1882
        %v1884 = vsel %vm477, %v1869, %v1871
        %v1885 = vsel %vm477, %v1871, %v1873
        %v1886 = vsel %vm477, %v1873, %v1875
        %v1887 = vsel %vm477, %v1875, %v1877
        %v1888 = vsel %vm477, %v1877, %v1879
        %v1889 = vsel %vm477, %v1879, %v1881
        %v1890 = vsel %vm477, %v1881, %v1883
        %1891 = vrot.lane.b32.xlu0 %v1729, 107
        %v1892 = vpop.permute.xlu0 %1891
        %1893 = vrot.lane.b32.xlu0 %v1730, 107
        %v1894 = vpop.permute.xlu0 %1893
        %1895 = vrot.lane.b32.xlu0 %v1731, 107
        %v1896 = vpop.permute.xlu0 %1895
        %1897 = vrot.lane.b32.xlu0 %v1732, 107
        %v1898 = vpop.permute.xlu0 %1897
        %1899 = vrot.lane.b32.xlu0 %v1733, 107
        %v1900 = vpop.permute.xlu0 %1899
        %1901 = vrot.lane.b32.xlu0 %v1734, 107
        %v1902 = vpop.permute.xlu0 %1901
        %1903 = vrot.lane.b32.xlu0 %v1735, 107
        %v1904 = vpop.permute.xlu0 %1903
        %1905 = vrot.lane.b32.xlu0 %v1736, 107
        %v1906 = vpop.permute.xlu0 %1905
        %v1907 = vsel %vm508, %v1892, %v1894
        %v1908 = vsel %vm508, %v1894, %v1896
        %v1909 = vsel %vm508, %v1896, %v1898
        %v1910 = vsel %vm508, %v1898, %v1900
        %v1911 = vsel %vm508, %v1900, %v1902
        %v1912 = vsel %vm508, %v1902, %v1904
        %v1913 = vsel %vm508, %v1904, %v1906
        %1914 = vrot.lane.b32.xlu0 %v1729, 106
        %v1915 = vpop.permute.xlu0 %1914
        %1916 = vrot.lane.b32.xlu0 %v1730, 106
        %v1917 = vpop.permute.xlu0 %1916
        %1918 = vrot.lane.b32.xlu0 %v1731, 106
        %v1919 = vpop.permute.xlu0 %1918
        %1920 = vrot.lane.b32.xlu0 %v1732, 106
        %v1921 = vpop.permute.xlu0 %1920
        %1922 = vrot.lane.b32.xlu0 %v1733, 106
        %v1923 = vpop.permute.xlu0 %1922
        %1924 = vrot.lane.b32.xlu0 %v1734, 106
        %v1925 = vpop.permute.xlu0 %1924
        %1926 = vrot.lane.b32.xlu0 %v1735, 106
        %v1927 = vpop.permute.xlu0 %1926
        %1928 = vrot.lane.b32.xlu0 %v1736, 106
        %v1929 = vpop.permute.xlu0 %1928
        %v1930 = vsel %vm539, %v1915, %v1917
        %v1931 = vsel %vm539, %v1917, %v1919
        %v1932 = vsel %vm539, %v1919, %v1921
        %v1933 = vsel %vm539, %v1921, %v1923
        %v1934 = vsel %vm539, %v1923, %v1925
        %v1935 = vsel %vm539, %v1925, %v1927
        %v1936 = vsel %vm539, %v1927, %v1929
        %1937 = vrot.lane.b32.xlu0 %v1729, 28
        %v1938 = vpop.permute.xlu0 %1937
        %1939 = vrot.lane.b32.xlu0 %v1730, 28
        %v1940 = vpop.permute.xlu0 %1939
        %1941 = vrot.lane.b32.xlu0 %v1731, 28
        %v1942 = vpop.permute.xlu0 %1941
        %1943 = vrot.lane.b32.xlu0 %v1732, 28
        %v1944 = vpop.permute.xlu0 %1943
        %1945 = vrot.lane.b32.xlu0 %v1733, 28
        %v1946 = vpop.permute.xlu0 %1945
        %1947 = vrot.lane.b32.xlu0 %v1734, 28
        %v1948 = vpop.permute.xlu0 %1947
        %1949 = vrot.lane.b32.xlu0 %v1735, 28
        %v1950 = vpop.permute.xlu0 %1949
        %1951 = vrot.lane.b32.xlu0 %v1736, 28
        %v1952 = vpop.permute.xlu0 %1951
        %v1953 = vsel %vm570, %v1938, %v1940
        %v1954 = vsel %vm570, %v1940, %v1942
        %v1955 = vsel %vm570, %v1942, %v1944
        %v1956 = vsel %vm570, %v1944, %v1946
        %v1957 = vsel %vm570, %v1946, %v1948
        %v1958 = vsel %vm570, %v1948, %v1950
        %v1959 = vsel %vm570, %v1950, %v1952
        %1960 = vrot.lane.b32.xlu0 %v1729, 27
        %v1961 = vpop.permute.xlu0 %1960
        %1962 = vrot.lane.b32.xlu0 %v1730, 27
        %v1963 = vpop.permute.xlu0 %1962
        %1964 = vrot.lane.b32.xlu0 %v1731, 27
        %v1965 = vpop.permute.xlu0 %1964
        %1966 = vrot.lane.b32.xlu0 %v1732, 27
        %v1967 = vpop.permute.xlu0 %1966
        %1968 = vrot.lane.b32.xlu0 %v1733, 27
        %v1969 = vpop.permute.xlu0 %1968
        %1970 = vrot.lane.b32.xlu0 %v1734, 27
        %v1971 = vpop.permute.xlu0 %1970
        %1972 = vrot.lane.b32.xlu0 %v1735, 27
        %v1973 = vpop.permute.xlu0 %1972
        %1974 = vrot.lane.b32.xlu0 %v1736, 27
        %v1975 = vpop.permute.xlu0 %1974
        %v1976 = vsel %vm601, %v1961, %v1963
        %v1977 = vsel %vm601, %v1963, %v1965
        %v1978 = vsel %vm601, %v1965, %v1967
        %v1979 = vsel %vm601, %v1967, %v1969
        %v1980 = vsel %vm601, %v1969, %v1971
        %v1981 = vsel %vm601, %v1971, %v1973
        %v1982 = vsel %vm601, %v1973, %v1975
        %1983 = vrot.lane.b32.xlu0 %v1729, 26
        %v1984 = vpop.permute.xlu0 %1983
        %1985 = vrot.lane.b32.xlu0 %v1730, 26
        %v1986 = vpop.permute.xlu0 %1985
        %1987 = vrot.lane.b32.xlu0 %v1731, 26
        %v1988 = vpop.permute.xlu0 %1987
        %1989 = vrot.lane.b32.xlu0 %v1732, 26
        %v1990 = vpop.permute.xlu0 %1989
        %1991 = vrot.lane.b32.xlu0 %v1733, 26
        %v1992 = vpop.permute.xlu0 %1991
        %1993 = vrot.lane.b32.xlu0 %v1734, 26
        %v1994 = vpop.permute.xlu0 %1993
        %1995 = vrot.lane.b32.xlu0 %v1735, 26
        %v1996 = vpop.permute.xlu0 %1995
        %1997 = vrot.lane.b32.xlu0 %v1736, 26
        %v1998 = vpop.permute.xlu0 %1997
        %v1999 = vsel %vm632, %v1984, %v1986
        %v2000 = vsel %vm632, %v1986, %v1988
        %v2001 = vsel %vm632, %v1988, %v1990
        %v2002 = vsel %vm632, %v1990, %v1992
        %v2003 = vsel %vm632, %v1992, %v1994
        %v2004 = vsel %vm632, %v1994, %v1996
        %v2005 = vsel %vm632, %v1996, %v1998
        %2006 = vrot.lane.b32.xlu0 %v1729, 18
        %v2007 = vpop.permute.xlu0 %2006
        %2008 = vrot.lane.b32.xlu0 %v1730, 18
        %v2009 = vpop.permute.xlu0 %2008
        %2010 = vrot.lane.b32.xlu0 %v1731, 18
        %v2011 = vpop.permute.xlu0 %2010
        %2012 = vrot.lane.b32.xlu0 %v1732, 18
        %v2013 = vpop.permute.xlu0 %2012
        %2014 = vrot.lane.b32.xlu0 %v1733, 18
        %v2015 = vpop.permute.xlu0 %2014
        %2016 = vrot.lane.b32.xlu0 %v1734, 18
        %v2017 = vpop.permute.xlu0 %2016
        %2018 = vrot.lane.b32.xlu0 %v1735, 18
        %v2019 = vpop.permute.xlu0 %2018
        %2020 = vrot.lane.b32.xlu0 %v1736, 18
        %v2021 = vpop.permute.xlu0 %2020
        %v2022 = vsel %vm663, %v2007, %v2009
        %v2023 = vsel %vm663, %v2009, %v2011
        %v2024 = vsel %vm663, %v2011, %v2013
        %v2025 = vsel %vm663, %v2013, %v2015
        %v2026 = vsel %vm663, %v2015, %v2017
        %v2027 = vsel %vm663, %v2017, %v2019
        %v2028 = vsel %vm663, %v2019, %v2021
        %2029 = vrot.lane.b32.xlu0 %v1730, 17
        %v2030 = vpop.permute.xlu0 %2029
        %2031 = vrot.lane.b32.xlu0 %v1731, 17
        %v2032 = vpop.permute.xlu0 %2031
        %2033 = vrot.lane.b32.xlu0 %v1732, 17
        %v2034 = vpop.permute.xlu0 %2033
        %2035 = vrot.lane.b32.xlu0 %v1733, 17
        %v2036 = vpop.permute.xlu0 %2035
        %2037 = vrot.lane.b32.xlu0 %v1734, 17
        %v2038 = vpop.permute.xlu0 %2037
        %2039 = vrot.lane.b32.xlu0 %v1735, 17
        %v2040 = vpop.permute.xlu0 %2039
        %2041 = vrot.lane.b32.xlu0 %v1736, 17
        %v2042 = vpop.permute.xlu0 %2041
        %v2043 = vsel %vm694, %v2030, %v2032
        %v2044 = vsel %vm694, %v2032, %v2034
        %v2045 = vsel %vm694, %v2034, %v2036
        %v2046 = vsel %vm694, %v2036, %v2038
        %v2047 = vsel %vm694, %v2038, %v2040
        %v2048 = vsel %vm694, %v2040, %v2042
        %2057 = vrot.lane.b32.xlu0 %v1737, 16
        %v2058 = vpop.permute.xlu0 %2057
        %2059 = vrot.lane.b32.xlu0 %v1738, 16
        %v2060 = vpop.permute.xlu0 %2059
        %2061 = vrot.lane.b32.xlu0 %v1739, 16
        %v2062 = vpop.permute.xlu0 %2061
        %2063 = vrot.lane.b32.xlu0 %v1740, 16
        %v2064 = vpop.permute.xlu0 %2063
        %2065 = vrot.lane.b32.xlu0 %v1741, 16
        %v2066 = vpop.permute.xlu0 %2065
        %2067 = vrot.lane.b32.xlu0 %v1742, 16
        %v2068 = vpop.permute.xlu0 %2067
        %2069 = vrot.lane.b32.xlu0 %v1743, 16
        %v2070 = vpop.permute.xlu0 %2069
        %2071 = vrot.lane.b32.xlu0 %v1744, 16
        %v2072 = vpop.permute.xlu0 %2071
        %v2073 = vsel %vm725, %v2058, %v2060
        %v2074 = vsel %vm725, %v2060, %v2062
        %v2075 = vsel %vm725, %v2062, %v2064
        %v2076 = vsel %vm725, %v2064, %v2066
        %v2077 = vsel %vm725, %v2066, %v2068
        %v2078 = vsel %vm725, %v2068, %v2070
        %v2079 = vsel %vm725, %v2070, %v2072
        %2080 = vrot.lane.b32.xlu0 %v1737, 8
        %v2081 = vpop.permute.xlu0 %2080
        %2082 = vrot.lane.b32.xlu0 %v1738, 8
        %v2083 = vpop.permute.xlu0 %2082
        %2084 = vrot.lane.b32.xlu0 %v1739, 8
        %v2085 = vpop.permute.xlu0 %2084
        %2086 = vrot.lane.b32.xlu0 %v1740, 8
        %v2087 = vpop.permute.xlu0 %2086
        %2088 = vrot.lane.b32.xlu0 %v1741, 8
        %v2089 = vpop.permute.xlu0 %2088
        %2090 = vrot.lane.b32.xlu0 %v1742, 8
        %v2091 = vpop.permute.xlu0 %2090
        %2092 = vrot.lane.b32.xlu0 %v1743, 8
        %v2093 = vpop.permute.xlu0 %2092
        %2094 = vrot.lane.b32.xlu0 %v1744, 8
        %v2095 = vpop.permute.xlu0 %2094
        %v2096 = vsel %vm756, %v2081, %v2083
        %v2097 = vsel %vm756, %v2083, %v2085
        %v2098 = vsel %vm756, %v2085, %v2087
        %v2099 = vsel %vm756, %v2087, %v2089
        %v2100 = vsel %vm756, %v2089, %v2091
        %v2101 = vsel %vm756, %v2091, %v2093
        %v2102 = vsel %vm756, %v2093, %v2095
        %2103 = vrot.lane.b32.xlu0 %v1737, 127
        %v2104 = vpop.permute.xlu0 %2103
        %2105 = vrot.lane.b32.xlu0 %v1738, 127
        %v2106 = vpop.permute.xlu0 %2105
        %2107 = vrot.lane.b32.xlu0 %v1739, 127
        %v2108 = vpop.permute.xlu0 %2107
        %2109 = vrot.lane.b32.xlu0 %v1740, 127
        %v2110 = vpop.permute.xlu0 %2109
        %2111 = vrot.lane.b32.xlu0 %v1741, 127
        %v2112 = vpop.permute.xlu0 %2111
        %2113 = vrot.lane.b32.xlu0 %v1742, 127
        %v2114 = vpop.permute.xlu0 %2113
        %2115 = vrot.lane.b32.xlu0 %v1743, 127
        %v2116 = vpop.permute.xlu0 %2115
        %2117 = vrot.lane.b32.xlu0 %v1744, 127
        %v2118 = vpop.permute.xlu0 %2117
        %v2119 = vsel %vm322, %v2104, %v2106
        %v2120 = vsel %vm322, %v2106, %v2108
        %v2121 = vsel %vm322, %v2108, %v2110
        %v2122 = vsel %vm322, %v2110, %v2112
        %v2123 = vsel %vm322, %v2112, %v2114
        %v2124 = vsel %vm322, %v2114, %v2116
        %v2125 = vsel %vm322, %v2116, %v2118
        %2126 = vrot.lane.b32.xlu0 %v1737, 49
        %v2127 = vpop.permute.xlu0 %2126
        %2128 = vrot.lane.b32.xlu0 %v1738, 49
        %v2129 = vpop.permute.xlu0 %2128
        %2130 = vrot.lane.b32.xlu0 %v1739, 49
        %v2131 = vpop.permute.xlu0 %2130
        %2132 = vrot.lane.b32.xlu0 %v1740, 49
        %v2133 = vpop.permute.xlu0 %2132
        %2134 = vrot.lane.b32.xlu0 %v1741, 49
        %v2135 = vpop.permute.xlu0 %2134
        %2136 = vrot.lane.b32.xlu0 %v1742, 49
        %v2137 = vpop.permute.xlu0 %2136
        %2138 = vrot.lane.b32.xlu0 %v1743, 49
        %v2139 = vpop.permute.xlu0 %2138
        %2140 = vrot.lane.b32.xlu0 %v1744, 49
        %v2141 = vpop.permute.xlu0 %2140
        %v2142 = vsel %vm795, %v2127, %v2129
        %v2143 = vsel %vm795, %v2129, %v2131
        %v2144 = vsel %vm795, %v2131, %v2133
        %v2145 = vsel %vm795, %v2133, %v2135
        %v2146 = vsel %vm795, %v2135, %v2137
        %v2147 = vsel %vm795, %v2137, %v2139
        %v2148 = vsel %vm795, %v2139, %v2141
        %2149 = vrot.lane.b32.xlu0 %v1737, 48
        %v2150 = vpop.permute.xlu0 %2149
        %2151 = vrot.lane.b32.xlu0 %v1738, 48
        %v2152 = vpop.permute.xlu0 %2151
        %2153 = vrot.lane.b32.xlu0 %v1739, 48
        %v2154 = vpop.permute.xlu0 %2153
        %2155 = vrot.lane.b32.xlu0 %v1740, 48
        %v2156 = vpop.permute.xlu0 %2155
        %2157 = vrot.lane.b32.xlu0 %v1741, 48
        %v2158 = vpop.permute.xlu0 %2157
        %2159 = vrot.lane.b32.xlu0 %v1742, 48
        %v2160 = vpop.permute.xlu0 %2159
        %2161 = vrot.lane.b32.xlu0 %v1743, 48
        %v2162 = vpop.permute.xlu0 %2161
        %2163 = vrot.lane.b32.xlu0 %v1744, 48
        %v2164 = vpop.permute.xlu0 %2163
        %v2165 = vsel %vm819, %v2150, %v2152
        %v2166 = vsel %vm819, %v2152, %v2154
        %v2167 = vsel %vm819, %v2154, %v2156
        %v2168 = vsel %vm819, %v2156, %v2158
        %v2169 = vsel %vm819, %v2158, %v2160
        %v2170 = vsel %vm819, %v2160, %v2162
        %v2171 = vsel %vm819, %v2162, %v2164
        %2172 = vrot.lane.b32.xlu0 %v1737, 47
        %v2173 = vpop.permute.xlu0 %2172
        %2174 = vrot.lane.b32.xlu0 %v1738, 47
        %v2175 = vpop.permute.xlu0 %2174
        %2176 = vrot.lane.b32.xlu0 %v1739, 47
        %v2177 = vpop.permute.xlu0 %2176
        %2178 = vrot.lane.b32.xlu0 %v1740, 47
        %v2179 = vpop.permute.xlu0 %2178
        %2180 = vrot.lane.b32.xlu0 %v1741, 47
        %v2181 = vpop.permute.xlu0 %2180
        %2182 = vrot.lane.b32.xlu0 %v1742, 47
        %v2183 = vpop.permute.xlu0 %2182
        %2184 = vrot.lane.b32.xlu0 %v1743, 47
        %v2185 = vpop.permute.xlu0 %2184
        %2186 = vrot.lane.b32.xlu0 %v1744, 47
        %v2187 = vpop.permute.xlu0 %2186
        %v2188 = vsel %vm843, %v2173, %v2175
        %v2189 = vsel %vm843, %v2175, %v2177
        %v2190 = vsel %vm843, %v2177, %v2179
        %v2191 = vsel %vm843, %v2179, %v2181
        %v2192 = vsel %vm843, %v2181, %v2183
        %v2193 = vsel %vm843, %v2183, %v2185
        %v2194 = vsel %vm843, %v2185, %v2187
        %2195 = vrot.lane.b32.xlu0 %v1737, 39
        %v2196 = vpop.permute.xlu0 %2195
        %2197 = vrot.lane.b32.xlu0 %v1738, 39
        %v2198 = vpop.permute.xlu0 %2197
        %2199 = vrot.lane.b32.xlu0 %v1739, 39
        %v2200 = vpop.permute.xlu0 %2199
        %2201 = vrot.lane.b32.xlu0 %v1740, 39
        %v2202 = vpop.permute.xlu0 %2201
        %2203 = vrot.lane.b32.xlu0 %v1741, 39
        %v2204 = vpop.permute.xlu0 %2203
        %2205 = vrot.lane.b32.xlu0 %v1742, 39
        %v2206 = vpop.permute.xlu0 %2205
        %2207 = vrot.lane.b32.xlu0 %v1743, 39
        %v2208 = vpop.permute.xlu0 %2207
        %2209 = vrot.lane.b32.xlu0 %v1744, 39
        %v2210 = vpop.permute.xlu0 %2209
        %v2211 = vsel %vm867, %v2196, %v2198
        %v2212 = vsel %vm867, %v2198, %v2200
        %v2213 = vsel %vm867, %v2200, %v2202
        %v2214 = vsel %vm867, %v2202, %v2204
        %v2215 = vsel %vm867, %v2204, %v2206
        %v2216 = vsel %vm867, %v2206, %v2208
        %v2217 = vsel %vm867, %v2208, %v2210
        %2218 = vrot.lane.b32.xlu0 %v1737, 38
        %v2219 = vpop.permute.xlu0 %2218
        %2220 = vrot.lane.b32.xlu0 %v1738, 38
        %v2221 = vpop.permute.xlu0 %2220
        %2222 = vrot.lane.b32.xlu0 %v1739, 38
        %v2223 = vpop.permute.xlu0 %2222
        %2224 = vrot.lane.b32.xlu0 %v1740, 38
        %v2225 = vpop.permute.xlu0 %2224
        %2226 = vrot.lane.b32.xlu0 %v1741, 38
        %v2227 = vpop.permute.xlu0 %2226
        %2228 = vrot.lane.b32.xlu0 %v1742, 38
        %v2229 = vpop.permute.xlu0 %2228
        %2230 = vrot.lane.b32.xlu0 %v1743, 38
        %v2231 = vpop.permute.xlu0 %2230
        %2232 = vrot.lane.b32.xlu0 %v1744, 38
        %v2233 = vpop.permute.xlu0 %2232
        %v2234 = vsel %vm891, %v2219, %v2221
        %v2235 = vsel %vm891, %v2221, %v2223
        %v2236 = vsel %vm891, %v2223, %v2225
        %v2237 = vsel %vm891, %v2225, %v2227
        %v2238 = vsel %vm891, %v2227, %v2229
        %v2239 = vsel %vm891, %v2229, %v2231
        %v2240 = vsel %vm891, %v2231, %v2233
        %2241 = vrot.lane.b32.xlu0 %v1737, 37
        %v2242 = vpop.permute.xlu0 %2241
        %2243 = vrot.lane.b32.xlu0 %v1738, 37
        %v2244 = vpop.permute.xlu0 %2243
        %2245 = vrot.lane.b32.xlu0 %v1739, 37
        %v2246 = vpop.permute.xlu0 %2245
        %2247 = vrot.lane.b32.xlu0 %v1740, 37
        %v2248 = vpop.permute.xlu0 %2247
        %2249 = vrot.lane.b32.xlu0 %v1741, 37
        %v2250 = vpop.permute.xlu0 %2249
        %2251 = vrot.lane.b32.xlu0 %v1742, 37
        %v2252 = vpop.permute.xlu0 %2251
        %2253 = vrot.lane.b32.xlu0 %v1743, 37
        %v2254 = vpop.permute.xlu0 %2253
        %2255 = vrot.lane.b32.xlu0 %v1744, 37
        %v2256 = vpop.permute.xlu0 %2255
        %v2257 = vsel %vm915, %v2242, %v2244
        %v2258 = vsel %vm915, %v2244, %v2246
        %v2259 = vsel %vm915, %v2246, %v2248
        %v2260 = vsel %vm915, %v2248, %v2250
        %v2261 = vsel %vm915, %v2250, %v2252
        %v2262 = vsel %vm915, %v2252, %v2254
        %v2263 = vsel %vm915, %v2254, %v2256
        %2264 = vrot.lane.b32.xlu0 %v1737, 29
        %v2265 = vpop.permute.xlu0 %2264
        %2266 = vrot.lane.b32.xlu0 %v1738, 29
        %v2267 = vpop.permute.xlu0 %2266
        %2268 = vrot.lane.b32.xlu0 %v1739, 29
        %v2269 = vpop.permute.xlu0 %2268
        %2270 = vrot.lane.b32.xlu0 %v1740, 29
        %v2271 = vpop.permute.xlu0 %2270
        %2272 = vrot.lane.b32.xlu0 %v1741, 29
        %v2273 = vpop.permute.xlu0 %2272
        %2274 = vrot.lane.b32.xlu0 %v1742, 29
        %v2275 = vpop.permute.xlu0 %2274
        %2276 = vrot.lane.b32.xlu0 %v1743, 29
        %v2277 = vpop.permute.xlu0 %2276
        %2278 = vrot.lane.b32.xlu0 %v1744, 29
        %v2279 = vpop.permute.xlu0 %2278
        %v2280 = vsel %vm939, %v2265, %v2267
        %v2281 = vsel %vm939, %v2267, %v2269
        %v2282 = vsel %vm939, %v2269, %v2271
        %v2283 = vsel %vm939, %v2271, %v2273
        %v2284 = vsel %vm939, %v2273, %v2275
        %v2285 = vsel %vm939, %v2275, %v2277
        %v2286 = vsel %vm939, %v2277, %v2279
        %2287 = vrot.lane.b32.xlu0 %v1737, 28
        %v2288 = vpop.permute.xlu0 %2287
        %2289 = vrot.lane.b32.xlu0 %v1738, 28
        %v2290 = vpop.permute.xlu0 %2289
        %2291 = vrot.lane.b32.xlu0 %v1739, 28
        %v2292 = vpop.permute.xlu0 %2291
        %2293 = vrot.lane.b32.xlu0 %v1740, 28
        %v2294 = vpop.permute.xlu0 %2293
        %2295 = vrot.lane.b32.xlu0 %v1741, 28
        %v2296 = vpop.permute.xlu0 %2295
        %2297 = vrot.lane.b32.xlu0 %v1742, 28
        %v2298 = vpop.permute.xlu0 %2297
        %2299 = vrot.lane.b32.xlu0 %v1743, 28
        %v2300 = vpop.permute.xlu0 %2299
        %2301 = vrot.lane.b32.xlu0 %v1744, 28
        %v2302 = vpop.permute.xlu0 %2301
        %v2303 = vsel %vm570, %v2288, %v2290
        %v2304 = vsel %vm570, %v2290, %v2292
        %v2305 = vsel %vm570, %v2292, %v2294
        %v2306 = vsel %vm570, %v2294, %v2296
        %v2307 = vsel %vm570, %v2296, %v2298
        %v2308 = vsel %vm570, %v2298, %v2300
        %v2309 = vsel %vm570, %v2300, %v2302
        %2310 = vrot.lane.b32.xlu0 %v1737, 27
        %v2311 = vpop.permute.xlu0 %2310
        %2312 = vrot.lane.b32.xlu0 %v1738, 27
        %v2313 = vpop.permute.xlu0 %2312
        %2314 = vrot.lane.b32.xlu0 %v1739, 27
        %v2315 = vpop.permute.xlu0 %2314
        %2316 = vrot.lane.b32.xlu0 %v1740, 27
        %v2317 = vpop.permute.xlu0 %2316
        %2318 = vrot.lane.b32.xlu0 %v1741, 27
        %v2319 = vpop.permute.xlu0 %2318
        %2320 = vrot.lane.b32.xlu0 %v1742, 27
        %v2321 = vpop.permute.xlu0 %2320
        %2322 = vrot.lane.b32.xlu0 %v1743, 27
        %v2323 = vpop.permute.xlu0 %2322
        %2324 = vrot.lane.b32.xlu0 %v1744, 27
        %v2325 = vpop.permute.xlu0 %2324
        %v2326 = vsel %vm601, %v2311, %v2313
        %v2327 = vsel %vm601, %v2313, %v2315
        %v2328 = vsel %vm601, %v2315, %v2317
        %v2329 = vsel %vm601, %v2317, %v2319
        %v2330 = vsel %vm601, %v2319, %v2321
        %v2331 = vsel %vm601, %v2321, %v2323
        %v2332 = vsel %vm601, %v2323, %v2325
        %2333 = vrot.lane.b32.xlu0 %v1737, 7
        %v2334 = vpop.permute.xlu0 %2333
        %2335 = vrot.lane.b32.xlu0 %v1738, 7
        %v2336 = vpop.permute.xlu0 %2335
        %2337 = vrot.lane.b32.xlu0 %v1739, 7
        %v2338 = vpop.permute.xlu0 %2337
        %2339 = vrot.lane.b32.xlu0 %v1740, 7
        %v2340 = vpop.permute.xlu0 %2339
        %2341 = vrot.lane.b32.xlu0 %v1741, 7
        %v2342 = vpop.permute.xlu0 %2341
        %2343 = vrot.lane.b32.xlu0 %v1742, 7
        %v2344 = vpop.permute.xlu0 %2343
        %2345 = vrot.lane.b32.xlu0 %v1743, 7
        %v2346 = vpop.permute.xlu0 %2345
        %2347 = vrot.lane.b32.xlu0 %v1744, 7
        %v2348 = vpop.permute.xlu0 %2347
        %2349 = vrot.lane.b32.xlu0 %v2119, 7
        %v2350 = vpop.permute.xlu0 %2349
        %2351 = vrot.lane.b32.xlu0 %v2120, 7
        %v2352 = vpop.permute.xlu0 %2351
        %2353 = vrot.lane.b32.xlu0 %v2121, 7
        %v2354 = vpop.permute.xlu0 %2353
        %2355 = vrot.lane.b32.xlu0 %v2122, 7
        %v2356 = vpop.permute.xlu0 %2355
        %2357 = vrot.lane.b32.xlu0 %v2123, 7
        %v2358 = vpop.permute.xlu0 %2357
        %2359 = vrot.lane.b32.xlu0 %v2124, 7
        %v2360 = vpop.permute.xlu0 %2359
        %2361 = vrot.lane.b32.xlu0 %v2125, 7
        %v2362 = vpop.permute.xlu0 %2361
        %2363 = vrot.lane.b32.xlu0 %v2118, 7
        %v2364 = vpop.permute.xlu0 %2363
        %2365 = vrot.lane.b32.xlu0 %v2142, 7
        %v2366 = vpop.permute.xlu0 %2365
        %2367 = vrot.lane.b32.xlu0 %v2143, 7
        %v2368 = vpop.permute.xlu0 %2367
        %2369 = vrot.lane.b32.xlu0 %v2144, 7
        %v2370 = vpop.permute.xlu0 %2369
        %2371 = vrot.lane.b32.xlu0 %v2145, 7
        %v2372 = vpop.permute.xlu0 %2371
        %2373 = vrot.lane.b32.xlu0 %v2146, 7
        %v2374 = vpop.permute.xlu0 %2373
        %2375 = vrot.lane.b32.xlu0 %v2147, 7
        %v2376 = vpop.permute.xlu0 %2375
        %2377 = vrot.lane.b32.xlu0 %v2148, 7
        %v2378 = vpop.permute.xlu0 %2377
        %2379 = vrot.lane.b32.xlu0 %v2141, 7
        %v2380 = vpop.permute.xlu0 %2379
        %2381 = vrot.lane.b32.xlu0 %v2165, 7
        %v2382 = vpop.permute.xlu0 %2381
        %2383 = vrot.lane.b32.xlu0 %v2166, 7
        %v2384 = vpop.permute.xlu0 %2383
        %2385 = vrot.lane.b32.xlu0 %v2167, 7
        %v2386 = vpop.permute.xlu0 %2385
        %2387 = vrot.lane.b32.xlu0 %v2168, 7
        %v2388 = vpop.permute.xlu0 %2387
        %2389 = vrot.lane.b32.xlu0 %v2169, 7
        %v2390 = vpop.permute.xlu0 %2389
        %2391 = vrot.lane.b32.xlu0 %v2170, 7
        %v2392 = vpop.permute.xlu0 %2391
        %2393 = vrot.lane.b32.xlu0 %v2171, 7
        %v2394 = vpop.permute.xlu0 %2393
        %2395 = vrot.lane.b32.xlu0 %v2164, 7
        %v2396 = vpop.permute.xlu0 %2395
        %2397 = vrot.lane.b32.xlu0 %v2188, 7
        %v2398 = vpop.permute.xlu0 %2397
        %2399 = vrot.lane.b32.xlu0 %v2189, 7
        %v2400 = vpop.permute.xlu0 %2399
        %2401 = vrot.lane.b32.xlu0 %v2190, 7
        %v2402 = vpop.permute.xlu0 %2401
        %2403 = vrot.lane.b32.xlu0 %v2191, 7
        %v2404 = vpop.permute.xlu0 %2403
        %2405 = vrot.lane.b32.xlu0 %v2192, 7
        %v2406 = vpop.permute.xlu0 %2405
        %2407 = vrot.lane.b32.xlu0 %v2193, 7
        %v2408 = vpop.permute.xlu0 %2407
        %2409 = vrot.lane.b32.xlu0 %v2194, 7
        %v2410 = vpop.permute.xlu0 %2409
        %2411 = vrot.lane.b32.xlu0 %v2187, 7
        %v2412 = vpop.permute.xlu0 %2411
        %2413 = vrot.lane.b32.xlu0 %v2211, 7
        %v2414 = vpop.permute.xlu0 %2413
        %2415 = vrot.lane.b32.xlu0 %v2212, 7
        %v2416 = vpop.permute.xlu0 %2415
        %2417 = vrot.lane.b32.xlu0 %v2213, 7
        %v2418 = vpop.permute.xlu0 %2417
        %2419 = vrot.lane.b32.xlu0 %v2214, 7
        %v2420 = vpop.permute.xlu0 %2419
        %2421 = vrot.lane.b32.xlu0 %v2215, 7
        %v2422 = vpop.permute.xlu0 %2421
        %2423 = vrot.lane.b32.xlu0 %v2216, 7
        %v2424 = vpop.permute.xlu0 %2423
        %2425 = vrot.lane.b32.xlu0 %v2217, 7
        %v2426 = vpop.permute.xlu0 %2425
        %2427 = vrot.lane.b32.xlu0 %v2210, 7
        %v2428 = vpop.permute.xlu0 %2427
        %2429 = vrot.lane.b32.xlu0 %v2234, 7
        %v2430 = vpop.permute.xlu0 %2429
        %2431 = vrot.lane.b32.xlu0 %v2235, 7
        %v2432 = vpop.permute.xlu0 %2431
        %2433 = vrot.lane.b32.xlu0 %v2236, 7
        %v2434 = vpop.permute.xlu0 %2433
        %2435 = vrot.lane.b32.xlu0 %v2237, 7
        %v2436 = vpop.permute.xlu0 %2435
        %2437 = vrot.lane.b32.xlu0 %v2238, 7
        %v2438 = vpop.permute.xlu0 %2437
        %2439 = vrot.lane.b32.xlu0 %v2239, 7
        %v2440 = vpop.permute.xlu0 %2439
        %2441 = vrot.lane.b32.xlu0 %v2240, 7
        %v2442 = vpop.permute.xlu0 %2441
        %2443 = vrot.lane.b32.xlu0 %v2233, 7
        %v2444 = vpop.permute.xlu0 %2443
        %2445 = vrot.lane.b32.xlu0 %v2257, 7
        %v2446 = vpop.permute.xlu0 %2445
        %2447 = vrot.lane.b32.xlu0 %v2258, 7
        %v2448 = vpop.permute.xlu0 %2447
        %2449 = vrot.lane.b32.xlu0 %v2259, 7
        %v2450 = vpop.permute.xlu0 %2449
        %2451 = vrot.lane.b32.xlu0 %v2260, 7
        %v2452 = vpop.permute.xlu0 %2451
        %2453 = vrot.lane.b32.xlu0 %v2261, 7
        %v2454 = vpop.permute.xlu0 %2453
        %2455 = vrot.lane.b32.xlu0 %v2262, 7
        %v2456 = vpop.permute.xlu0 %2455
        %2457 = vrot.lane.b32.xlu0 %v2263, 7
        %v2458 = vpop.permute.xlu0 %2457
        %2459 = vrot.lane.b32.xlu0 %v2256, 7
        %v2460 = vpop.permute.xlu0 %2459
        %2461 = vrot.lane.b32.xlu0 %v2280, 7
        %v2462 = vpop.permute.xlu0 %2461
        %2463 = vrot.lane.b32.xlu0 %v2281, 7
        %v2464 = vpop.permute.xlu0 %2463
        %2465 = vrot.lane.b32.xlu0 %v2282, 7
        %v2466 = vpop.permute.xlu0 %2465
        %2467 = vrot.lane.b32.xlu0 %v2283, 7
        %v2468 = vpop.permute.xlu0 %2467
        %2469 = vrot.lane.b32.xlu0 %v2284, 7
        %v2470 = vpop.permute.xlu0 %2469
        %2471 = vrot.lane.b32.xlu0 %v2285, 7
        %v2472 = vpop.permute.xlu0 %2471
        %2473 = vrot.lane.b32.xlu0 %v2286, 7
        %v2474 = vpop.permute.xlu0 %2473
        %2475 = vrot.lane.b32.xlu0 %v2279, 7
        %v2476 = vpop.permute.xlu0 %2475
        %2477 = vrot.lane.b32.xlu0 %v2303, 7
        %v2478 = vpop.permute.xlu0 %2477
        %2479 = vrot.lane.b32.xlu0 %v2304, 7
        %v2480 = vpop.permute.xlu0 %2479
        %2481 = vrot.lane.b32.xlu0 %v2305, 7
        %v2482 = vpop.permute.xlu0 %2481
        %2483 = vrot.lane.b32.xlu0 %v2306, 7
        %v2484 = vpop.permute.xlu0 %2483
        %2485 = vrot.lane.b32.xlu0 %v2307, 7
        %v2486 = vpop.permute.xlu0 %2485
        %2487 = vrot.lane.b32.xlu0 %v2308, 7
        %v2488 = vpop.permute.xlu0 %2487
        %2489 = vrot.lane.b32.xlu0 %v2309, 7
        %v2490 = vpop.permute.xlu0 %2489
        %2491 = vrot.lane.b32.xlu0 %v2302, 7
        %v2492 = vpop.permute.xlu0 %2491
        %2493 = vrot.lane.b32.xlu0 %v2326, 7
        %v2494 = vpop.permute.xlu0 %2493
        %2495 = vrot.lane.b32.xlu0 %v2327, 7
        %v2496 = vpop.permute.xlu0 %2495
        %2497 = vrot.lane.b32.xlu0 %v2328, 7
        %v2498 = vpop.permute.xlu0 %2497
        %2499 = vrot.lane.b32.xlu0 %v2329, 7
        %v2500 = vpop.permute.xlu0 %2499
        %2501 = vrot.lane.b32.xlu0 %v2330, 7
        %v2502 = vpop.permute.xlu0 %2501
        %2503 = vrot.lane.b32.xlu0 %v2331, 7
        %v2504 = vpop.permute.xlu0 %2503
        %2505 = vrot.lane.b32.xlu0 %v2332, 7
        %v2506 = vpop.permute.xlu0 %2505
        %2507 = vrot.lane.b32.xlu0 %v2325, 7
        %v2508 = vpop.permute.xlu0 %2507
        %v2509 = vsel %vm1169, %v2334, %v2336
        %v2510 = vsel %vm1169, %v2336, %v2338
        %v2511 = vsel %vm1169, %v2338, %v2340
        %v2512 = vsel %vm1169, %v2340, %v2342
        %v2513 = vsel %vm1169, %v2342, %v2344
        %v2514 = vsel %vm1169, %v2344, %v2346
        %v2515 = vsel %vm1169, %v2346, %v2348
        %v2516 = vsel %vm1169, %v2350, %v2352
        %v2517 = vsel %vm1169, %v2352, %v2354
        %v2518 = vsel %vm1169, %v2354, %v2356
        %v2519 = vsel %vm1169, %v2356, %v2358
        %v2520 = vsel %vm1169, %v2358, %v2360
        %v2521 = vsel %vm1169, %v2360, %v2362
        %v2522 = vsel %vm1169, %v2362, %v2364
        %v2523 = vsel %vm1169, %v2366, %v2368
        %v2524 = vsel %vm1169, %v2368, %v2370
        %v2525 = vsel %vm1169, %v2370, %v2372
        %v2526 = vsel %vm1169, %v2372, %v2374
        %v2527 = vsel %vm1169, %v2374, %v2376
        %v2528 = vsel %vm1169, %v2376, %v2378
        %v2529 = vsel %vm1169, %v2378, %v2380
        %v2530 = vsel %vm1169, %v2382, %v2384
        %v2531 = vsel %vm1169, %v2384, %v2386
        %v2532 = vsel %vm1169, %v2386, %v2388
        %v2533 = vsel %vm1169, %v2388, %v2390
        %v2534 = vsel %vm1169, %v2390, %v2392
        %v2535 = vsel %vm1169, %v2392, %v2394
        %v2536 = vsel %vm1169, %v2394, %v2396
        %v2537 = vsel %vm1169, %v2398, %v2400
        %v2538 = vsel %vm1169, %v2400, %v2402
        %v2539 = vsel %vm1169, %v2402, %v2404
        %v2540 = vsel %vm1169, %v2404, %v2406
        %v2541 = vsel %vm1169, %v2406, %v2408
        %v2542 = vsel %vm1169, %v2408, %v2410
        %v2543 = vsel %vm1169, %v2410, %v2412
        %v2544 = vsel %vm1169, %v2414, %v2416
        %v2545 = vsel %vm1169, %v2416, %v2418
        %v2546 = vsel %vm1169, %v2418, %v2420
        %v2547 = vsel %vm1169, %v2420, %v2422
        %v2548 = vsel %vm1169, %v2422, %v2424
        %v2549 = vsel %vm1169, %v2424, %v2426
        %v2550 = vsel %vm1169, %v2426, %v2428
        %v2551 = vsel %vm1169, %v2430, %v2432
        %v2552 = vsel %vm1169, %v2432, %v2434
        %v2553 = vsel %vm1169, %v2434, %v2436
        %v2554 = vsel %vm1169, %v2436, %v2438
        %v2555 = vsel %vm1169, %v2438, %v2440
        %v2556 = vsel %vm1169, %v2440, %v2442
        %v2557 = vsel %vm1169, %v2442, %v2444
        %v2558 = vsel %vm1169, %v2446, %v2448
        %v2559 = vsel %vm1169, %v2448, %v2450
        %v2560 = vsel %vm1169, %v2450, %v2452
        %v2561 = vsel %vm1169, %v2452, %v2454
        %v2562 = vsel %vm1169, %v2454, %v2456
        %v2563 = vsel %vm1169, %v2456, %v2458
        %v2564 = vsel %vm1169, %v2458, %v2460
        %v2565 = vsel %vm1169, %v2462, %v2464
        %v2566 = vsel %vm1169, %v2464, %v2466
        %v2567 = vsel %vm1169, %v2466, %v2468
        %v2568 = vsel %vm1169, %v2468, %v2470
        %v2569 = vsel %vm1169, %v2470, %v2472
        %v2570 = vsel %vm1169, %v2472, %v2474
        %v2571 = vsel %vm1169, %v2474, %v2476
        %v2572 = vsel %vm1169, %v2478, %v2480
        %v2573 = vsel %vm1169, %v2480, %v2482
        %v2574 = vsel %vm1169, %v2482, %v2484
        %v2575 = vsel %vm1169, %v2484, %v2486
        %v2576 = vsel %vm1169, %v2486, %v2488
        %v2577 = vsel %vm1169, %v2488, %v2490
        %v2578 = vsel %vm1169, %v2490, %v2492
        %v2579 = vsel %vm1169, %v2494, %v2496
        %v2580 = vsel %vm1169, %v2496, %v2498
        %v2581 = vsel %vm1169, %v2498, %v2500
        %v2582 = vsel %vm1169, %v2500, %v2502
        %v2583 = vsel %vm1169, %v2502, %v2504
        %v2584 = vsel %vm1169, %v2504, %v2506
        %v2585 = vsel %vm1169, %v2506, %v2508
        %v2586 = vld [vmem:[#allocation6] sm:$0xff]
        %v2587 = vld [vmem:[#allocation6 + $0x8] sm:$0xff]
        %v2588 = vld [vmem:[%s4] sm:$0xff]
        %2590 = vset.pattern.permute.xlu0 0
        %2591 = vperm.xlu0 %2590, %v2588
        %v2592 = vpop.permute.xlu0 %2591
        %2594 = vrot.lane.b32.xlu0 %v1729, 111
        %v2595 = vpop.permute.xlu0 %2594
        %2596 = vrot.lane.b32.xlu0 %v1730, 111
        %v2597 = vpop.permute.xlu0 %2596
        %2598 = vrot.lane.b32.xlu0 %v1731, 111
        %v2599 = vpop.permute.xlu0 %2598
        %2600 = vrot.lane.b32.xlu0 %v1732, 111
        %v2601 = vpop.permute.xlu0 %2600
        %2602 = vrot.lane.b32.xlu0 %v1733, 111
        %v2603 = vpop.permute.xlu0 %2602
        %2604 = vrot.lane.b32.xlu0 %v1734, 111
        %v2605 = vpop.permute.xlu0 %2604
        %2606 = vrot.lane.b32.xlu0 %v1735, 111
        %v2607 = vpop.permute.xlu0 %2606
        %2608 = vrot.lane.b32.xlu0 %v1736, 111
        %v2609 = vpop.permute.xlu0 %2608
        %2610 = vrot.lane.b32.xlu0 %v1769, 111
        %v2611 = vpop.permute.xlu0 %2610
        %2612 = vrot.lane.b32.xlu0 %v1770, 111
        %v2613 = vpop.permute.xlu0 %2612
        %2614 = vrot.lane.b32.xlu0 %v1771, 111
        %v2615 = vpop.permute.xlu0 %2614
        %2616 = vrot.lane.b32.xlu0 %v1772, 111
        %v2617 = vpop.permute.xlu0 %2616
        %2618 = vrot.lane.b32.xlu0 %v1773, 111
        %v2619 = vpop.permute.xlu0 %2618
        %2620 = vrot.lane.b32.xlu0 %v1774, 111
        %v2621 = vpop.permute.xlu0 %2620
        %2622 = vrot.lane.b32.xlu0 %v1775, 111
        %v2623 = vpop.permute.xlu0 %2622
        %2624 = vrot.lane.b32.xlu0 %v1768, 111
        %v2625 = vpop.permute.xlu0 %2624
        %2626 = vrot.lane.b32.xlu0 %v1792, 111
        %v2627 = vpop.permute.xlu0 %2626
        %2628 = vrot.lane.b32.xlu0 %v1793, 111
        %v2629 = vpop.permute.xlu0 %2628
        %2630 = vrot.lane.b32.xlu0 %v1794, 111
        %v2631 = vpop.permute.xlu0 %2630
        %2632 = vrot.lane.b32.xlu0 %v1795, 111
        %v2633 = vpop.permute.xlu0 %2632
        %2634 = vrot.lane.b32.xlu0 %v1796, 111
        %v2635 = vpop.permute.xlu0 %2634
        %2636 = vrot.lane.b32.xlu0 %v1797, 111
        %v2637 = vpop.permute.xlu0 %2636
        %2638 = vrot.lane.b32.xlu0 %v1798, 111
        %v2639 = vpop.permute.xlu0 %2638
        %2640 = vrot.lane.b32.xlu0 %v1791, 111
        %v2641 = vpop.permute.xlu0 %2640
        %2642 = vrot.lane.b32.xlu0 %v1815, 111
        %v2643 = vpop.permute.xlu0 %2642
        %2644 = vrot.lane.b32.xlu0 %v1816, 111
        %v2645 = vpop.permute.xlu0 %2644
        %2646 = vrot.lane.b32.xlu0 %v1817, 111
        %v2647 = vpop.permute.xlu0 %2646
        %2648 = vrot.lane.b32.xlu0 %v1818, 111
        %v2649 = vpop.permute.xlu0 %2648
        %2650 = vrot.lane.b32.xlu0 %v1819, 111
        %v2651 = vpop.permute.xlu0 %2650
        %2652 = vrot.lane.b32.xlu0 %v1820, 111
        %v2653 = vpop.permute.xlu0 %2652
        %2654 = vrot.lane.b32.xlu0 %v1821, 111
        %v2655 = vpop.permute.xlu0 %2654
        %2656 = vrot.lane.b32.xlu0 %v1814, 111
        %v2657 = vpop.permute.xlu0 %2656
        %2658 = vrot.lane.b32.xlu0 %v1838, 111
        %v2659 = vpop.permute.xlu0 %2658
        %2660 = vrot.lane.b32.xlu0 %v1839, 111
        %v2661 = vpop.permute.xlu0 %2660
        %2662 = vrot.lane.b32.xlu0 %v1840, 111
        %v2663 = vpop.permute.xlu0 %2662
        %2664 = vrot.lane.b32.xlu0 %v1841, 111
        %v2665 = vpop.permute.xlu0 %2664
        %2666 = vrot.lane.b32.xlu0 %v1842, 111
        %v2667 = vpop.permute.xlu0 %2666
        %2668 = vrot.lane.b32.xlu0 %v1843, 111
        %v2669 = vpop.permute.xlu0 %2668
        %2670 = vrot.lane.b32.xlu0 %v1844, 111
        %v2671 = vpop.permute.xlu0 %2670
        %2672 = vrot.lane.b32.xlu0 %v1837, 111
        %v2673 = vpop.permute.xlu0 %2672
        %2674 = vrot.lane.b32.xlu0 %v1861, 111
        %v2675 = vpop.permute.xlu0 %2674
        %2676 = vrot.lane.b32.xlu0 %v1862, 111
        %v2677 = vpop.permute.xlu0 %2676
        %2678 = vrot.lane.b32.xlu0 %v1863, 111
        %v2679 = vpop.permute.xlu0 %2678
        %2680 = vrot.lane.b32.xlu0 %v1864, 111
        %v2681 = vpop.permute.xlu0 %2680
        %2682 = vrot.lane.b32.xlu0 %v1865, 111
        %v2683 = vpop.permute.xlu0 %2682
        %2684 = vrot.lane.b32.xlu0 %v1866, 111
        %v2685 = vpop.permute.xlu0 %2684
        %2686 = vrot.lane.b32.xlu0 %v1867, 111
        %v2687 = vpop.permute.xlu0 %2686
        %2688 = vrot.lane.b32.xlu0 %v1860, 111
        %v2689 = vpop.permute.xlu0 %2688
        %2690 = vrot.lane.b32.xlu0 %v1884, 111
        %v2691 = vpop.permute.xlu0 %2690
        %2692 = vrot.lane.b32.xlu0 %v1885, 111
        %v2693 = vpop.permute.xlu0 %2692
        %2694 = vrot.lane.b32.xlu0 %v1886, 111
        %v2695 = vpop.permute.xlu0 %2694
        %2696 = vrot.lane.b32.xlu0 %v1887, 111
        %v2697 = vpop.permute.xlu0 %2696
        %2698 = vrot.lane.b32.xlu0 %v1888, 111
        %v2699 = vpop.permute.xlu0 %2698
        %2700 = vrot.lane.b32.xlu0 %v1889, 111
        %v2701 = vpop.permute.xlu0 %2700
        %2702 = vrot.lane.b32.xlu0 %v1890, 111
        %v2703 = vpop.permute.xlu0 %2702
        %2704 = vrot.lane.b32.xlu0 %v1883, 111
        %v2705 = vpop.permute.xlu0 %2704
        %2706 = vrot.lane.b32.xlu0 %v1907, 111
        %v2707 = vpop.permute.xlu0 %2706
        %2708 = vrot.lane.b32.xlu0 %v1908, 111
        %v2709 = vpop.permute.xlu0 %2708
        %2710 = vrot.lane.b32.xlu0 %v1909, 111
        %v2711 = vpop.permute.xlu0 %2710
        %2712 = vrot.lane.b32.xlu0 %v1910, 111
        %v2713 = vpop.permute.xlu0 %2712
        %2714 = vrot.lane.b32.xlu0 %v1911, 111
        %v2715 = vpop.permute.xlu0 %2714
        %2716 = vrot.lane.b32.xlu0 %v1912, 111
        %v2717 = vpop.permute.xlu0 %2716
        %2718 = vrot.lane.b32.xlu0 %v1913, 111
        %v2719 = vpop.permute.xlu0 %2718
        %2720 = vrot.lane.b32.xlu0 %v1906, 111
        %v2721 = vpop.permute.xlu0 %2720
        %2722 = vrot.lane.b32.xlu0 %v1930, 111
        %v2723 = vpop.permute.xlu0 %2722
        %2724 = vrot.lane.b32.xlu0 %v1931, 111
        %v2725 = vpop.permute.xlu0 %2724
        %2726 = vrot.lane.b32.xlu0 %v1932, 111
        %v2727 = vpop.permute.xlu0 %2726
        %2728 = vrot.lane.b32.xlu0 %v1933, 111
        %v2729 = vpop.permute.xlu0 %2728
        %2730 = vrot.lane.b32.xlu0 %v1934, 111
        %v2731 = vpop.permute.xlu0 %2730
        %2732 = vrot.lane.b32.xlu0 %v1935, 111
        %v2733 = vpop.permute.xlu0 %2732
        %2734 = vrot.lane.b32.xlu0 %v1936, 111
        %v2735 = vpop.permute.xlu0 %2734
        %2736 = vrot.lane.b32.xlu0 %v1929, 111
        %v2737 = vpop.permute.xlu0 %2736
        %2738 = vrot.lane.b32.xlu0 %v1953, 111
        %v2739 = vpop.permute.xlu0 %2738
        %2740 = vrot.lane.b32.xlu0 %v1954, 111
        %v2741 = vpop.permute.xlu0 %2740
        %2742 = vrot.lane.b32.xlu0 %v1955, 111
        %v2743 = vpop.permute.xlu0 %2742
        %2744 = vrot.lane.b32.xlu0 %v1956, 111
        %v2745 = vpop.permute.xlu0 %2744
        %2746 = vrot.lane.b32.xlu0 %v1957, 111
        %v2747 = vpop.permute.xlu0 %2746
        %2748 = vrot.lane.b32.xlu0 %v1958, 111
        %v2749 = vpop.permute.xlu0 %2748
        %2750 = vrot.lane.b32.xlu0 %v1959, 111
        %v2751 = vpop.permute.xlu0 %2750
        %2752 = vrot.lane.b32.xlu0 %v1952, 111
        %v2753 = vpop.permute.xlu0 %2752
        %2754 = vrot.lane.b32.xlu0 %v1976, 111
        %v2755 = vpop.permute.xlu0 %2754
        %2756 = vrot.lane.b32.xlu0 %v1977, 111
        %v2757 = vpop.permute.xlu0 %2756
        %2758 = vrot.lane.b32.xlu0 %v1978, 111
        %v2759 = vpop.permute.xlu0 %2758
        %2760 = vrot.lane.b32.xlu0 %v1979, 111
        %v2761 = vpop.permute.xlu0 %2760
        %2762 = vrot.lane.b32.xlu0 %v1980, 111
        %v2763 = vpop.permute.xlu0 %2762
        %2764 = vrot.lane.b32.xlu0 %v1981, 111
        %v2765 = vpop.permute.xlu0 %2764
        %2766 = vrot.lane.b32.xlu0 %v1982, 111
        %v2767 = vpop.permute.xlu0 %2766
        %2768 = vrot.lane.b32.xlu0 %v1975, 111
        %v2769 = vpop.permute.xlu0 %2768
        %2770 = vrot.lane.b32.xlu0 %v1999, 111
        %v2771 = vpop.permute.xlu0 %2770
        %2772 = vrot.lane.b32.xlu0 %v2000, 111
        %v2773 = vpop.permute.xlu0 %2772
        %2774 = vrot.lane.b32.xlu0 %v2001, 111
        %v2775 = vpop.permute.xlu0 %2774
        %2776 = vrot.lane.b32.xlu0 %v2002, 111
        %v2777 = vpop.permute.xlu0 %2776
        %2778 = vrot.lane.b32.xlu0 %v2003, 111
        %v2779 = vpop.permute.xlu0 %2778
        %2780 = vrot.lane.b32.xlu0 %v2004, 111
        %v2781 = vpop.permute.xlu0 %2780
        %2782 = vrot.lane.b32.xlu0 %v2005, 111
        %v2783 = vpop.permute.xlu0 %2782
        %2784 = vrot.lane.b32.xlu0 %v1998, 111
        %v2785 = vpop.permute.xlu0 %2784
        %2786 = vrot.lane.b32.xlu0 %v2022, 111
        %v2787 = vpop.permute.xlu0 %2786
        %2788 = vrot.lane.b32.xlu0 %v2023, 111
        %v2789 = vpop.permute.xlu0 %2788
        %2790 = vrot.lane.b32.xlu0 %v2024, 111
        %v2791 = vpop.permute.xlu0 %2790
        %2792 = vrot.lane.b32.xlu0 %v2025, 111
        %v2793 = vpop.permute.xlu0 %2792
        %2794 = vrot.lane.b32.xlu0 %v2026, 111
        %v2795 = vpop.permute.xlu0 %2794
        %2796 = vrot.lane.b32.xlu0 %v2027, 111
        %v2797 = vpop.permute.xlu0 %2796
        %2798 = vrot.lane.b32.xlu0 %v2028, 111
        %v2799 = vpop.permute.xlu0 %2798
        %2800 = vrot.lane.b32.xlu0 %v2021, 111
        %v2801 = vpop.permute.xlu0 %2800
        %2802 = vrot.lane.b32.xlu0 %v2030, 111
        %v2803 = vpop.permute.xlu0 %2802
        %2804 = vrot.lane.b32.xlu0 %v2043, 111
        %v2805 = vpop.permute.xlu0 %2804
        %2806 = vrot.lane.b32.xlu0 %v2044, 111
        %v2807 = vpop.permute.xlu0 %2806
        %2808 = vrot.lane.b32.xlu0 %v2045, 111
        %v2809 = vpop.permute.xlu0 %2808
        %2810 = vrot.lane.b32.xlu0 %v2046, 111
        %v2811 = vpop.permute.xlu0 %2810
        %2812 = vrot.lane.b32.xlu0 %v2047, 111
        %v2813 = vpop.permute.xlu0 %2812
        %2814 = vrot.lane.b32.xlu0 %v2048, 111
        %v2815 = vpop.permute.xlu0 %2814
        %2816 = vrot.lane.b32.xlu0 %v2042, 111
        %v2817 = vpop.permute.xlu0 %2816
        %2818 = vrot.lane.b32.xlu0 %v2058, 111
        %v2819 = vpop.permute.xlu0 %2818
        %2820 = vrot.lane.b32.xlu0 %v2073, 111
        %v2821 = vpop.permute.xlu0 %2820
        %2822 = vrot.lane.b32.xlu0 %v2074, 111
        %v2823 = vpop.permute.xlu0 %2822
        %2824 = vrot.lane.b32.xlu0 %v2075, 111
        %v2825 = vpop.permute.xlu0 %2824
        %2826 = vrot.lane.b32.xlu0 %v2076, 111
        %v2827 = vpop.permute.xlu0 %2826
        %2828 = vrot.lane.b32.xlu0 %v2077, 111
        %v2829 = vpop.permute.xlu0 %2828
        %2830 = vrot.lane.b32.xlu0 %v2078, 111
        %v2831 = vpop.permute.xlu0 %2830
        %2832 = vrot.lane.b32.xlu0 %v2079, 111
        %v2833 = vpop.permute.xlu0 %2832
        %2834 = vrot.lane.b32.xlu0 %v2081, 111
        %v2835 = vpop.permute.xlu0 %2834
        %2836 = vrot.lane.b32.xlu0 %v2096, 111
        %v2837 = vpop.permute.xlu0 %2836
        %2838 = vrot.lane.b32.xlu0 %v2097, 111
        %v2839 = vpop.permute.xlu0 %2838
        %2840 = vrot.lane.b32.xlu0 %v2098, 111
        %v2841 = vpop.permute.xlu0 %2840
        %2842 = vrot.lane.b32.xlu0 %v2099, 111
        %v2843 = vpop.permute.xlu0 %2842
        %2844 = vrot.lane.b32.xlu0 %v2100, 111
        %v2845 = vpop.permute.xlu0 %2844
        %2846 = vrot.lane.b32.xlu0 %v2101, 111
        %v2847 = vpop.permute.xlu0 %2846
        %2848 = vrot.lane.b32.xlu0 %v2102, 111
        %v2849 = vpop.permute.xlu0 %2848
        %2850 = vrot.lane.b32.xlu0 %v2334, 111
        %v2851 = vpop.permute.xlu0 %2850
        %2852 = vrot.lane.b32.xlu0 %v2509, 111
        %v2853 = vpop.permute.xlu0 %2852
        %2854 = vrot.lane.b32.xlu0 %v2510, 111
        %v2855 = vpop.permute.xlu0 %2854
        %2856 = vrot.lane.b32.xlu0 %v2511, 111
        %v2857 = vpop.permute.xlu0 %2856
        %2858 = vrot.lane.b32.xlu0 %v2512, 111
        %v2859 = vpop.permute.xlu0 %2858
        %2860 = vrot.lane.b32.xlu0 %v2513, 111
        %v2861 = vpop.permute.xlu0 %2860
        %2862 = vrot.lane.b32.xlu0 %v2514, 111
        %v2863 = vpop.permute.xlu0 %2862
        %2864 = vrot.lane.b32.xlu0 %v2515, 111
        %v2865 = vpop.permute.xlu0 %2864
        %2866 = vrot.lane.b32.xlu0 %v2350, 111
        %v2867 = vpop.permute.xlu0 %2866
        %2868 = vrot.lane.b32.xlu0 %v2516, 111
        %v2869 = vpop.permute.xlu0 %2868
        %2870 = vrot.lane.b32.xlu0 %v2517, 111
        %v2871 = vpop.permute.xlu0 %2870
        %2872 = vrot.lane.b32.xlu0 %v2518, 111
        %v2873 = vpop.permute.xlu0 %2872
        %2874 = vrot.lane.b32.xlu0 %v2519, 111
        %v2875 = vpop.permute.xlu0 %2874
        %2876 = vrot.lane.b32.xlu0 %v2520, 111
        %v2877 = vpop.permute.xlu0 %2876
        %2878 = vrot.lane.b32.xlu0 %v2521, 111
        %v2879 = vpop.permute.xlu0 %2878
        %2880 = vrot.lane.b32.xlu0 %v2522, 111
        %v2881 = vpop.permute.xlu0 %2880
        %2882 = vrot.lane.b32.xlu0 %v2366, 111
        %v2883 = vpop.permute.xlu0 %2882
        %2884 = vrot.lane.b32.xlu0 %v2523, 111
        %v2885 = vpop.permute.xlu0 %2884
        %2886 = vrot.lane.b32.xlu0 %v2524, 111
        %v2887 = vpop.permute.xlu0 %2886
        %2888 = vrot.lane.b32.xlu0 %v2525, 111
        %v2889 = vpop.permute.xlu0 %2888
        %2890 = vrot.lane.b32.xlu0 %v2526, 111
        %v2891 = vpop.permute.xlu0 %2890
        %2892 = vrot.lane.b32.xlu0 %v2527, 111
        %v2893 = vpop.permute.xlu0 %2892
        %2894 = vrot.lane.b32.xlu0 %v2528, 111
        %v2895 = vpop.permute.xlu0 %2894
        %2896 = vrot.lane.b32.xlu0 %v2529, 111
        %v2897 = vpop.permute.xlu0 %2896
        %2898 = vrot.lane.b32.xlu0 %v2382, 111
        %v2899 = vpop.permute.xlu0 %2898
        %2900 = vrot.lane.b32.xlu0 %v2530, 111
        %v2901 = vpop.permute.xlu0 %2900
        %2902 = vrot.lane.b32.xlu0 %v2531, 111
        %v2903 = vpop.permute.xlu0 %2902
        %2904 = vrot.lane.b32.xlu0 %v2532, 111
        %v2905 = vpop.permute.xlu0 %2904
        %2906 = vrot.lane.b32.xlu0 %v2533, 111
        %v2907 = vpop.permute.xlu0 %2906
        %2908 = vrot.lane.b32.xlu0 %v2534, 111
        %v2909 = vpop.permute.xlu0 %2908
        %2910 = vrot.lane.b32.xlu0 %v2535, 111
        %v2911 = vpop.permute.xlu0 %2910
        %2912 = vrot.lane.b32.xlu0 %v2536, 111
        %v2913 = vpop.permute.xlu0 %2912
        %2914 = vrot.lane.b32.xlu0 %v2398, 111
        %v2915 = vpop.permute.xlu0 %2914
        %2916 = vrot.lane.b32.xlu0 %v2537, 111
        %v2917 = vpop.permute.xlu0 %2916
        %2918 = vrot.lane.b32.xlu0 %v2538, 111
        %v2919 = vpop.permute.xlu0 %2918
        %2920 = vrot.lane.b32.xlu0 %v2539, 111
        %v2921 = vpop.permute.xlu0 %2920
        %2922 = vrot.lane.b32.xlu0 %v2540, 111
        %v2923 = vpop.permute.xlu0 %2922
        %2924 = vrot.lane.b32.xlu0 %v2541, 111
        %v2925 = vpop.permute.xlu0 %2924
        %2926 = vrot.lane.b32.xlu0 %v2542, 111
        %v2927 = vpop.permute.xlu0 %2926
        %2928 = vrot.lane.b32.xlu0 %v2543, 111
        %v2929 = vpop.permute.xlu0 %2928
        %2930 = vrot.lane.b32.xlu0 %v2414, 111
        %v2931 = vpop.permute.xlu0 %2930
        %2932 = vrot.lane.b32.xlu0 %v2544, 111
        %v2933 = vpop.permute.xlu0 %2932
        %2934 = vrot.lane.b32.xlu0 %v2545, 111
        %v2935 = vpop.permute.xlu0 %2934
        %2936 = vrot.lane.b32.xlu0 %v2546, 111
        %v2937 = vpop.permute.xlu0 %2936
        %2938 = vrot.lane.b32.xlu0 %v2547, 111
        %v2939 = vpop.permute.xlu0 %2938
        %2940 = vrot.lane.b32.xlu0 %v2548, 111
        %v2941 = vpop.permute.xlu0 %2940
        %2942 = vrot.lane.b32.xlu0 %v2549, 111
        %v2943 = vpop.permute.xlu0 %2942
        %2944 = vrot.lane.b32.xlu0 %v2550, 111
        %v2945 = vpop.permute.xlu0 %2944
        %2946 = vrot.lane.b32.xlu0 %v2430, 111
        %v2947 = vpop.permute.xlu0 %2946
        %2948 = vrot.lane.b32.xlu0 %v2551, 111
        %v2949 = vpop.permute.xlu0 %2948
        %2950 = vrot.lane.b32.xlu0 %v2552, 111
        %v2951 = vpop.permute.xlu0 %2950
        %2952 = vrot.lane.b32.xlu0 %v2553, 111
        %v2953 = vpop.permute.xlu0 %2952
        %2954 = vrot.lane.b32.xlu0 %v2554, 111
        %v2955 = vpop.permute.xlu0 %2954
        %2956 = vrot.lane.b32.xlu0 %v2555, 111
        %v2957 = vpop.permute.xlu0 %2956
        %2958 = vrot.lane.b32.xlu0 %v2556, 111
        %v2959 = vpop.permute.xlu0 %2958
        %2960 = vrot.lane.b32.xlu0 %v2557, 111
        %v2961 = vpop.permute.xlu0 %2960
        %2962 = vrot.lane.b32.xlu0 %v2446, 111
        %v2963 = vpop.permute.xlu0 %2962
        %2964 = vrot.lane.b32.xlu0 %v2558, 111
        %v2965 = vpop.permute.xlu0 %2964
        %2966 = vrot.lane.b32.xlu0 %v2559, 111
        %v2967 = vpop.permute.xlu0 %2966
        %2968 = vrot.lane.b32.xlu0 %v2560, 111
        %v2969 = vpop.permute.xlu0 %2968
        %2970 = vrot.lane.b32.xlu0 %v2561, 111
        %v2971 = vpop.permute.xlu0 %2970
        %2972 = vrot.lane.b32.xlu0 %v2562, 111
        %v2973 = vpop.permute.xlu0 %2972
        %2974 = vrot.lane.b32.xlu0 %v2563, 111
        %v2975 = vpop.permute.xlu0 %2974
        %2976 = vrot.lane.b32.xlu0 %v2564, 111
        %v2977 = vpop.permute.xlu0 %2976
        %2978 = vrot.lane.b32.xlu0 %v2462, 111
        %v2979 = vpop.permute.xlu0 %2978
        %2980 = vrot.lane.b32.xlu0 %v2565, 111
        %v2981 = vpop.permute.xlu0 %2980
        %2982 = vrot.lane.b32.xlu0 %v2566, 111
        %v2983 = vpop.permute.xlu0 %2982
        %2984 = vrot.lane.b32.xlu0 %v2567, 111
        %v2985 = vpop.permute.xlu0 %2984
        %2986 = vrot.lane.b32.xlu0 %v2568, 111
        %v2987 = vpop.permute.xlu0 %2986
        %2988 = vrot.lane.b32.xlu0 %v2569, 111
        %v2989 = vpop.permute.xlu0 %2988
        %2990 = vrot.lane.b32.xlu0 %v2570, 111
        %v2991 = vpop.permute.xlu0 %2990
        %2992 = vrot.lane.b32.xlu0 %v2571, 111
        %v2993 = vpop.permute.xlu0 %2992
        %2994 = vrot.lane.b32.xlu0 %v2478, 111
        %v2995 = vpop.permute.xlu0 %2994
        %2996 = vrot.lane.b32.xlu0 %v2572, 111
        %v2997 = vpop.permute.xlu0 %2996
        %2998 = vrot.lane.b32.xlu0 %v2573, 111
        %v2999 = vpop.permute.xlu0 %2998
        %3000 = vrot.lane.b32.xlu0 %v2574, 111
        %v3001 = vpop.permute.xlu0 %3000
        %3002 = vrot.lane.b32.xlu0 %v2575, 111
        %v3003 = vpop.permute.xlu0 %3002
        %3004 = vrot.lane.b32.xlu0 %v2576, 111
        %v3005 = vpop.permute.xlu0 %3004
        %3006 = vrot.lane.b32.xlu0 %v2577, 111
        %v3007 = vpop.permute.xlu0 %3006
        %3008 = vrot.lane.b32.xlu0 %v2578, 111
        %v3009 = vpop.permute.xlu0 %3008
        %3010 = vrot.lane.b32.xlu0 %v2494, 111
        %v3011 = vpop.permute.xlu0 %3010
        %3012 = vrot.lane.b32.xlu0 %v2579, 111
        %v3013 = vpop.permute.xlu0 %3012
        %3014 = vrot.lane.b32.xlu0 %v2580, 111
        %v3015 = vpop.permute.xlu0 %3014
        %3016 = vrot.lane.b32.xlu0 %v2581, 111
        %v3017 = vpop.permute.xlu0 %3016
        %3018 = vrot.lane.b32.xlu0 %v2582, 111
        %v3019 = vpop.permute.xlu0 %3018
        %3020 = vrot.lane.b32.xlu0 %v2583, 111
        %v3021 = vpop.permute.xlu0 %3020
        %3022 = vrot.lane.b32.xlu0 %v2584, 111
        %v3023 = vpop.permute.xlu0 %3022
        %3024 = vrot.lane.b32.xlu0 %v2585, 111
        %v3025 = vpop.permute.xlu0 %3024
        %vm3026 = vcmask 908288
        %v3027 = vsel %vm3026, %v2595, %v2597
        %v3028 = vsel %vm3026, %v2597, %v2599
        %v3029 = vsel %vm3026, %v2599, %v2601
        %v3030 = vsel %vm3026, %v2601, %v2603
        %v3031 = vsel %vm3026, %v2603, %v2605
        %v3032 = vsel %vm3026, %v2605, %v2607
        %v3033 = vsel %vm3026, %v2607, %v2609
        %v3034 = vsel %vm3026, %v2611, %v2613
        %v3035 = vsel %vm3026, %v2613, %v2615
        %v3036 = vsel %vm3026, %v2615, %v2617
        %v3037 = vsel %vm3026, %v2617, %v2619
        %v3038 = vsel %vm3026, %v2619, %v2621
        %v3039 = vsel %vm3026, %v2621, %v2623
        %v3040 = vsel %vm3026, %v2623, %v2625
        %v3041 = vsel %vm3026, %v2627, %v2629
        %v3042 = vsel %vm3026, %v2629, %v2631
        %v3043 = vsel %vm3026, %v2631, %v2633
        %v3044 = vsel %vm3026, %v2633, %v2635
        %v3045 = vsel %vm3026, %v2635, %v2637
        %v3046 = vsel %vm3026, %v2637, %v2639
        %v3047 = vsel %vm3026, %v2639, %v2641
        %v3048 = vsel %vm3026, %v2643, %v2645
        %v3049 = vsel %vm3026, %v2645, %v2647
        %v3050 = vsel %vm3026, %v2647, %v2649
        %v3051 = vsel %vm3026, %v2649, %v2651
        %v3052 = vsel %vm3026, %v2651, %v2653
        %v3053 = vsel %vm3026, %v2653, %v2655
        %v3054 = vsel %vm3026, %v2655, %v2657
        %v3055 = vsel %vm3026, %v2659, %v2661
        %v3056 = vsel %vm3026, %v2661, %v2663
        %v3057 = vsel %vm3026, %v2663, %v2665
        %v3058 = vsel %vm3026, %v2665, %v2667
        %v3059 = vsel %vm3026, %v2667, %v2669
        %v3060 = vsel %vm3026, %v2669, %v2671
        %v3061 = vsel %vm3026, %v2671, %v2673
        %v3062 = vsel %vm3026, %v2675, %v2677
        %v3063 = vsel %vm3026, %v2677, %v2679
        %v3064 = vsel %vm3026, %v2679, %v2681
        %v3065 = vsel %vm3026, %v2681, %v2683
        %v3066 = vsel %vm3026, %v2683, %v2685
        %v3067 = vsel %vm3026, %v2685, %v2687
        %v3068 = vsel %vm3026, %v2687, %v2689
        %v3069 = vsel %vm3026, %v2691, %v2693
        %v3070 = vsel %vm3026, %v2693, %v2695
        %v3071 = vsel %vm3026, %v2695, %v2697
        %v3072 = vsel %vm3026, %v2697, %v2699
        %v3073 = vsel %vm3026, %v2699, %v2701
        %v3074 = vsel %vm3026, %v2701, %v2703
        %v3075 = vsel %vm3026, %v2703, %v2705
        %v3076 = vsel %vm3026, %v2707, %v2709
        %v3077 = vsel %vm3026, %v2709, %v2711
        %v3078 = vsel %vm3026, %v2711, %v2713
        %v3079 = vsel %vm3026, %v2713, %v2715
        %v3080 = vsel %vm3026, %v2715, %v2717
        %v3081 = vsel %vm3026, %v2717, %v2719
        %v3082 = vsel %vm3026, %v2719, %v2721
        %v3083 = vsel %vm3026, %v2723, %v2725
        %v3084 = vsel %vm3026, %v2725, %v2727
        %v3085 = vsel %vm3026, %v2727, %v2729
        %v3086 = vsel %vm3026, %v2729, %v2731
        %v3087 = vsel %vm3026, %v2731, %v2733
        %v3088 = vsel %vm3026, %v2733, %v2735
        %v3089 = vsel %vm3026, %v2735, %v2737
        %v3090 = vsel %vm3026, %v2739, %v2741
        %v3091 = vsel %vm3026, %v2741, %v2743
        %v3092 = vsel %vm3026, %v2743, %v2745
        %v3093 = vsel %vm3026, %v2745, %v2747
        %v3094 = vsel %vm3026, %v2747, %v2749
        %v3095 = vsel %vm3026, %v2749, %v2751
        %v3096 = vsel %vm3026, %v2751, %v2753
        %v3097 = vsel %vm3026, %v2755, %v2757
        %v3098 = vsel %vm3026, %v2757, %v2759
        %v3099 = vsel %vm3026, %v2759, %v2761
        %v3100 = vsel %vm3026, %v2761, %v2763
        %v3101 = vsel %vm3026, %v2763, %v2765
        %v3102 = vsel %vm3026, %v2765, %v2767
        %v3103 = vsel %vm3026, %v2767, %v2769
        %v3104 = vsel %vm3026, %v2771, %v2773
        %v3105 = vsel %vm3026, %v2773, %v2775
        %v3106 = vsel %vm3026, %v2775, %v2777
        %v3107 = vsel %vm3026, %v2777, %v2779
        %v3108 = vsel %vm3026, %v2779, %v2781
        %v3109 = vsel %vm3026, %v2781, %v2783
        %v3110 = vsel %vm3026, %v2783, %v2785
        %v3111 = vsel %vm3026, %v2787, %v2789
        %v3112 = vsel %vm3026, %v2789, %v2791
        %v3113 = vsel %vm3026, %v2791, %v2793
        %v3114 = vsel %vm3026, %v2793, %v2795
        %v3115 = vsel %vm3026, %v2795, %v2797
        %v3116 = vsel %vm3026, %v2797, %v2799
        %v3117 = vsel %vm3026, %v2799, %v2801
        %v3118 = vsel %vm3026, %v2803, %v2805
        %v3119 = vsel %vm3026, %v2805, %v2807
        %v3120 = vsel %vm3026, %v2807, %v2809
        %v3121 = vsel %vm3026, %v2809, %v2811
        %v3122 = vsel %vm3026, %v2811, %v2813
        %v3123 = vsel %vm3026, %v2813, %v2815
        %v3124 = vsel %vm3026, %v2815, %v2817
        %v3125 = vsel %vm3026, %v2819, %v2821
        %v3126 = vsel %vm3026, %v2821, %v2823
        %v3127 = vsel %vm3026, %v2823, %v2825
        %v3128 = vsel %vm3026, %v2825, %v2827
        %v3129 = vsel %vm3026, %v2827, %v2829
        %v3130 = vsel %vm3026, %v2829, %v2831
        %v3131 = vsel %vm3026, %v2831, %v2833
        %v3132 = vsel %vm3026, %v2835, %v2837
        %v3133 = vsel %vm3026, %v2837, %v2839
        %v3134 = vsel %vm3026, %v2839, %v2841
        %v3135 = vsel %vm3026, %v2841, %v2843
        %v3136 = vsel %vm3026, %v2843, %v2845
        %v3137 = vsel %vm3026, %v2845, %v2847
        %v3138 = vsel %vm3026, %v2847, %v2849
        %v3139 = vsel %vm3026, %v2851, %v2853
        %v3140 = vsel %vm3026, %v2853, %v2855
        %v3141 = vsel %vm3026, %v2855, %v2857
        %v3142 = vsel %vm3026, %v2857, %v2859
        %v3143 = vsel %vm3026, %v2859, %v2861
        %v3144 = vsel %vm3026, %v2861, %v2863
        %v3145 = vsel %vm3026, %v2863, %v2865
        %v3146 = vsel %vm3026, %v2867, %v2869
        %v3147 = vsel %vm3026, %v2869, %v2871
        %v3148 = vsel %vm3026, %v2871, %v2873
        %v3149 = vsel %vm3026, %v2873, %v2875
        %v3150 = vsel %vm3026, %v2875, %v2877
        %v3151 = vsel %vm3026, %v2877, %v2879
        %v3152 = vsel %vm3026, %v2879, %v2881
        %v3153 = vsel %vm3026, %v2883, %v2885
        %v3154 = vsel %vm3026, %v2885, %v2887
        %v3155 = vsel %vm3026, %v2887, %v2889
        %v3156 = vsel %vm3026, %v2889, %v2891
        %v3157 = vsel %vm3026, %v2891, %v2893
        %v3158 = vsel %vm3026, %v2893, %v2895
        %v3159 = vsel %vm3026, %v2895, %v2897
        %v3160 = vsel %vm3026, %v2899, %v2901
        %v3161 = vsel %vm3026, %v2901, %v2903
        %v3162 = vsel %vm3026, %v2903, %v2905
        %v3163 = vsel %vm3026, %v2905, %v2907
        %v3164 = vsel %vm3026, %v2907, %v2909
        %v3165 = vsel %vm3026, %v2909, %v2911
        %v3166 = vsel %vm3026, %v2911, %v2913
        %v3167 = vsel %vm3026, %v2915, %v2917
        %v3168 = vsel %vm3026, %v2917, %v2919
        %v3169 = vsel %vm3026, %v2919, %v2921
        %v3170 = vsel %vm3026, %v2921, %v2923
        %v3171 = vsel %vm3026, %v2923, %v2925
        %v3172 = vsel %vm3026, %v2925, %v2927
        %v3173 = vsel %vm3026, %v2927, %v2929
        %v3174 = vsel %vm3026, %v2931, %v2933
        %v3175 = vsel %vm3026, %v2933, %v2935
        %v3176 = vsel %vm3026, %v2935, %v2937
        %v3177 = vsel %vm3026, %v2937, %v2939
        %v3178 = vsel %vm3026, %v2939, %v2941
        %v3179 = vsel %vm3026, %v2941, %v2943
        %v3180 = vsel %vm3026, %v2943, %v2945
        %v3181 = vsel %vm3026, %v2947, %v2949
        %v3182 = vsel %vm3026, %v2949, %v2951
        %v3183 = vsel %vm3026, %v2951, %v2953
        %v3184 = vsel %vm3026, %v2953, %v2955
        %v3185 = vsel %vm3026, %v2955, %v2957
        %v3186 = vsel %vm3026, %v2957, %v2959
        %v3187 = vsel %vm3026, %v2959, %v2961
        %v3188 = vsel %vm3026, %v2963, %v2965
        %v3189 = vsel %vm3026, %v2965, %v2967
        %v3190 = vsel %vm3026, %v2967, %v2969
        %v3191 = vsel %vm3026, %v2969, %v2971
        %v3192 = vsel %vm3026, %v2971, %v2973
        %v3193 = vsel %vm3026, %v2973, %v2975
        %v3194 = vsel %vm3026, %v2975, %v2977
        %v3195 = vsel %vm3026, %v2979, %v2981
        %v3196 = vsel %vm3026, %v2981, %v2983
        %v3197 = vsel %vm3026, %v2983, %v2985
        %v3198 = vsel %vm3026, %v2985, %v2987
        %v3199 = vsel %vm3026, %v2987, %v2989
        %v3200 = vsel %vm3026, %v2989, %v2991
        %v3201 = vsel %vm3026, %v2991, %v2993
        %v3202 = vsel %vm3026, %v2995, %v2997
        %v3203 = vsel %vm3026, %v2997, %v2999
        %v3204 = vsel %vm3026, %v2999, %v3001
        %v3205 = vsel %vm3026, %v3001, %v3003
        %v3206 = vsel %vm3026, %v3003, %v3005
        %v3207 = vsel %vm3026, %v3005, %v3007
        %v3208 = vsel %vm3026, %v3007, %v3009
        %v3209 = vsel %vm3026, %v3011, %v3013
        %v3210 = vsel %vm3026, %v3013, %v3015
        %v3211 = vsel %vm3026, %v3015, %v3017
        %v3212 = vsel %vm3026, %v3017, %v3019
        %v3213 = vsel %vm3026, %v3019, %v3021
        %v3214 = vsel %vm3026, %v3021, %v3023
        %v3215 = vsel %vm3026, %v3023, %v3025
        %v3406 = vsel %vm1332, %v2587, 0
        %3408 = vmatprep.subr.mxu0 %v3028
        %3409 = vmatpush1.msra.mxu0 %v3027
        %3410 = vmatprep.subr.mxu0 %v3035
        %3411 = vmatpush1.msra.mxu0 %v3034
        %3412 = vmatprep.subr.mxu0 %v3042
        %3413 = vmatpush1.msra.mxu0 %v3041
        %3414 = vmatprep.subr.mxu0 %v3049
        %3415 = vmatpush1.msra.mxu0 %v3048
        %3416 = vmatprep.subr.mxu0 %v3056
        %3417 = vmatpush1.msra.mxu0 %v3055
        %3418 = vmatprep.subr.mxu0 %v3063
        %3419 = vmatpush1.msra.mxu0 %v3062
        %3420 = vmatprep.subr.mxu0 %v3070
        %3421 = vmatpush1.msra.mxu0 %v3069
        %3422 = vmatprep.subr.mxu0 %v3077
        %3423 = vmatpush1.msra.mxu0 %v3076
        %3424 = vmatprep.subr.mxu0 %v3084
        %3425 = vmatpush1.msra.mxu0 %v3083
        %3426 = vmatprep.subr.mxu0 %v3091
        %3427 = vmatpush1.msra.mxu0 %v3090
        %3428 = vmatprep.subr.mxu0 %v3098
        %3429 = vmatpush1.msra.mxu0 %v3097
        %3430 = vmatprep.subr.mxu0 %v3105
        %3431 = vmatpush1.msra.mxu0 %v3104
        %3432 = vmatprep.subr.mxu0 %v3112
        %3433 = vmatpush1.msra.mxu0 %v3111
        %3434 = vmatprep.subr.mxu0 %v3119
        %3435 = vmatpush1.msra.mxu0 %v3118
        %3436 = vmatprep.subr.mxu0 %v3126
        %3437 = vmatpush1.msra.mxu0 %v3125
        %3438 = vmatprep.subr.mxu0 %v3133
        %3439 = vmatpush1.msra.mxu0 %v3132
        %3440 = vmatprep.subr.mxu0 %v3140
        %3441 = vmatpush1.msra.mxu0 %v3139
        %3442 = vmatprep.subr.mxu0 %v3147
        %3443 = vmatpush1.msra.mxu0 %v3146
        %3444 = vmatprep.subr.mxu0 %v3154
        %3445 = vmatpush1.msra.mxu0 %v3153
        %3446 = vmatprep.subr.mxu0 %v3161
        %3447 = vmatpush1.msra.mxu0 %v3160
        %3448 = vmatprep.subr.mxu0 %v3168
        %3449 = vmatpush1.msra.mxu0 %v3167
        %3450 = vmatprep.subr.mxu0 %v3175
        %3451 = vmatpush1.msra.mxu0 %v3174
        %3452 = vmatprep.subr.mxu0 %v3182
        %3453 = vmatpush1.msra.mxu0 %v3181
        %3454 = vmatprep.subr.mxu0 %v3189
        %3455 = vmatpush1.msra.mxu0 %v3188
        %3456 = vmatprep.subr.mxu0 %v3196
        %3457 = vmatpush1.msra.mxu0 %v3195
        %3458 = vmatprep.subr.mxu0 %v3203
        %3459 = vmatpush1.msra.mxu0 %v3202
        %3460 = vmatprep.subr.mxu0 %v3210
        %3461 = vmatpush1.msra.mxu0 %v3209
        %3462 = vmatprep.subr.mxu0 0.0
        %3463 = vmatpush1.msra.mxu0 0.0
        %3464 = vmatprep.subr.mxu0 0.0
        %3465 = vmatpush1.msra.mxu0 0.0
        %3466 = vmatprep.subr.mxu0 0.0
        %3467 = vmatpush1.msra.mxu0 0.0
        %3468 = vmatprep.subr.mxu0 0.0
        %3469 = vmatpush1.msra.mxu0 0.0
        %3470 = vmatprep.subr.mxu0 0.0
        %3471 = vmatpush1.msra.mxu0 0.0
        %3472 = vmatprep.mubr.f32.mxu0 %v3406
        %3473 = vmatmul.mubr.f32.gmra.mrb[0].mxu0 %v2586
        %v3474 = vpop.f32.mrb[0].mxu0
        %v3475 = vadd.f32 %v2592, %v3474
        %v3476 = vpop.f32.mrb[0].mxu0
        %v3477 = vadd.f32 %v2592, %v3476
        %3478 = vdwg.mxu0
        %3479 = vmatprep.subr.mxu0 %v3030
        %3480 = vmatpush1.msra.mxu0 %v3029
        %3481 = vmatprep.subr.mxu0 %v3037
        %3482 = vmatpush1.msra.mxu0 %v3036
        %3483 = vmatprep.subr.mxu0 %v3044
        %3484 = vmatpush1.msra.mxu0 %v3043
        %3485 = vmatprep.subr.mxu0 %v3051
        %3486 = vmatpush1.msra.mxu0 %v3050
        %3487 = vmatprep.subr.mxu0 %v3058
        %3488 = vmatpush1.msra.mxu0 %v3057
        %3489 = vmatprep.subr.mxu0 %v3065
        %3490 = vmatpush1.msra.mxu0 %v3064
        %3491 = vmatprep.subr.mxu0 %v3072
        %3492 = vmatpush1.msra.mxu0 %v3071
        %3493 = vmatprep.subr.mxu0 %v3079
        %3494 = vmatpush1.msra.mxu0 %v3078
        %3495 = vmatprep.subr.mxu0 %v3086
        %3496 = vmatpush1.msra.mxu0 %v3085
        %3497 = vmatprep.subr.mxu0 %v3093
        %3498 = vmatpush1.msra.mxu0 %v3092
        %3499 = vmatprep.subr.mxu0 %v3100
        %3500 = vmatpush1.msra.mxu0 %v3099
        %3501 = vmatprep.subr.mxu0 %v3107
        %3502 = vmatpush1.msra.mxu0 %v3106
        %3503 = vmatprep.subr.mxu0 %v3114
        %3504 = vmatpush1.msra.mxu0 %v3113
        %3505 = vmatprep.subr.mxu0 %v3121
        %3506 = vmatpush1.msra.mxu0 %v3120
        %3507 = vmatprep.subr.mxu0 %v3128
        %3508 = vmatpush1.msra.mxu0 %v3127
        %3509 = vmatprep.subr.mxu0 %v3135
        %3510 = vmatpush1.msra.mxu0 %v3134
        %3511 = vmatprep.subr.mxu0 %v3142
        %3512 = vmatpush1.msra.mxu0 %v3141
        %3513 = vmatprep.subr.mxu0 %v3149
        %3514 = vmatpush1.msra.mxu0 %v3148
        %3515 = vmatprep.subr.mxu0 %v3156
        %3516 = vmatpush1.msra.mxu0 %v3155
        %3517 = vmatprep.subr.mxu0 %v3163
        %3518 = vmatpush1.msra.mxu0 %v3162
        %3519 = vmatprep.subr.mxu0 %v3170
        %3520 = vmatpush1.msra.mxu0 %v3169
        %3521 = vmatprep.subr.mxu0 %v3177
        %3522 = vmatpush1.msra.mxu0 %v3176
        %3523 = vmatprep.subr.mxu0 %v3184
        %3524 = vmatpush1.msra.mxu0 %v3183
        %3525 = vmatprep.subr.mxu0 %v3191
        %3526 = vmatpush1.msra.mxu0 %v3190
        %3527 = vmatprep.subr.mxu0 %v3198
        %3528 = vmatpush1.msra.mxu0 %v3197
        %3529 = vmatprep.subr.mxu0 %v3205
        %3530 = vmatpush1.msra.mxu0 %v3204
        %3531 = vmatprep.subr.mxu0 %v3212
        %3532 = vmatpush1.msra.mxu0 %v3211
        %3533 = vmatprep.subr.mxu0 0.0
        %3534 = vmatpush1.msra.mxu0 0.0
        %3535 = vmatprep.subr.mxu0 0.0
        %3536 = vmatpush1.msra.mxu0 0.0
        %3537 = vmatprep.subr.mxu0 0.0
        %3538 = vmatpush1.msra.mxu0 0.0
        %3539 = vmatprep.subr.mxu0 0.0
        %3540 = vmatpush1.msra.mxu0 0.0
        %3541 = vmatprep.subr.mxu0 0.0
        %3542 = vmatpush1.msra.mxu0 0.0
        %3543 = vmatprep.mubr.f32.mxu0 %v3406
        %3544 = vmatmul.mubr.f32.gmra.mrb[0].mxu0 %v2586
        %v3545 = vpop.f32.mrb[0].mxu0
        %v3546 = vadd.f32 %v2592, %v3545
        %v3547 = vpop.f32.mrb[0].mxu0
        %v3548 = vadd.f32 %v2592, %v3547
        %3549 = vdwg.mxu0
        %3550 = vmatprep.subr.mxu0 %v3032
        %3551 = vmatpush1.msra.mxu0 %v3031
        %3552 = vmatprep.subr.mxu0 %v3039
        %3553 = vmatpush1.msra.mxu0 %v3038
        %3554 = vmatprep.subr.mxu0 %v3046
        %3555 = vmatpush1.msra.mxu0 %v3045
        %3556 = vmatprep.subr.mxu0 %v3053
        %3557 = vmatpush1.msra.mxu0 %v3052
        %3558 = vmatprep.subr.mxu0 %v3060
        %3559 = vmatpush1.msra.mxu0 %v3059
        %3560 = vmatprep.subr.mxu0 %v3067
        %3561 = vmatpush1.msra.mxu0 %v3066
        %3562 = vmatprep.subr.mxu0 %v3074
        %3563 = vmatpush1.msra.mxu0 %v3073
        %3564 = vmatprep.subr.mxu0 %v3081
        %3565 = vmatpush1.msra.mxu0 %v3080
        %3566 = vmatprep.subr.mxu0 %v3088
        %3567 = vmatpush1.msra.mxu0 %v3087
        %3568 = vmatprep.subr.mxu0 %v3095
        %3569 = vmatpush1.msra.mxu0 %v3094
        %3570 = vmatprep.subr.mxu0 %v3102
        %3571 = vmatpush1.msra.mxu0 %v3101
        %3572 = vmatprep.subr.mxu0 %v3109
        %3573 = vmatpush1.msra.mxu0 %v3108
        %3574 = vmatprep.subr.mxu0 %v3116
        %3575 = vmatpush1.msra.mxu0 %v3115
        %3576 = vmatprep.subr.mxu0 %v3123
        %3577 = vmatpush1.msra.mxu0 %v3122
        %3578 = vmatprep.subr.mxu0 %v3130
        %3579 = vmatpush1.msra.mxu0 %v3129
        %3580 = vmatprep.subr.mxu0 %v3137
        %3581 = vmatpush1.msra.mxu0 %v3136
        %3582 = vmatprep.subr.mxu0 %v3144
        %3583 = vmatpush1.msra.mxu0 %v3143
        %3584 = vmatprep.subr.mxu0 %v3151
        %3585 = vmatpush1.msra.mxu0 %v3150
        %3586 = vmatprep.subr.mxu0 %v3158
        %3587 = vmatpush1.msra.mxu0 %v3157
        %3588 = vmatprep.subr.mxu0 %v3165
        %3589 = vmatpush1.msra.mxu0 %v3164
        %3590 = vmatprep.subr.mxu0 %v3172
        %3591 = vmatpush1.msra.mxu0 %v3171
        %3592 = vmatprep.subr.mxu0 %v3179
        %3593 = vmatpush1.msra.mxu0 %v3178
        %3594 = vmatprep.subr.mxu0 %v3186
        %3595 = vmatpush1.msra.mxu0 %v3185
        %3596 = vmatprep.subr.mxu0 %v3193
        %3597 = vmatpush1.msra.mxu0 %v3192
        %3598 = vmatprep.subr.mxu0 %v3200
        %3599 = vmatpush1.msra.mxu0 %v3199
        %3600 = vmatprep.subr.mxu0 %v3207
        %3601 = vmatpush1.msra.mxu0 %v3206
        %3602 = vmatprep.subr.mxu0 %v3214
        %3603 = vmatpush1.msra.mxu0 %v3213
        %3604 = vmatprep.subr.mxu0 0.0
        %3605 = vmatpush1.msra.mxu0 0.0
        %3606 = vmatprep.subr.mxu0 0.0
        %3607 = vmatpush1.msra.mxu0 0.0
        %3608 = vmatprep.subr.mxu0 0.0
        %3609 = vmatpush1.msra.mxu0 0.0
        %3610 = vmatprep.subr.mxu0 0.0
        %3611 = vmatpush1.msra.mxu0 0.0
        %3612 = vmatprep.subr.mxu0 0.0
        %3613 = vmatpush1.msra.mxu0 0.0
        %3614 = vmatprep.mubr.f32.mxu0 %v3406
        %3615 = vmatmul.mubr.f32.gmra.mrb[0].mxu0 %v2586
        %v3616 = vpop.f32.mrb[0].mxu0
        %v3617 = vadd.f32 %v2592, %v3616
        %v3618 = vpop.f32.mrb[0].mxu0
        %v3619 = vadd.f32 %v2592, %v3618
        %3620 = vdwg.mxu0
        %3621 = vmatprep.subr.mxu0 0.0
        %3622 = vmatpush1.msra.mxu0 %v3033
        %3623 = vmatprep.subr.mxu0 0.0
        %3624 = vmatpush1.msra.mxu0 %v3040
        %3625 = vmatprep.subr.mxu0 0.0
        %3626 = vmatpush1.msra.mxu0 %v3047
        %3627 = vmatprep.subr.mxu0 0.0
        %3628 = vmatpush1.msra.mxu0 %v3054
        %3629 = vmatprep.subr.mxu0 0.0
        %3630 = vmatpush1.msra.mxu0 %v3061
        %3631 = vmatprep.subr.mxu0 0.0
        %3632 = vmatpush1.msra.mxu0 %v3068
        %3633 = vmatprep.subr.mxu0 0.0
        %3634 = vmatpush1.msra.mxu0 %v3075
        %3635 = vmatprep.subr.mxu0 0.0
        %3636 = vmatpush1.msra.mxu0 %v3082
        %3637 = vmatprep.subr.mxu0 0.0
        %3638 = vmatpush1.msra.mxu0 %v3089
        %3639 = vmatprep.subr.mxu0 0.0
        %3640 = vmatpush1.msra.mxu0 %v3096
        %3641 = vmatprep.subr.mxu0 0.0
        %3642 = vmatpush1.msra.mxu0 %v3103
        %3643 = vmatprep.subr.mxu0 0.0
        %3644 = vmatpush1.msra.mxu0 %v3110
        %3645 = vmatprep.subr.mxu0 0.0
        %3646 = vmatpush1.msra.mxu0 %v3117
        %3647 = vmatprep.subr.mxu0 0.0
        %3648 = vmatpush1.msra.mxu0 %v3124
        %3649 = vmatprep.subr.mxu0 0.0
        %3650 = vmatpush1.msra.mxu0 %v3131
        %3651 = vmatprep.subr.mxu0 0.0
        %3652 = vmatpush1.msra.mxu0 %v3138
        %3653 = vmatprep.subr.mxu0 0.0
        %3654 = vmatpush1.msra.mxu0 %v3145
        %3655 = vmatprep.subr.mxu0 0.0
        %3656 = vmatpush1.msra.mxu0 %v3152
        %3657 = vmatprep.subr.mxu0 0.0
        %3658 = vmatpush1.msra.mxu0 %v3159
        %3659 = vmatprep.subr.mxu0 0.0
        %3660 = vmatpush1.msra.mxu0 %v3166
        %3661 = vmatprep.subr.mxu0 0.0
        %3662 = vmatpush1.msra.mxu0 %v3173
        %3663 = vmatprep.subr.mxu0 0.0
        %3664 = vmatpush1.msra.mxu0 %v3180
        %3665 = vmatprep.subr.mxu0 0.0
        %3666 = vmatpush1.msra.mxu0 %v3187
        %3667 = vmatprep.subr.mxu0 0.0
        %3668 = vmatpush1.msra.mxu0 %v3194
        %3669 = vmatprep.subr.mxu0 0.0
        %3670 = vmatpush1.msra.mxu0 %v3201
        %3671 = vmatprep.subr.mxu0 0.0
        %3672 = vmatpush1.msra.mxu0 %v3208
        %3673 = vmatprep.subr.mxu0 0.0
        %3674 = vmatpush1.msra.mxu0 %v3215
        %3675 = vmatprep.subr.mxu0 0.0
        %3676 = vmatpush1.msra.mxu0 0.0
        %3677 = vmatprep.subr.mxu0 0.0
        %3678 = vmatpush1.msra.mxu0 0.0
        %3679 = vmatprep.subr.mxu0 0.0
        %3680 = vmatpush1.msra.mxu0 0.0
        %3681 = vmatprep.subr.mxu0 0.0
        %3682 = vmatpush1.msra.mxu0 0.0
        %3683 = vmatprep.subr.mxu0 0.0
        %3684 = vmatpush1.msra.mxu0 0.0
        %3685 = vmatprep.mubr.f32.mxu0 %v3406
        %3686 = vmatmul.mubr.f32.gmra.mrb[0].mxu0 %v2586
        %v3687 = vpop.f32.mrb[0].mxu0
        %v3688 = vadd.f32 %v2592, %v3687
        %v3689 = vpop.f32.mrb[0].mxu0
        %3690 = vdwg.mxu0
        %v3691 = vmul.f32 %v3475, %v1623
        %v3692 = vmul.f32 %v3477, %v1627
        %v3693 = vmul.f32 %v3546, %v1631
        %v3694 = vmul.f32 %v3548, %v1635
        %v3695 = vmul.f32 %v3617, %v1639
        %v3696 = vmul.f32 %v3619, %v1643
        %v3697 = vmul.f32 %v3688, %v1647
        %v3698 = vadd.f32 %v3691, %v3692
        %v3699 = vadd.f32 %v3698, %v3693
        %v3700 = vadd.f32 %v3699, %v3694
        %v3701 = vadd.f32 %v3700, %v3695
        %v3702 = vadd.f32 %v3701, %v3696
        %v3703 = vadd.f32 %v3702, %v3697
        %3704 = vadd.xlane.f32.xlu0 %v3703
        %v3705 = vpop.xlane.xlu0 %3704
        %v3706 = vmul.f32 %v3705, 0.001953125
        %v3707 = vmul.f32 %v3691, %v3691
        %v3708 = vmul.f32 %v3692, %v3692
        %v3709 = vmul.f32 %v3693, %v3693
        %v3710 = vmul.f32 %v3694, %v3694
        %v3711 = vmul.f32 %v3695, %v3695
        %v3712 = vmul.f32 %v3696, %v3696
        %v3713 = vmul.f32 %v3697, %v3697
        %v3714 = vadd.f32 %v3707, %v3708
        %v3715 = vadd.f32 %v3714, %v3709
        %v3716 = vadd.f32 %v3715, %v3710
        %v3717 = vadd.f32 %v3716, %v3711
        %v3718 = vadd.f32 %v3717, %v3712
        %v3719 = vadd.f32 %v3718, %v3713
        %3720 = vadd.xlane.f32.xlu0 %v3719
        %v3721 = vpop.xlane.xlu0 %3720
        %v3722 = vmul.f32 %v3721, 0.001953125
        %v3723 = vmul.f32 %v3706, %v3706
        %v3724 = vsub.f32 %v3722, %v3723
        %v3725 = vmax.f32 %v3724, 0.0
        %v3726 = vsub.f32 %v3475, %v3706
        %v3727 = vsub.f32 %v3477, %v3706
        %v3728 = vsub.f32 %v3546, %v3706
        %v3729 = vsub.f32 %v3548, %v3706
        %v3730 = vsub.f32 %v3617, %v3706
        %v3731 = vsub.f32 %v3619, %v3706
        %v3732 = vsub.f32 %v3688, %v3706
        %v3733 = vadd.f32 %v3725, 1e-05
        %v3734 = vrsqrt.pop %v3733
        %v3735 = vmul.f32 %v3726, %v3734
        %v3736 = vmul.f32 %v3727, %v3734
        %v3737 = vmul.f32 %v3728, %v3734
        %v3738 = vmul.f32 %v3729, %v3734
        %v3739 = vmul.f32 %v3730, %v3734
        %v3740 = vmul.f32 %v3731, %v3734
        %v3741 = vmul.f32 %v3732, %v3734
        %v3742 = vmax.f32 %v3735, 0.0
        %v3743 = vmax.f32 %v3736, 0.0
        %v3744 = vmax.f32 %v3737, 0.0
        %v3745 = vmax.f32 %v3738, 0.0
        %v3746 = vmax.f32 %v3739, 0.0
        %v3747 = vmax.f32 %v3740, 0.0
        %v3748 = vmax.f32 %v3741, 0.0
        %v3749 = vmul.f32 %v3742, %v1623
        %v3750 = vmul.f32 %v3743, %v1627
        %v3751 = vmul.f32 %v3744, %v1631
        %v3752 = vmul.f32 %v3745, %v1635
        %v3753 = vmul.f32 %v3746, %v1639
        %v3754 = vmul.f32 %v3747, %v1643
        %v3755 = vmul.f32 %v3748, %v1647
        %3756 = vst [vmem:[%s280] sm:$0xff] %v3749
        %3757 = vst [vmem:[%s280 + $0x8] sm:$0xff] %v3750
        %3758 = vst [vmem:[%s280 + $0x10] sm:$0xff] %v3751
        %3759 = vst [vmem:[%s280 + $0x18] sm:$0xff] %v3752
        %3760 = vst [vmem:[%s280 + $0x20] sm:$0xff] %v3753
        %3761 = vst [vmem:[%s280 + $0x28] sm:$0xff] %v3754
        %3762 = vst [vmem:[%s280 + $0x30] sm:$0xff] %v3755
        %s3763 = sand.u32 %s163, 1
        %s3764 = scalar_lea.sflag [#allocation5], %s3763
        %s3765 = sand.u32 %s163, 1
        %s3766 = smul.addr %s3765, 56
        %s3767 = scalar_lea.vmem [#allocation8], %s3766
        // Predicated region
        $region53: #{tpu_custom_call.1} parent=43 // pred_check
          %p3768 = pneg %p173
        $region54: #{tpu_custom_call.1} parent=43 // pred_check_branch
          %3770 = sbr.rel (%p3768) target = $region56
        $region55: #{tpu_custom_call.1} parent=43 // pred_region
          %s3772 = ssub.s32 896, 896
          %3773 = vsyncadd %s3764, %s3772
          %s3774 = smul.addr %s24, 7
          %s3775 = smul.addr %s3774, 128
          %s3776 = scalar_lea.hbm %s6, %s3775
          %s3778 = sshll.u32 %s3767, 4
          %s3779 = int_to_ptr.vmem [resolvable:$true] %s3778
          %3781 = dma.vmem_to_hbm [thread:$0]  %s3779, 896, %s3776, %s3764
        $region56: #{tpu_custom_call.1} parent=43 // pred_fallthru
          _
      $region44: #{tpu_custom_call.1} parent=5 // pred_fallthru
        _
      %p3782 = scmp.le.s32.totalorder 2, %s19
      // Predicated region
      $region57: #{tpu_custom_call.1} parent=5 // pred_check
        %p3783 = pneg %p3782
      $region58: #{tpu_custom_call.1} parent=5 // pred_check_branch
        %3785 = sbr.rel (%p3783) target = $region60
      $region59: #{tpu_custom_call.1} parent=5 // pred_region
        %s3786 = ssub.s32 %s19, 2
        // Predicated region
        $region61: #{tpu_custom_call.1} parent=59 // pred_check
          %p3787 = pneg %p179
        $region62: #{tpu_custom_call.1} parent=59 // pred_check_branch
          %3789 = sbr.rel (%p3787) target = $region64
        $region63: #{tpu_custom_call.1} parent=59 // pred_region
          %s3790 = sand.u32 %s164, 1
          %s3791 = scalar_lea.sflag [#allocation5], %s3790
          %s3792 = sand.u32 %s164, 1
          %s3793 = smul.addr %s3792, 56
          %s3794 = scalar_lea.vmem [#allocation8], %s3793
          %3795 = dma.done %s3791, 896
        $region64: #{tpu_custom_call.1} parent=59 // pred_fallthru
          _
      $region60: #{tpu_custom_call.1} parent=5 // pred_fallthru
        _
    $region6: #{tpu_custom_call.1} parent=1 // loop_footer
      %s23 = sadd.s32 1, %s19
    $region7: #{tpu_custom_call.1} parent=1 // loop_footer_branch
      %18 = sbr.rel target = $region3
    $region8: #{tpu_custom_call.1} parent=1 // loop_exit
      _
    %3796 = vsyncpa [#allocation4], 1
    %s3797 = scalar_lea.sflag [#allocation4], 1
    %3798 = vsyncpa %s3797, 1
    %3799 = vsyncpa [#allocation7], 1
    %3800 = vsyncpa [#allocation5], 1
    %s3801 = scalar_lea.sflag [#allocation5], 1
    %3802 = vsyncpa %s3801, 1

</llo_original>
